<compile_context>
chip_gen: v6e
topology: v6e:2x2x1
jax: 0.10.0
libtpu: 0.0.40
codegen_flags: <defaults>
</compile_context>

<pallas_src>
import functools

import jax
import jax.numpy as jnp
from jax.experimental import pallas as pl
from jax.experimental.pallas import tpu as pltpu


_VMEM_LIMIT = 32 * 1024 * 1024
_BN_EPS = 1e-5


# ----------------------------------------------------------------------------------------------
# In-kernel helpers
# ----------------------------------------------------------------------------------------------
def _mask_padded(h, ni, n_valid, ragged):
    """Mask padded point lanes (columns >= valid count of this tile) with -inf before max-pool."""
    if not ragged:
        return h
    tn = h.shape[-1]
    col = jax.lax.broadcasted_iota(jnp.int32, h.shape, h.ndim - 1)
    return jnp.where(col < (n_valid - ni * tn), h, -jnp.inf)


def _max_accumulate(out_ref, tile_max, ni):
    """Branchless max accumulation into the resident (1, C, 1) output block."""
    prev = jnp.where(ni == 0, jnp.full_like(tile_max, -jnp.inf), out_ref[0])
    out_ref[0] = jnp.maximum(prev, tile_max)


# ----------------------------------------------------------------------------------------------
# Kernels (channels-first point tiles: activations are (C, tn), points on lanes)
# ----------------------------------------------------------------------------------------------
def _point_mlp_maxpool_kernel(x_ref, w1_ref, b1_ref, w2_ref, b2_ref, w3_ref, b3_ref,
                              out_ref, *, n_valid, ragged):
    """relu chains of three 1x1 convs (BN folded, bf16 MXU / f32 acc) + max over the point tile,
    max-accumulated across the point-tile grid axis."""
    ni = pl.program_id(1)
    x = x_ref[0]                                                                  # (Cin, TN) bf16
    h = jnp.maximum(
        jnp.dot(w1_ref[...], x, preferred_element_type=jnp.float32) + b1_ref[...], 0.0)
    h = jnp.maximum(
        jnp.dot(w2_ref[...], h.astype(jnp.bfloat16),
                preferred_element_type=jnp.float32) + b2_ref[...], 0.0)
    h = jnp.maximum(
        jnp.dot(w3_ref[...], h.astype(jnp.bfloat16),
                preferred_element_type=jnp.float32) + b3_ref[...], 0.0)
    h = _mask_padded(h, ni, n_valid, ragged)
    _max_accumulate(out_ref, jnp.max(h, axis=1, keepdims=True), ni)


def _conv1_fstn_maxpool_kernel(x_ref, tw1_ref, b1_ref, fw1_ref, fb1_ref, fw2_ref, fb2_ref,
                               fw3_ref, fb3_ref, f1_ref, out_ref, *, n_valid, ragged):
    """Fused: f1 = relu((W1_eff @ trans^T) @ x + b1) stored lane-dense (bf16), then the feature-STN
    conv chain on the same tile, max-accumulated across point tiles."""
    ni = pl.program_id(1)
    x = x_ref[0]                                                                  # (3, TN) bf16
    f1 = jnp.maximum(
        jnp.dot(tw1_ref[0], x, preferred_element_type=jnp.float32) + b1_ref[...], 0.0)
    f1 = f1.astype(jnp.bfloat16)
    f1_ref[0] = f1                                                                # (64, TN) bf16 store
    h = jnp.maximum(
        jnp.dot(fw1_ref[...], f1, preferred_element_type=jnp.float32) + fb1_ref[...], 0.0)
    h = jnp.maximum(
        jnp.dot(fw2_ref[...], h.astype(jnp.bfloat16),
                preferred_element_type=jnp.float32) + fb2_ref[...], 0.0)
    h = jnp.maximum(
        jnp.dot(fw3_ref[...], h.astype(jnp.bfloat16),
                preferred_element_type=jnp.float32) + fb3_ref[...], 0.0)
    h = _mask_padded(h, ni, n_valid, ragged)
    _max_accumulate(out_ref, jnp.max(h, axis=1, keepdims=True), ni)


def _conv23_maxpool_kernel(f_ref, tw2_ref, b2_ref, w3_ref, b3_ref, out_ref, *, n_valid, ragged):
    """(W2_eff @ trans_feat^T) @ f1 + b2 -> ReLU -> conv3 (BN folded, no ReLU) -> max over points,
    max-accumulated across point tiles. The trans_feat fold is precomputed per batch (hoisted)."""
    ni = pl.program_id(1)
    f = f_ref[0]                                                                  # (64, TN) bf16
    h = jnp.maximum(
        jnp.dot(tw2_ref[0], f, preferred_element_type=jnp.float32) + b2_ref[...], 0.0)
    h = jnp.dot(w3_ref[...], h.astype(jnp.bfloat16),
                preferred_element_type=jnp.float32) + b3_ref[...]
    h = _mask_padded(h, ni, n_valid, ragged)
    _max_accumulate(out_ref, jnp.max(h, axis=1, keepdims=True), ni)


def _mlp3_head_kernel(x_ref, w1_ref, b1_ref, w2_ref, b2_ref, w3_ref, b3_ref, out_ref):
    """relu(relu(x@w1+b1)@w2+b2)@w3+b3 (BN folded; +eye(k) already folded into b3 when needed).
    Tiny / launch-bound: kept in f32, intentionally untuned."""
    x = x_ref[...]
    h = jnp.maximum(jnp.dot(x, w1_ref[...], preferred_element_type=jnp.float32) + b1_ref[...], 0.0)
    h = jnp.maximum(jnp.dot(h, w2_ref[...], preferred_element_type=jnp.float32) + b2_ref[...], 0.0)
    out_ref[...] = jnp.dot(h, w3_ref[...], preferred_element_type=jnp.float32) + b3_ref[...]


# ----------------------------------------------------------------------------------------------
# pallas_call wrappers
# ----------------------------------------------------------------------------------------------
def point_mlp_maxpool(x_cf, w1, b1, w2, b2, w3, b3, *, n_valid, tn):
    B, cin, n_pad = x_cf.shape
    c1, c2, c3 = w1.shape[0], w2.shape[0], w3.shape[0]
    kernel = functools.partial(_point_mlp_maxpool_kernel,
                               n_valid=n_valid, ragged=(n_pad != n_valid))
    out = pl.pallas_call(
        kernel,
        out_shape=jax.ShapeDtypeStruct((B, c3, 1), jnp.float32),
        grid_spec=pltpu.PrefetchScalarGridSpec(
            num_scalar_prefetch=0,
            grid=(B, n_pad // tn),
            in_specs=[
                pl.BlockSpec((1, cin, tn), lambda bi, ni: (bi, 0, ni)),
                pl.BlockSpec((c1, cin), lambda bi, ni: (0, 0)),
                pl.BlockSpec((c1, 1), lambda bi, ni: (0, 0)),
                pl.BlockSpec((c2, c1), lambda bi, ni: (0, 0)),
                pl.BlockSpec((c2, 1), lambda bi, ni: (0, 0)),
                pl.BlockSpec((c3, c2), lambda bi, ni: (0, 0)),
                pl.BlockSpec((c3, 1), lambda bi, ni: (0, 0)),
            ],
            out_specs=pl.BlockSpec((1, c3, 1), lambda bi, ni: (bi, 0, 0)),
        ),
        compiler_params=pltpu.CompilerParams(
            dimension_semantics=("parallel", "arbitrary"),
            vmem_limit_bytes=_VMEM_LIMIT),
    )(x_cf, w1, b1, w2, b2, w3, b3)
    return out[:, :, 0]


def conv1_fstn_maxpool(x_cf, tw1, b1, fw1, fb1, fw2, fb2, fw3, fb3, *, n_valid, tn):
    B, cin, n_pad = x_cf.shape
    c1 = tw1.shape[1]
    d1, d2, d3 = fw1.shape[0], fw2.shape[0], fw3.shape[0]
    kernel = functools.partial(_conv1_fstn_maxpool_kernel,
                               n_valid=n_valid, ragged=(n_pad != n_valid))
    f1, g = pl.pallas_call(
        kernel,
        out_shape=(jax.ShapeDtypeStruct((B, c1, n_pad), jnp.bfloat16),
                   jax.ShapeDtypeStruct((B, d3, 1), jnp.float32)),
        grid_spec=pltpu.PrefetchScalarGridSpec(
            num_scalar_prefetch=0,
            grid=(B, n_pad // tn),
            in_specs=[
                pl.BlockSpec((1, cin, tn), lambda bi, ni: (bi, 0, ni)),
                pl.BlockSpec((1, c1, cin), lambda bi, ni: (bi, 0, 0)),
                pl.BlockSpec((c1, 1), lambda bi, ni: (0, 0)),
                pl.BlockSpec((d1, c1), lambda bi, ni: (0, 0)),
                pl.BlockSpec((d1, 1), lambda bi, ni: (0, 0)),
                pl.BlockSpec((d2, d1), lambda bi, ni: (0, 0)),
                pl.BlockSpec((d2, 1), lambda bi, ni: (0, 0)),
                pl.BlockSpec((d3, d2), lambda bi, ni: (0, 0)),
                pl.BlockSpec((d3, 1), lambda bi, ni: (0, 0)),
            ],
            out_specs=[
                pl.BlockSpec((1, c1, tn), lambda bi, ni: (bi, 0, ni)),
                pl.BlockSpec((1, d3, 1), lambda bi, ni: (bi, 0, 0)),
            ],
        ),
        compiler_params=pltpu.CompilerParams(
            dimension_semantics=("parallel", "arbitrary"),
            vmem_limit_bytes=_VMEM_LIMIT),
    )(x_cf, tw1, b1, fw1, fb1, fw2, fb2, fw3, fb3)
    return f1, g[:, :, 0]


def conv23_maxpool(f1_cf, tw2, b2, w3, b3, *, n_valid, tn):
    B, c1, n_pad = f1_cf.shape
    c2, c3 = tw2.shape[1], w3.shape[0]
    kernel = functools.partial(_conv23_maxpool_kernel,
                               n_valid=n_valid, ragged=(n_pad != n_valid))
    out = pl.pallas_call(
        kernel,
        out_shape=jax.ShapeDtypeStruct((B, c3, 1), jnp.float32),
        grid_spec=pltpu.PrefetchScalarGridSpec(
            num_scalar_prefetch=0,
            grid=(B, n_pad // tn),
            in_specs=[
                pl.BlockSpec((1, c1, tn), lambda bi, ni: (bi, 0, ni)),
                pl.BlockSpec((1, c2, c1), lambda bi, ni: (bi, 0, 0)),
                pl.BlockSpec((c2, 1), lambda bi, ni: (0, 0)),
                pl.BlockSpec((c3, c2), lambda bi, ni: (0, 0)),
                pl.BlockSpec((c3, 1), lambda bi, ni: (0, 0)),
            ],
            out_specs=pl.BlockSpec((1, c3, 1), lambda bi, ni: (bi, 0, 0)),
        ),
        compiler_params=pltpu.CompilerParams(
            dimension_semantics=("parallel", "arbitrary"),
            vmem_limit_bytes=_VMEM_LIMIT),
    )(f1_cf, tw2, b2, w3, b3)
    return out[:, :, 0]


def mlp3_head(x, w1, b1, w2, b2, w3, b3):
    B = x.shape[0]
    c3 = w3.shape[1]
    return pl.pallas_call(
        _mlp3_head_kernel,
        out_shape=jax.ShapeDtypeStruct((B, c3), jnp.float32),
        in_specs=[pl.BlockSpec(memory_space=pltpu.VMEM)] * 7,
        out_specs=pl.BlockSpec(memory_space=pltpu.VMEM),
        compiler_params=pltpu.CompilerParams(vmem_limit_bytes=_VMEM_LIMIT),
    )(x, w1, b1, w2, b2, w3, b3)


# ----------------------------------------------------------------------------------------------
# Parameters (PyTorch-like init) and BN folding
# ----------------------------------------------------------------------------------------------
def _init_linear(key, out_dim, in_dim):
    kw, kb = jax.random.split(key)
    bound = float(in_dim) ** -0.5
    w = jax.random.uniform(kw, (out_dim, in_dim), jnp.float32, -bound, bound)
    b = jax.random.uniform(kb, (out_dim,), jnp.float32, -bound, bound)
    return w, b


def _init_bn(key, dim):
    k1, k2, k3, k4 = jax.random.split(key, 4)
    gamma = (1.0 + 0.1 * jax.random.normal(k1, (dim,))).astype(jnp.float32)
    beta = (0.1 * jax.random.normal(k2, (dim,))).astype(jnp.float32)
    mean = (0.1 * jax.random.normal(k3, (dim,))).astype(jnp.float32)
    var = (0.5 + jnp.abs(jax.random.normal(k4, (dim,)))).astype(jnp.float32)
    return gamma, beta, mean, var


def _init_stn_params(key, k):
    keys = jax.random.split(key, 11)
    p = {"k": k}
    p["c1w"], p["c1b"] = _init_linear(keys[0], 64, k)
    p["bn1"] = _init_bn(keys[1], 64)
    p["c2w"], p["c2b"] = _init_linear(keys[2], 128, 64)
    p["bn2"] = _init_bn(keys[3], 128)
    p["c3w"], p["c3b"] = _init_linear(keys[4], 1024, 128)
    p["bn3"] = _init_bn(keys[5], 1024)
    p["f1w"], p["f1b"] = _init_linear(keys[6], 512, 1024)
    p["bn4"] = _init_bn(keys[7], 512)
    p["f2w"], p["f2b"] = _init_linear(keys[8], 256, 512)
    p["bn5"] = _init_bn(keys[9], 256)
    p["f3w"], p["f3b"] = _init_linear(keys[10], k * k, 256)
    return p


def _init_model_params(key, n_class=40, channel=3):
    keys = jax.random.split(key, 13)
    P = {}
    P["stn3"] = _init_stn_params(keys[0], 3)
    P["fstn"] = _init_stn_params(keys[1], 64)
    P["ec1w"], P["ec1b"] = _init_linear(keys[2], 64, channel)
    P["ebn1"] = _init_bn(keys[3], 64)
    P["ec2w"], P["ec2b"] = _init_linear(keys[4], 128, 64)
    P["ebn2"] = _init_bn(keys[5], 128)
    P["ec3w"], P["ec3b"] = _init_linear(keys[6], 1024, 128)
    P["ebn3"] = _init_bn(keys[7], 1024)
    P["cf1w"], P["cf1b"] = _init_linear(keys[8], 512, 1024)
    P["cbn1"] = _init_bn(keys[9], 512)
    P["cf2w"], P["cf2b"] = _init_linear(keys[10], 256, 512)
    P["cbn2"] = _init_bn(keys[11], 256)
    P["cf3w"], P["cf3b"] = _init_linear(keys[12], n_class, 256)
    return P


def _fold_bn_cf(w, b, bn):
    """Fold eval-mode BatchNorm into the preceding conv1x1/linear.
    Returns channels-first effective weight (out,in) and bias (out,1)."""
    gamma, beta, mean, var = bn
    s = gamma * jax.lax.rsqrt(var + _BN_EPS)
    w_eff = w * s[:, None]
    b_eff = (b - mean) * s + beta
    return w_eff, b_eff.reshape(-1, 1)


def _fold_bn_rm(w, b, bn):
    """Row-major (points-last) variant for the FC heads: (in,out) weight, (1,out) bias."""
    w_eff, b_eff = _fold_bn_cf(w, b, bn)
    return w_eff.T, b_eff.reshape(1, -1)


def _bf16(a):
    return a.astype(jnp.bfloat16)


def _round_up(v, m):
    return ((v + m - 1) // m) * m


# ----------------------------------------------------------------------------------------------
# Full PointNetClassifier forward (Pallas)
# ----------------------------------------------------------------------------------------------
def pointnet_classifier_forward(x, P, *, tn=512):
    """x: (B, 3, N) point cloud -> (logits (B, n_class), trans_feat (B, 64, 64)).
    tn: point-tile size (multiple of 128). Default 512 targets v6e/v7x; use 128-256 on v5e."""
    B, channel, N = x.shape
    assert channel == 3  # TODO(synk): channel>3 split path of PointNetEncoder not implemented.

    tn = max(128, min(_round_up(tn, 128), _round_up(N, 128)))
    n_pad = _round_up(N, tn)
    xc = _bf16(x)                                            # bf16 MXU operand, halves HBM read
    if n_pad != N:
        xc = jnp.pad(xc, ((0, 0), (0, 0), (0, n_pad - N)))   # padded lanes masked in-kernel

    # ---- STN(k=3): point MLP + maxpool, then FC head (+eye(3) folded into bias) ----
    s3 = P["stn3"]
    w1, b1 = _fold_bn_cf(s3["c1w"], s3["c1b"], s3["bn1"])
    w2, b2 = _fold_bn_cf(s3["c2w"], s3["c2b"], s3["bn2"])
    w3, b3 = _fold_bn_cf(s3["c3w"], s3["c3b"], s3["bn3"])
    g3 = point_mlp_maxpool(xc, _bf16(w1), b1, _bf16(w2), b2, _bf16(w3), b3,
                           n_valid=N, tn=tn)                                   # (B, 1024)
    h1w, h1b = _fold_bn_rm(s3["f1w"], s3["f1b"], s3["bn4"])
    h2w, h2b = _fold_bn_rm(s3["f2w"], s3["f2b"], s3["bn5"])
    h3b = s3["f3b"].reshape(1, -1) + jnp.eye(3, dtype=jnp.float32).reshape(1, -1)
    trans = mlp3_head(g3, h1w, h1b, h2w, h2b, s3["f3w"].T, h3b).reshape(B, 3, 3)

    # ---- fused: input transform + encoder conv1 + ReLU  +  feature STN(k=64) point MLP ----
    e1w, e1b = _fold_bn_cf(P["ec1w"], P["ec1b"], P["ebn1"])                    # (64,3), (64,1)
    tw1 = jnp.einsum("oc,bkc->bok", e1w, trans)                                # W1_eff @ trans^T
    sf = P["fstn"]
    fw1, fb1 = _fold_bn_cf(sf["c1w"], sf["c1b"], sf["bn1"])
    fw2, fb2 = _fold_bn_cf(sf["c2w"], sf["c2b"], sf["bn2"])
    fw3, fb3 = _fold_bn_cf(sf["c3w"], sf["c3b"], sf["bn3"])
    f1, g64 = conv1_fstn_maxpool(xc, _bf16(tw1), e1b,
                                 _bf16(fw1), fb1, _bf16(fw2), fb2, _bf16(fw3), fb3,
                                 n_valid=N, tn=tn)                             # (B,64,Np), (B,1024)
    g1w, g1b = _fold_bn_rm(sf["f1w"], sf["f1b"], sf["bn4"])
    g2w, g2b = _fold_bn_rm(sf["f2w"], sf["f2b"], sf["bn5"])
    g3b = sf["f3b"].reshape(1, -1) + jnp.eye(64, dtype=jnp.float32).reshape(1, -1)
    trans_feat = mlp3_head(g64, g1w, g1b, g2w, g2b, sf["f3w"].T, g3b).reshape(B, 64, 64)

    # ---- feature transform + conv2 + conv3 + global max-pool (trans_feat fold hoisted) ----
    e2w, e2b = _fold_bn_cf(P["ec2w"], P["ec2b"], P["ebn2"])                    # (128,64)
    e3w, e3b = _fold_bn_cf(P["ec3w"], P["ec3b"], P["ebn3"])                    # (1024,128)
    tw2 = jnp.einsum("oc,bkc->bok", e2w, trans_feat)                           # W2_eff @ trans_feat^T
    glob = conv23_maxpool(f1, _bf16(tw2), e2b, _bf16(e3w), e3b, n_valid=N, tn=tn)   # (B, 1024)

    # ---- classifier head (dropout == identity in eval mode) ----
    c1w, c1b = _fold_bn_rm(P["cf1w"], P["cf1b"], P["cbn1"])
    c2w, c2b = _fold_bn_rm(P["cf2w"], P["cf2b"], P["cbn2"])
    logits = mlp3_head(glob, c1w, c1b, c2w, c2b, P["cf3w"].T, P["cf3b"].reshape(1, -1))
    return logits, trans_feat


# ----------------------------------------------------------------------------------------------
# Pure-JAX reference (mirrors the PyTorch module, eval mode) for the self-check
# ----------------------------------------------------------------------------------------------
def _bn_eval(z, bn, axis):
    gamma, beta, mean, var = bn
    shape = [1] * z.ndim
    shape[axis] = -1
    return (gamma.reshape(shape) * (z - mean.reshape(shape))
            * jax.lax.rsqrt(var.reshape(shape) + _BN_EPS) + beta.reshape(shape))


def _ref_conv1d(x, w, b):
    return jnp.einsum("oi,bin->bon", w, x, precision="highest") + b[None, :, None]


def _ref_linear(x, w, b):
    return jnp.dot(x, w.T, precision="highest") + b[None, :]


def _ref_stn(x, p):
    h = jnp.maximum(_bn_eval(_ref_conv1d(x, p["c1w"], p["c1b"]), p["bn1"], 1), 0.0)
    h = jnp.maximum(_bn_eval(_ref_conv1d(h, p["c2w"], p["c2b"]), p["bn2"], 1), 0.0)
    h = jnp.maximum(_bn_eval(_ref_conv1d(h, p["c3w"], p["c3b"]), p["bn3"], 1), 0.0)
    h = jnp.max(h, axis=2)
    h = jnp.maximum(_bn_eval(_ref_linear(h, p["f1w"], p["f1b"]), p["bn4"], 1), 0.0)
    h = jnp.maximum(_bn_eval(_ref_linear(h, p["f2w"], p["f2b"]), p["bn5"], 1), 0.0)
    h = _ref_linear(h, p["f3w"], p["f3b"]) + jnp.eye(p["k"], dtype=h.dtype).reshape(-1)[None, :]
    return h.reshape(-1, p["k"], p["k"])


def _ref_forward(x, P):
    trans = _ref_stn(x, P["stn3"])
    xt = jnp.einsum("bkn,bkj->bnj", x, trans, precision="highest")
    h = jnp.transpose(xt, (0, 2, 1))
    h = jnp.maximum(_bn_eval(_ref_conv1d(h, P["ec1w"], P["ec1b"]), P["ebn1"], 1), 0.0)
    trans_feat = _ref_stn(h, P["fstn"])
    ht = jnp.einsum("bkn,bkj->bnj", h, trans_feat, precision="highest")
    h = jnp.transpose(ht, (0, 2, 1))
    h = jnp.maximum(_bn_eval(_ref_conv1d(h, P["ec2w"], P["ec2b"]), P["ebn2"], 1), 0.0)
    h = _bn_eval(_ref_conv1d(h, P["ec3w"], P["ec3b"]), P["ebn3"], 1)
    h = jnp.max(h, axis=2)
    h = jnp.maximum(_bn_eval(_ref_linear(h, P["cf1w"], P["cf1b"]), P["cbn1"], 1), 0.0)
    h = jnp.maximum(_bn_eval(_ref_linear(h, P["cf2w"], P["cf2b"]), P["cbn2"], 1), 0.0)
    logits = _ref_linear(h, P["cf3w"], P["cf3b"])
    return logits, trans_feat


# ----------------------------------------------------------------------------------------------
if __name__ == "__main__":
    key = jax.random.PRNGKey(0)
    kx, kp = jax.random.split(key)

    # Small demo: 2 clouds of 200 points with tn=128 -> exercises multi-tile max accumulation and
    # the ragged pad+mask path. Production-sized clouds (N=1024..4096) should use the tn=512 default.
    B, channel, N, n_class = 2, 3, 200, 40
    x = jax.random.normal(kx, (B, channel, N), dtype=jnp.float32)
    P = _init_model_params(kp, n_class=n_class, channel=channel)

    logits, trans_feat = pointnet_classifier_forward(x, P, tn=128)
    logits = jax.block_until_ready(logits)
    trans_feat = jax.block_until_ready(trans_feat)

    ref_logits, ref_tf = _ref_forward(x, P)
    assert logits.shape == (B, n_class) and trans_feat.shape == (B, 64, 64)
    err_l = float(jnp.max(jnp.abs(logits - ref_logits)))
    err_t = float(jnp.max(jnp.abs(trans_feat - ref_tf)))
    # Point kernels use bf16 MXU operands with f32 accumulation; compare against the f32
    # 'highest'-precision reference with a tolerance that covers the bf16 rounding of the chain.
    assert jnp.allclose(logits, ref_logits, atol=5e-2, rtol=5e-2), ("logits mismatch", err_l)
    assert jnp.allclose(trans_feat, ref_tf, atol=5e-2, rtol=5e-2), ("trans_feat mismatch", err_t)

    print("KERNEL_OK")
</pallas_src>

<mosaic_0001>
module attributes {stable_mosaic.version = 11 : i64} {
  func.func @_point_mlp_maxpool_kernel(%arg0: i32, %arg1: i32, %arg2: memref<1x3x128xbf16, #tpu.memory_space<vmem>>, %arg3: memref<64x3xbf16, #tpu.memory_space<vmem>>, %arg4: memref<64x1xf32, #tpu.memory_space<vmem>>, %arg5: memref<128x64xbf16, #tpu.memory_space<vmem>>, %arg6: memref<128x1xf32, #tpu.memory_space<vmem>>, %arg7: memref<1024x128xbf16, #tpu.memory_space<vmem>>, %arg8: memref<1024x1xf32, #tpu.memory_space<vmem>>, %arg9: memref<1x1024x1xf32, #tpu.memory_space<vmem>>) attributes {dimension_semantics = [#tpu.dimension_semantics<parallel>, #tpu.dimension_semantics<arbitrary>], iteration_bounds = array<i64: 2, 2>, scalar_prefetch = 0 : i64, scratch_operands = 0 : i64, tpu.core_type = #tpu.core_type<tc>, window_params = [{transform_indices = @transform_0, window_bounds = array<i64: 1, 3, 128>}, {pipeline_mode = #tpu.pipeline_mode<synchronous>, transform_indices = @transform_1, window_bounds = array<i64: 64, 3>}, {pipeline_mode = #tpu.pipeline_mode<synchronous>, transform_indices = @transform_2, window_bounds = array<i64: 64, 1>}, {pipeline_mode = #tpu.pipeline_mode<synchronous>, transform_indices = @transform_3, window_bounds = array<i64: 128, 64>}, {pipeline_mode = #tpu.pipeline_mode<synchronous>, transform_indices = @transform_4, window_bounds = array<i64: 128, 1>}, {pipeline_mode = #tpu.pipeline_mode<synchronous>, transform_indices = @transform_5, window_bounds = array<i64: 1024, 128>}, {pipeline_mode = #tpu.pipeline_mode<synchronous>, transform_indices = @transform_6, window_bounds = array<i64: 1024, 1>}, {transform_indices = @transform_7, window_bounds = array<i64: 1, 1024, 1>}]} {
    %c0 = arith.constant 0 : index
    %c0_0 = arith.constant 0 : index
    %c0_1 = arith.constant 0 : index
    %0 = vector.load %arg2[%c0, %c0_0, %c0_1] : memref<1x3x128xbf16, #tpu.memory_space<vmem>>, vector<1x3x128xbf16>
    %1 = vector.shape_cast %0 : vector<1x3x128xbf16> to vector<3x128xbf16>
    %c0_2 = arith.constant 0 : index
    %c0_3 = arith.constant 0 : index
    %2 = vector.load %arg3[%c0_2, %c0_3] : memref<64x3xbf16, #tpu.memory_space<vmem>>, vector<64x3xbf16>
    %cst = arith.constant dense<0.000000e+00> : vector<64x128xf32>
    %3 = tpu.matmul %2, %1, %cst {dimension_numbers = #tpu.dot_dimension_numbers<[1], [0], [0], [1], [0, 0, 1, 1], [], []>} : vector<64x3xbf16>, vector<3x128xbf16>, vector<64x128xf32> -> vector<64x128xf32>
    %c0_4 = arith.constant 0 : index
    %c0_5 = arith.constant 0 : index
    %4 = vector.load %arg4[%c0_4, %c0_5] : memref<64x1xf32, #tpu.memory_space<vmem>>, vector<64x1xf32>
    %5 = vector.broadcast %4 : vector<64x1xf32> to vector<64x128xf32>
    %6 = arith.addf %3, %5 : vector<64x128xf32>
    %cst_6 = arith.constant 0.000000e+00 : f32
    %7 = vector.broadcast %cst_6 : f32 to vector<64x128xf32>
    %8 = arith.maximumf %6, %7 : vector<64x128xf32>
    %c0_7 = arith.constant 0 : index
    %c0_8 = arith.constant 0 : index
    %9 = vector.load %arg5[%c0_7, %c0_8] : memref<128x64xbf16, #tpu.memory_space<vmem>>, vector<128x64xbf16>
    %10 = arith.truncf %8 : vector<64x128xf32> to vector<64x128xbf16>
    %cst_9 = arith.constant dense<0.000000e+00> : vector<128x128xf32>
    %11 = tpu.matmul %9, %10, %cst_9 {dimension_numbers = #tpu.dot_dimension_numbers<[1], [0], [0], [1], [0, 0, 1, 1], [], []>} : vector<128x64xbf16>, vector<64x128xbf16>, vector<128x128xf32> -> vector<128x128xf32>
    %c0_10 = arith.constant 0 : index
    %c0_11 = arith.constant 0 : index
    %12 = vector.load %arg6[%c0_10, %c0_11] : memref<128x1xf32, #tpu.memory_space<vmem>>, vector<128x1xf32>
    %13 = vector.broadcast %12 : vector<128x1xf32> to vector<128x128xf32>
    %14 = arith.addf %11, %13 : vector<128x128xf32>
    %cst_12 = arith.constant 0.000000e+00 : f32
    %15 = vector.broadcast %cst_12 : f32 to vector<128x128xf32>
    %16 = arith.maximumf %14, %15 : vector<128x128xf32>
    %c0_13 = arith.constant 0 : index
    %c0_14 = arith.constant 0 : index
    %17 = vector.load %arg7[%c0_13, %c0_14] : memref<1024x128xbf16, #tpu.memory_space<vmem>>, vector<1024x128xbf16>
    %18 = arith.truncf %16 : vector<128x128xf32> to vector<128x128xbf16>
    %cst_15 = arith.constant dense<0.000000e+00> : vector<1024x128xf32>
    %19 = tpu.matmul %17, %18, %cst_15 {dimension_numbers = #tpu.dot_dimension_numbers<[1], [0], [0], [1], [0, 0, 1, 1], [], []>} : vector<1024x128xbf16>, vector<128x128xbf16>, vector<1024x128xf32> -> vector<1024x128xf32>
    %c0_16 = arith.constant 0 : index
    %c0_17 = arith.constant 0 : index
    %20 = vector.load %arg8[%c0_16, %c0_17] : memref<1024x1xf32, #tpu.memory_space<vmem>>, vector<1024x1xf32>
    %21 = vector.broadcast %20 : vector<1024x1xf32> to vector<1024x128xf32>
    %22 = arith.addf %19, %21 : vector<1024x128xf32>
    %cst_18 = arith.constant 0.000000e+00 : f32
    %23 = vector.broadcast %cst_18 : f32 to vector<1024x128xf32>
    %24 = arith.maximumf %22, %23 : vector<1024x128xf32>
    %25 = tpu.iota {dimensions = array<i32: 1>} : vector<1024x128xi32>
    %c128_i32 = arith.constant 128 : i32
    %26 = arith.muli %arg1, %c128_i32 : i32
    %c200_i32 = arith.constant 200 : i32
    %27 = arith.subi %c200_i32, %26 : i32
    %28 = vector.broadcast %27 : i32 to vector<1024x128xi32>
    %29 = arith.cmpi slt, %25, %28 : vector<1024x128xi32>
    %cst_19 = arith.constant 0xFF800000 : f32
    %30 = vector.broadcast %cst_19 : f32 to vector<1024x128xf32>
    %31 = arith.select %29, %24, %30 : vector<1024x128xi1>, vector<1024x128xf32>
    %cst_20 = arith.constant dense<0xFF800000> : vector<1024xf32>
    %32 = vector.multi_reduction <maximumf>, %31, %cst_20 [1] : vector<1024x128xf32> to vector<1024xf32>
    %33 = vector.shape_cast %32 : vector<1024xf32> to vector<1024x1xf32>
    %c0_i32 = arith.constant 0 : i32
    %34 = arith.cmpi eq, %arg1, %c0_i32 : i32
    %cst_21 = arith.constant 0xFF800000 : f32
    %35 = vector.broadcast %cst_21 : f32 to vector<1024x1xf32>
    %c0_22 = arith.constant 0 : index
    %c0_23 = arith.constant 0 : index
    %c0_24 = arith.constant 0 : index
    %36 = vector.load %arg9[%c0_22, %c0_23, %c0_24] : memref<1x1024x1xf32, #tpu.memory_space<vmem>>, vector<1x1024x1xf32>
    %37 = vector.shape_cast %36 : vector<1x1024x1xf32> to vector<1024x1xf32>
    %38 = arith.select %34, %35, %37 : vector<1024x1xf32>
    %39 = arith.maximumf %38, %33 : vector<1024x1xf32>
    %c0_25 = arith.constant 0 : index
    %c0_26 = arith.constant 0 : index
    %c0_27 = arith.constant 0 : index
    %40 = vector.load %arg9[%c0_25, %c0_26, %c0_27] : memref<1x1024x1xf32, #tpu.memory_space<vmem>>, vector<1x1024x1xf32>
    %41 = vector.shape_cast %40 : vector<1x1024x1xf32> to vector<1024x1xf32>
    %42 = vector.shape_cast %39 : vector<1024x1xf32> to vector<1x1024x1xf32>
    tpu.vector_store %arg9[%c0_25, %c0_26, %c0_27], %42 {strides = array<i32>} : memref<1x1024x1xf32, #tpu.memory_space<vmem>>, vector<1x1024x1xf32>,
    return
  }
  func.func @transform_0(%arg0: i32, %arg1: i32) -> (i32, i32, i32) {
    %c0_i32 = arith.constant 0 : i32
    %c0_i32_0 = arith.constant 0 : i32
    return %arg0, %c0_i32, %arg1 : i32, i32, i32
  }
  func.func @transform_1(%arg0: i32, %arg1: i32) -> (i32, i32) {
    %c0_i32 = arith.constant 0 : i32
    %c0_i32_0 = arith.constant 0 : i32
    %c0_i32_1 = arith.constant 0 : i32
    return %c0_i32, %c0_i32_0 : i32, i32
  }
  func.func @transform_2(%arg0: i32, %arg1: i32) -> (i32, i32) {
    %c0_i32 = arith.constant 0 : i32
    %c0_i32_0 = arith.constant 0 : i32
    %c0_i32_1 = arith.constant 0 : i32
    return %c0_i32, %c0_i32_0 : i32, i32
  }
  func.func @transform_3(%arg0: i32, %arg1: i32) -> (i32, i32) {
    %c0_i32 = arith.constant 0 : i32
    %c0_i32_0 = arith.constant 0 : i32
    %c0_i32_1 = arith.constant 0 : i32
    return %c0_i32, %c0_i32_0 : i32, i32
  }
  func.func @transform_4(%arg0: i32, %arg1: i32) -> (i32, i32) {
    %c0_i32 = arith.constant 0 : i32
    %c0_i32_0 = arith.constant 0 : i32
    %c0_i32_1 = arith.constant 0 : i32
    return %c0_i32, %c0_i32_0 : i32, i32
  }
  func.func @transform_5(%arg0: i32, %arg1: i32) -> (i32, i32) {
    %c0_i32 = arith.constant 0 : i32
    %c0_i32_0 = arith.constant 0 : i32
    %c0_i32_1 = arith.constant 0 : i32
    return %c0_i32, %c0_i32_0 : i32, i32
  }
  func.func @transform_6(%arg0: i32, %arg1: i32) -> (i32, i32) {
    %c0_i32 = arith.constant 0 : i32
    %c0_i32_0 = arith.constant 0 : i32
    %c0_i32_1 = arith.constant 0 : i32
    return %c0_i32, %c0_i32_0 : i32, i32
  }
  func.func @transform_7(%arg0: i32, %arg1: i32) -> (i32, i32, i32) {
    %c0_i32 = arith.constant 0 : i32
    %c0_i32_0 = arith.constant 0 : i32
    %c0_i32_1 = arith.constant 0 : i32
    return %arg0, %c0_i32, %c0_i32_0 : i32, i32, i32
  }
}

</mosaic_0001>

<llo_original>
// kernel: tpu_custom_call.1
$region0: #{tpu_custom_call.1}
  #allocation0 [shape = 'u32[]', space=smem, size = 0x4, offset = 0x4, fixed_abs, tag = 'smem constant byte address 0x4 - core index']
  #allocation1 [shape = 'u32[144,128]{1,0:T(1,128)}', space=vmem, size = 0x12000, scoped, tag = 'internal scratch']
  %s0 = inlined_call_operand.vmem [shape: bf16[2,3,256], index: 0, kind: input, shape index: {}]
  %s1 = inlined_call_operand.vmem [shape: bf16[64,3], index: 1, kind: input, shape index: {}]
  %s2 = inlined_call_operand.vmem [shape: f32[64,1], index: 2, kind: input, shape index: {}]
  %s3 = inlined_call_operand.vmem [shape: bf16[128,64], index: 3, kind: input, shape index: {}]
  %s4 = inlined_call_operand.vmem [shape: f32[128,1], index: 4, kind: input, shape index: {}]
  %s5 = inlined_call_operand.vmem [shape: bf16[1024,128], index: 5, kind: input, shape index: {}]
  %s6 = inlined_call_operand.vmem [shape: f32[1024,1], index: 6, kind: input, shape index: {}]
  %s7 = inlined_call_operand.vmem [shape: f32[2,1024,1], index: 7, kind: output, shape index: {}]
  %s8 = sld [smem:[#allocation0]]
  $region61: #{tpu_custom_call.1} parent=0
    _
  %s10 = ssub.s32 1, %s8
  %s11 = scalar_select 0, %s10, %s8
  loop: start=0, step=1, limit=6
  $region2: #{tpu_custom_call.1} parent=0 // loop_pre_header
    _
  $region3: #{tpu_custom_call.1} parent=0 // loop_header
    %s13 = sphi 0, %s17
    %p14 = scmp.ge.s32.totalorder %s13, 6
    %s20 = sphi 0, %s32
    %s21 = sphi 0, %s28
    %s22 = sphi 0, %s20
    %s23 = sphi 0, %s21
    %s24 = sphi 0, %s22
    %s25 = sphi 0, %s23
    %s37 = sphi 0, %s39
    %s40 = sphi 0, %s37
    %s41 = sphi 0, %s40
    %s57 = sphi 0, %s41
    %s61 = sphi 0, %s61
    %s63 = sphi 0, %s61
    %s64 = sphi 0, %s63
    %s78 = sphi 0, %s64
    %s82 = sphi 0, %s82
    %s84 = sphi 0, %s82
    %s85 = sphi 0, %s84
    %s99 = sphi 0, %s85
    %s103 = sphi 0, %s103
    %s105 = sphi 0, %s103
    %s106 = sphi 0, %s105
    %s120 = sphi 0, %s106
    %s124 = sphi 0, %s124
    %s126 = sphi 0, %s124
    %s127 = sphi 0, %s126
    %s141 = sphi 0, %s127
    %s145 = sphi 0, %s145
    %s147 = sphi 0, %s145
    %s148 = sphi 0, %s147
    %s162 = sphi 0, %s148
    %s166 = sphi 0, %s166
    %s168 = sphi 0, %s166
    %s169 = sphi 0, %s168
    %s183 = sphi 0, %s169
    %s189 = sphi 0, %s191
    %s192 = sphi 0, %s189
    %s193 = sphi 0, %s192
    %s209 = sphi 0, %s193
  $region4: #{tpu_custom_call.1} parent=0 // loop_header_branch
    %16 = sbr.rel (%p14) target = $region8
  $region5: #{tpu_custom_call.1} parent=0 // loop_body
    %s18 = ssub.s32 %s13, 1
    %s19 = ssub.s32 %s13, 2
    %s26 = sadd.s32 1, %s21
    %p27 = scmp.ge.s32.totalorder %s26, 2
    %s28 = scalar_select %p27, 0, %s26
    %s29 = sadd.s32 1, %s20
    %s30 = scalar_select %p27, %s29, %s20
    %p31 = scmp.ge.s32.totalorder %s30, 2
    %s32 = scalar_select %p31, 0, %s30
    %s33 = ssub.s32 %s20, %s32
    %s34 = ssub.s32 %s21, %s28
    %s35 = sor.u32 %s33, %s34
    %p36 = scmp.eq.s32.totalorder %s35, 0
    %s38 = sadd.s32 %s37, 1
    %s39 = scalar_select %p36, %s37, %s38
    %p42 = pneg %p36
    %p43 = scmp.eq.s32.totalorder %s13, 3
    %p44 = por %p42, %p43
    %p45 = scmp.ne.s32.totalorder %s37, %s40
    %p46 = scmp.eq.s32.totalorder %s13, 0
    %p47 = por %p45, %p46
    %p48 = scmp.ne.s32.totalorder %s37, %s40
    %p49 = scmp.eq.s32.totalorder %s18, 3
    %p50 = por %p48, %p49
    %p51 = scmp.ne.s32.totalorder %s40, %s41
    %p52 = scmp.eq.s32.totalorder %s18, 0
    %p53 = por %p51, %p52
    %p54 = scmp.ne.s32.totalorder %s40, %s41
    %p55 = scmp.eq.s32.totalorder %s19, 3
    %p56 = por %p54, %p55
    %p58 = scmp.ne.s32.totalorder %s41, %s57
    %p59 = scmp.eq.s32.totalorder %s19, 0
    %p60 = por %p58, %p59
    %s62 = sadd.s32 %s61, 1
    %p65 = scmp.eq.s32.totalorder %s13, 3
    %p66 = scmp.ne.s32.totalorder %s61, %s63
    %p67 = scmp.eq.s32.totalorder %s13, 0
    %p68 = por %p66, %p67
    %p69 = scmp.ne.s32.totalorder %s61, %s63
    %p70 = scmp.eq.s32.totalorder %s18, 3
    %p71 = por %p69, %p70
    %p72 = scmp.ne.s32.totalorder %s63, %s64
    %p73 = scmp.eq.s32.totalorder %s18, 0
    %p74 = por %p72, %p73
    %p75 = scmp.ne.s32.totalorder %s63, %s64
    %p76 = scmp.eq.s32.totalorder %s19, 3
    %p77 = por %p75, %p76
    %p79 = scmp.ne.s32.totalorder %s64, %s78
    %p80 = scmp.eq.s32.totalorder %s19, 0
    %p81 = por %p79, %p80
    %s83 = sadd.s32 %s82, 1
    %p86 = scmp.eq.s32.totalorder %s13, 3
    %p87 = scmp.ne.s32.totalorder %s82, %s84
    %p88 = scmp.eq.s32.totalorder %s13, 0
    %p89 = por %p87, %p88
    %p90 = scmp.ne.s32.totalorder %s82, %s84
    %p91 = scmp.eq.s32.totalorder %s18, 3
    %p92 = por %p90, %p91
    %p93 = scmp.ne.s32.totalorder %s84, %s85
    %p94 = scmp.eq.s32.totalorder %s18, 0
    %p95 = por %p93, %p94
    %p96 = scmp.ne.s32.totalorder %s84, %s85
    %p97 = scmp.eq.s32.totalorder %s19, 3
    %p98 = por %p96, %p97
    %p100 = scmp.ne.s32.totalorder %s85, %s99
    %p101 = scmp.eq.s32.totalorder %s19, 0
    %p102 = por %p100, %p101
    %s104 = sadd.s32 %s103, 1
    %p107 = scmp.eq.s32.totalorder %s13, 3
    %p108 = scmp.ne.s32.totalorder %s103, %s105
    %p109 = scmp.eq.s32.totalorder %s13, 0
    %p110 = por %p108, %p109
    %p111 = scmp.ne.s32.totalorder %s103, %s105
    %p112 = scmp.eq.s32.totalorder %s18, 3
    %p113 = por %p111, %p112
    %p114 = scmp.ne.s32.totalorder %s105, %s106
    %p115 = scmp.eq.s32.totalorder %s18, 0
    %p116 = por %p114, %p115
    %p117 = scmp.ne.s32.totalorder %s105, %s106
    %p118 = scmp.eq.s32.totalorder %s19, 3
    %p119 = por %p117, %p118
    %p121 = scmp.ne.s32.totalorder %s106, %s120
    %p122 = scmp.eq.s32.totalorder %s19, 0
    %p123 = por %p121, %p122
    %s125 = sadd.s32 %s124, 1
    %p128 = scmp.eq.s32.totalorder %s13, 3
    %p129 = scmp.ne.s32.totalorder %s124, %s126
    %p130 = scmp.eq.s32.totalorder %s13, 0
    %p131 = por %p129, %p130
    %p132 = scmp.ne.s32.totalorder %s124, %s126
    %p133 = scmp.eq.s32.totalorder %s18, 3
    %p134 = por %p132, %p133
    %p135 = scmp.ne.s32.totalorder %s126, %s127
    %p136 = scmp.eq.s32.totalorder %s18, 0
    %p137 = por %p135, %p136
    %p138 = scmp.ne.s32.totalorder %s126, %s127
    %p139 = scmp.eq.s32.totalorder %s19, 3
    %p140 = por %p138, %p139
    %p142 = scmp.ne.s32.totalorder %s127, %s141
    %p143 = scmp.eq.s32.totalorder %s19, 0
    %p144 = por %p142, %p143
    %s146 = sadd.s32 %s145, 1
    %p149 = scmp.eq.s32.totalorder %s13, 3
    %p150 = scmp.ne.s32.totalorder %s145, %s147
    %p151 = scmp.eq.s32.totalorder %s13, 0
    %p152 = por %p150, %p151
    %p153 = scmp.ne.s32.totalorder %s145, %s147
    %p154 = scmp.eq.s32.totalorder %s18, 3
    %p155 = por %p153, %p154
    %p156 = scmp.ne.s32.totalorder %s147, %s148
    %p157 = scmp.eq.s32.totalorder %s18, 0
    %p158 = por %p156, %p157
    %p159 = scmp.ne.s32.totalorder %s147, %s148
    %p160 = scmp.eq.s32.totalorder %s19, 3
    %p161 = por %p159, %p160
    %p163 = scmp.ne.s32.totalorder %s148, %s162
    %p164 = scmp.eq.s32.totalorder %s19, 0
    %p165 = por %p163, %p164
    %s167 = sadd.s32 %s166, 1
    %p170 = scmp.eq.s32.totalorder %s13, 3
    %p171 = scmp.ne.s32.totalorder %s166, %s168
    %p172 = scmp.eq.s32.totalorder %s13, 0
    %p173 = por %p171, %p172
    %p174 = scmp.ne.s32.totalorder %s166, %s168
    %p175 = scmp.eq.s32.totalorder %s18, 3
    %p176 = por %p174, %p175
    %p177 = scmp.ne.s32.totalorder %s168, %s169
    %p178 = scmp.eq.s32.totalorder %s18, 0
    %p179 = por %p177, %p178
    %p180 = scmp.ne.s32.totalorder %s168, %s169
    %p181 = scmp.eq.s32.totalorder %s19, 3
    %p182 = por %p180, %p181
    %p184 = scmp.ne.s32.totalorder %s169, %s183
    %p185 = scmp.eq.s32.totalorder %s19, 0
    %p186 = por %p184, %p185
    %s187 = ssub.s32 %s20, %s32
    %p188 = scmp.eq.s32.totalorder %s187, 0
    %s190 = sadd.s32 %s189, 1
    %s191 = scalar_select %p188, %s189, %s190
    %p194 = pneg %p188
    %p195 = scmp.eq.s32.totalorder %s13, 3
    %p196 = por %p194, %p195
    %p197 = scmp.ne.s32.totalorder %s189, %s192
    %p198 = scmp.eq.s32.totalorder %s13, 0
    %p199 = por %p197, %p198
    %p200 = scmp.ne.s32.totalorder %s189, %s192
    %p201 = scmp.eq.s32.totalorder %s18, 3
    %p202 = por %p200, %p201
    %p203 = scmp.ne.s32.totalorder %s192, %s193
    %p204 = scmp.eq.s32.totalorder %s18, 0
    %p205 = por %p203, %p204
    %p206 = scmp.ne.s32.totalorder %s192, %s193
    %p207 = scmp.eq.s32.totalorder %s19, 3
    %p208 = por %p206, %p207
    %p210 = scmp.ne.s32.totalorder %s193, %s209
    %p211 = scmp.eq.s32.totalorder %s19, 0
    %p212 = por %p210, %p211
    %p213 = scmp.le.s32.totalorder 1, %s13
    %p214 = scmp.lt.s32.totalorder %s13, 5
    %p215 = pnand %p213, %p214
    %p216 = pneg %p215
    // Predicated region
    $region9: #{tpu_custom_call.1} parent=5 // pred_check
      _
    $region10: #{tpu_custom_call.1} parent=5 // pred_check_branch
      %218 = sbr.rel (%p215) target = $region12
    $region11: #{tpu_custom_call.1} parent=5 // pred_region
      %s219 = ssub.s32 %s13, 1
      // Predicated region
      $region13: #{tpu_custom_call.1} parent=11 // pred_check
        %p220 = pneg %p74
      $region14: #{tpu_custom_call.1} parent=11 // pred_check_branch
        %222 = sbr.rel (%p220) target = $region16
      $region15: #{tpu_custom_call.1} parent=11 // pred_region
        _
      $region16: #{tpu_custom_call.1} parent=11 // pred_fallthru
        _
      // Predicated region
      $region17: #{tpu_custom_call.1} parent=11 // pred_check
        %p223 = pneg %p95
      $region18: #{tpu_custom_call.1} parent=11 // pred_check_branch
        %225 = sbr.rel (%p223) target = $region20
      $region19: #{tpu_custom_call.1} parent=11 // pred_region
        _
      $region20: #{tpu_custom_call.1} parent=11 // pred_fallthru
        _
      // Predicated region
      $region21: #{tpu_custom_call.1} parent=11 // pred_check
        %p226 = pneg %p116
      $region22: #{tpu_custom_call.1} parent=11 // pred_check_branch
        %228 = sbr.rel (%p226) target = $region24
      $region23: #{tpu_custom_call.1} parent=11 // pred_region
        _
      $region24: #{tpu_custom_call.1} parent=11 // pred_fallthru
        _
      // Predicated region
      $region25: #{tpu_custom_call.1} parent=11 // pred_check
        %p229 = pneg %p137
      $region26: #{tpu_custom_call.1} parent=11 // pred_check_branch
        %231 = sbr.rel (%p229) target = $region28
      $region27: #{tpu_custom_call.1} parent=11 // pred_region
        _
      $region28: #{tpu_custom_call.1} parent=11 // pred_fallthru
        _
      // Predicated region
      $region29: #{tpu_custom_call.1} parent=11 // pred_check
        %p232 = pneg %p158
      $region30: #{tpu_custom_call.1} parent=11 // pred_check_branch
        %234 = sbr.rel (%p232) target = $region32
      $region31: #{tpu_custom_call.1} parent=11 // pred_region
        _
      $region32: #{tpu_custom_call.1} parent=11 // pred_fallthru
        _
      // Predicated region
      $region33: #{tpu_custom_call.1} parent=11 // pred_check
        %p235 = pneg %p179
      $region34: #{tpu_custom_call.1} parent=11 // pred_check_branch
        %237 = sbr.rel (%p235) target = $region36
      $region35: #{tpu_custom_call.1} parent=11 // pred_region
        _
      $region36: #{tpu_custom_call.1} parent=11 // pred_fallthru
        _
    $region12: #{tpu_custom_call.1} parent=5 // pred_fallthru
      _
    %p238 = scmp.lt.s32.totalorder %s13, 4
    // Predicated region
    $region37: #{tpu_custom_call.1} parent=5 // pred_check
      %p239 = pneg %p238
    $region38: #{tpu_custom_call.1} parent=5 // pred_check_branch
      %241 = sbr.rel (%p239) target = $region40
    $region39: #{tpu_custom_call.1} parent=5 // pred_region
      // Predicated region
      $region41: #{tpu_custom_call.1} parent=39 // pred_check
        %p242 = pneg %p47
      $region42: #{tpu_custom_call.1} parent=39 // pred_check_branch
        %244 = sbr.rel (%p242) target = $region44
      $region43: #{tpu_custom_call.1} parent=39 // pred_region
        %p245 = scmp.lt.s32.totalorder %s20, 1
        %s246 = scalar_select %p245, %s20, 1
        %p247 = scmp.lt.s32.totalorder %s21, 1
        %s248 = scalar_select %p247, %s21, 1
        %s249 = smul.addr %s246, 2
        %s250 = sadd.s32 %s248, %s249
        %s251 = smul.addr %s250, 2
        %s252 = scalar_lea.vmem %s0, %s251
      $region44: #{tpu_custom_call.1} parent=39 // pred_fallthru
        _
    $region40: #{tpu_custom_call.1} parent=5 // pred_fallthru
      _
    %p253 = scmp.le.s32.totalorder 1, %s13
    %p254 = scmp.lt.s32.totalorder %s13, 5
    %p255 = pnand %p253, %p254
    %p256 = pneg %p255
    // Predicated region
    $region45: #{tpu_custom_call.1} parent=5 // pred_check
      _
    $region46: #{tpu_custom_call.1} parent=5 // pred_check_branch
      %258 = sbr.rel (%p255) target = $region48
    $region47: #{tpu_custom_call.1} parent=5 // pred_region
      %s259 = ssub.s32 %s13, 1
      %p260 = scmp.lt.s32.totalorder %s22, 1
      %s261 = scalar_select %p260, %s22, 1
      %p262 = scmp.lt.s32.totalorder %s23, 1
      %s263 = scalar_select %p262, %s23, 1
      %s264 = smul.addr %s261, 2
      %s265 = sadd.s32 %s263, %s264
      %s266 = smul.addr %s265, 2
      %s267 = scalar_lea.vmem %s0, %s266
      %p268 = pneg %p53
      %p269 = pneg %p50
      %p270 = pneg %p74
      %p271 = pneg %p71
      %p272 = pneg %p95
      %p273 = pneg %p92
      %p274 = pneg %p116
      %p275 = pneg %p113
      %p276 = pneg %p137
      %p277 = pneg %p134
      %p278 = pneg %p158
      %p279 = pneg %p155
      %p280 = pneg %p179
      %p281 = pneg %p176
      %p282 = pneg %p205
      %p283 = pneg %p202
      %p284 = scmp.lt.s32.totalorder %s22, 1
      %s285 = scalar_select %p284, %s22, 1
      %s286 = smul.addr %s285, 128
      %s287 = smul.addr %s286, 8
      %s288 = scalar_lea.vmem %s7, %s287
      %p289 = scmp.lt.s32.totalorder %s22, 1
      %s290 = scalar_select %p289, %s22, 1
      %p291 = scmp.lt.s32.totalorder %s23, 1
      %s292 = scalar_select %p291, %s23, 1
      %s293 = smul.addr %s290, 2
      %s294 = sadd.s32 %s292, %s293
      %s295 = smul.addr %s294, 2
      %s296 = scalar_lea.vmem %s0, %s295
      %p297 = scmp.lt.s32.totalorder %s22, 1
      %s298 = scalar_select %p297, %s22, 1
      %s299 = smul.addr %s298, 128
      %s300 = smul.addr %s299, 8
      %s301 = scalar_lea.vmem %s7, %s300
      %v303 = vld [vmem:[%s296] sm:$0x3]
      %v304 = vld [vmem:[%s1] sm:$0xf]
      %v305 = vld [vmem:[%s1 + $0x4] sm:$0xf]
      %v306 = vld [vmem:[%s1 + $0x8] sm:$0xf]
      %v307 = vld [vmem:[%s1 + $0xc] sm:$0xf]
      %v308 = vld [vmem:[%s1 + $0x10] sm:$0xf]
      %v309 = vld [vmem:[%s1 + $0x14] sm:$0xf]
      %v310 = vld [vmem:[%s1 + $0x18] sm:$0xf]
      %v311 = vld [vmem:[%s1 + $0x1c] sm:$0xf]
      %v312 = vld [vmem:[%s2] sm:$0xff]
      %v313 = vld [vmem:[%s2 + $0x8] sm:$0xff]
      %v314 = vld [vmem:[%s2 + $0x10] sm:$0xff]
      %v315 = vld [vmem:[%s2 + $0x18] sm:$0xff]
      %v316 = vld [vmem:[%s2 + $0x20] sm:$0xff]
      %v317 = vld [vmem:[%s2 + $0x28] sm:$0xff]
      %v318 = vld [vmem:[%s2 + $0x30] sm:$0xff]
      %v319 = vld [vmem:[%s2 + $0x38] sm:$0xff]
      %321 = vset.pattern.permute.xlu0 0
      %322 = vperm.xlu0 %321, %v312
      %v323 = vpop.permute.xlu0 %322
      %326 = vset.pattern.permute.xlu0 0
      %327 = vperm.xlu0 %326, %v313
      %v328 = vpop.permute.xlu0 %327
      %331 = vset.pattern.permute.xlu0 0
      %332 = vperm.xlu0 %331, %v314
      %v333 = vpop.permute.xlu0 %332
      %336 = vset.pattern.permute.xlu0 0
      %337 = vperm.xlu0 %336, %v315
      %v338 = vpop.permute.xlu0 %337
      %341 = vset.pattern.permute.xlu0 0
      %342 = vperm.xlu0 %341, %v316
      %v343 = vpop.permute.xlu0 %342
      %346 = vset.pattern.permute.xlu0 0
      %347 = vperm.xlu0 %346, %v317
      %v348 = vpop.permute.xlu0 %347
      %351 = vset.pattern.permute.xlu0 0
      %352 = vperm.xlu0 %351, %v318
      %v353 = vpop.permute.xlu0 %352
      %356 = vset.pattern.permute.xlu0 0
      %357 = vperm.xlu0 %356, %v319
      %v358 = vpop.permute.xlu0 %357
      %v368 = vunpack.c.l.b16 %v304
      %v369 = vunpack.c.l.b16 %v305
      %v370 = vunpack.c.l.b16 %v306
      %v371 = vunpack.c.l.b16 %v307
      %v372 = vunpack.c.l.b16 %v308
      %v373 = vunpack.c.l.b16 %v309
      %v374 = vunpack.c.l.b16 %v310
      %v375 = vunpack.c.l.b16 %v311
      %v376 = vpack.c.b16 %v369, %v368
      %v377 = vpack.c.b16 %v371, %v370
      %v378 = vpack.c.b16 %v373, %v372
      %v379 = vpack.c.b16 %v375, %v374
      %vm380 = vcmask 23552
      %v382 = vsel %vm380, %v376, 0
      %v385 = vsel %vm380, %v377, 0
      %v388 = vsel %vm380, %v378, 0
      %v391 = vsel %vm380, %v379, 0
      %vm393 = vcmask 1040384
      %vm394 = vcmask 1041408
      %v395 = vsel %vm393, 4294967295, 65535
      %v396 = vsel %vm394, %v395, 0
      %v398 = vand.u32 %v303, %v396
      %400 = vmatprep.subr.bf16.mxu0 0
      %401 = vmatpush1.bf16.msra.mxu0 0
      %402 = vmatprep.subr.bf16.mxu0 0
      %403 = vmatpush1.bf16.msra.mxu0 0
      %404 = vmatprep.subr.bf16.mxu0 0
      %405 = vmatpush1.bf16.msra.mxu0 0
      %406 = vmatprep.subr.bf16.mxu0 0
      %407 = vmatpush1.bf16.msra.mxu0 0
      %408 = vmatprep.subr.bf16.mxu0 0
      %409 = vmatpush1.bf16.msra.mxu0 0
      %410 = vmatprep.subr.bf16.mxu0 0
      %411 = vmatpush1.bf16.msra.mxu0 0
      %412 = vmatprep.subr.bf16.mxu0 0
      %413 = vmatpush1.bf16.msra.mxu0 0
      %414 = vmatprep.subr.bf16.mxu0 0
      %415 = vmatpush1.bf16.msra.mxu0 %v398
      %416 = vmatprep.subr.bf16.mxu0 0
      %417 = vmatpush2.bf16.msra.mxu0 0
      %418 = vmatprep.subr.bf16.mxu0 0
      %419 = vmatpush2.bf16.msra.mxu0 0
      %420 = vmatprep.subr.bf16.mxu0 0
      %421 = vmatpush2.bf16.msra.mxu0 0
      %422 = vmatprep.subr.bf16.mxu0 0
      %423 = vmatpush2.bf16.msra.mxu0 0
      %424 = vmatprep.subr.bf16.mxu0 0
      %425 = vmatpush2.bf16.msra.mxu0 0
      %426 = vmatprep.subr.bf16.mxu0 0
      %427 = vmatpush2.bf16.msra.mxu0 0
      %428 = vmatprep.subr.bf16.mxu0 0
      %429 = vmatpush2.bf16.msra.mxu0 0
      %430 = vmatprep.subr.bf16.mxu0 0
      %431 = vmatpush2.bf16.msra.mxu0 0
      %432 = vmatprep.mubr.bf16.mxu0 0
      %433 = vmatmul.mubr.bf16.gmra.mxu0 %v382
      %v434 = vpop.f32.mrf.mxu0
      %v435 = vadd.f32 %v323, %v434
      %v436 = vpop.f32.mrf.mxu0
      %v437 = vpop.f32.mrf.mxu0
      %v438 = vadd.f32 %v328, %v437
      %v439 = vpop.f32.mrf.mxu0
      %440 = vmatprep.mubr.bf16.mxu0 0
      %441 = vmatmul.mubr.bf16.gmra.mxu0 %v385
      %v442 = vpop.f32.mrf.mxu0
      %v443 = vadd.f32 %v333, %v442
      %v444 = vpop.f32.mrf.mxu0
      %v445 = vpop.f32.mrf.mxu0
      %v446 = vadd.f32 %v338, %v445
      %v447 = vpop.f32.mrf.mxu0
      %448 = vmatprep.mubr.bf16.mxu0 0
      %449 = vmatmul.mubr.bf16.gmra.mxu0 %v388
      %v450 = vpop.f32.mrf.mxu0
      %v451 = vadd.f32 %v343, %v450
      %v452 = vpop.f32.mrf.mxu0
      %v453 = vpop.f32.mrf.mxu0
      %v454 = vadd.f32 %v348, %v453
      %v455 = vpop.f32.mrf.mxu0
      %456 = vmatprep.mubr.bf16.mxu0 0
      %457 = vmatmul.mubr.bf16.gmra.mxu0 %v391
      %v458 = vpop.f32.mrf.mxu0
      %v459 = vadd.f32 %v353, %v458
      %v460 = vpop.f32.mrf.mxu0
      %v461 = vpop.f32.mrf.mxu0
      %v462 = vadd.f32 %v358, %v461
      %v463 = vpop.f32.mrf.mxu0
      %464 = vdwg.mxu0
      %v465 = vmax.f32 %v435, 0.0
      %v466 = vmax.f32 %v438, 0.0
      %v467 = vmax.f32 %v443, 0.0
      %v468 = vmax.f32 %v446, 0.0
      %v469 = vmax.f32 %v451, 0.0
      %v470 = vmax.f32 %v454, 0.0
      %v471 = vmax.f32 %v459, 0.0
      %v472 = vmax.f32 %v462, 0.0
      %v473 = vld [vmem:[%s3] sm:$0xf]
      %v474 = vld [vmem:[%s3 + $0x4] sm:$0xf]
      %v475 = vld [vmem:[%s3 + $0x8] sm:$0xf]
      %v476 = vld [vmem:[%s3 + $0xc] sm:$0xf]
      %v477 = vld [vmem:[%s3 + $0x10] sm:$0xf]
      %v478 = vld [vmem:[%s3 + $0x14] sm:$0xf]
      %v479 = vld [vmem:[%s3 + $0x18] sm:$0xf]
      %v480 = vld [vmem:[%s3 + $0x1c] sm:$0xf]
      %v481 = vld [vmem:[%s3 + $0x20] sm:$0xf]
      %v482 = vld [vmem:[%s3 + $0x24] sm:$0xf]
      %v483 = vld [vmem:[%s3 + $0x28] sm:$0xf]
      %v484 = vld [vmem:[%s3 + $0x2c] sm:$0xf]
      %v485 = vld [vmem:[%s3 + $0x30] sm:$0xf]
      %v486 = vld [vmem:[%s3 + $0x34] sm:$0xf]
      %v487 = vld [vmem:[%s3 + $0x38] sm:$0xf]
      %v488 = vld [vmem:[%s3 + $0x3c] sm:$0xf]
      %v489 = vpack.c.bf16 %v466, %v465
      %v490 = vpack.c.bf16 %v468, %v467
      %v491 = vpack.c.bf16 %v470, %v469
      %v492 = vpack.c.bf16 %v472, %v471
      %v493 = vld [vmem:[%s4] sm:$0xff]
      %v494 = vld [vmem:[%s4 + $0x8] sm:$0xff]
      %v495 = vld [vmem:[%s4 + $0x10] sm:$0xff]
      %v496 = vld [vmem:[%s4 + $0x18] sm:$0xff]
      %v497 = vld [vmem:[%s4 + $0x20] sm:$0xff]
      %v498 = vld [vmem:[%s4 + $0x28] sm:$0xff]
      %v499 = vld [vmem:[%s4 + $0x30] sm:$0xff]
      %v500 = vld [vmem:[%s4 + $0x38] sm:$0xff]
      %v501 = vld [vmem:[%s4 + $0x40] sm:$0xff]
      %v502 = vld [vmem:[%s4 + $0x48] sm:$0xff]
      %v503 = vld [vmem:[%s4 + $0x50] sm:$0xff]
      %v504 = vld [vmem:[%s4 + $0x58] sm:$0xff]
      %v505 = vld [vmem:[%s4 + $0x60] sm:$0xff]
      %v506 = vld [vmem:[%s4 + $0x68] sm:$0xff]
      %v507 = vld [vmem:[%s4 + $0x70] sm:$0xff]
      %v508 = vld [vmem:[%s4 + $0x78] sm:$0xff]
      %510 = vset.pattern.permute.xlu0 0
      %511 = vperm.xlu0 %510, %v493
      %v512 = vpop.permute.xlu0 %511
      %515 = vset.pattern.permute.xlu0 0
      %516 = vperm.xlu0 %515, %v494
      %v517 = vpop.permute.xlu0 %516
      %520 = vset.pattern.permute.xlu0 0
      %521 = vperm.xlu0 %520, %v495
      %v522 = vpop.permute.xlu0 %521
      %525 = vset.pattern.permute.xlu0 0
      %526 = vperm.xlu0 %525, %v496
      %v527 = vpop.permute.xlu0 %526
      %530 = vset.pattern.permute.xlu0 0
      %531 = vperm.xlu0 %530, %v497
      %v532 = vpop.permute.xlu0 %531
      %535 = vset.pattern.permute.xlu0 0
      %536 = vperm.xlu0 %535, %v498
      %v537 = vpop.permute.xlu0 %536
      %540 = vset.pattern.permute.xlu0 0
      %541 = vperm.xlu0 %540, %v499
      %v542 = vpop.permute.xlu0 %541
      %545 = vset.pattern.permute.xlu0 0
      %546 = vperm.xlu0 %545, %v500
      %v547 = vpop.permute.xlu0 %546
      %550 = vset.pattern.permute.xlu0 0
      %551 = vperm.xlu0 %550, %v501
      %v552 = vpop.permute.xlu0 %551
      %555 = vset.pattern.permute.xlu0 0
      %556 = vperm.xlu0 %555, %v502
      %v557 = vpop.permute.xlu0 %556
      %560 = vset.pattern.permute.xlu0 0
      %561 = vperm.xlu0 %560, %v503
      %v562 = vpop.permute.xlu0 %561
      %565 = vset.pattern.permute.xlu0 0
      %566 = vperm.xlu0 %565, %v504
      %v567 = vpop.permute.xlu0 %566
      %570 = vset.pattern.permute.xlu0 0
      %571 = vperm.xlu0 %570, %v505
      %v572 = vpop.permute.xlu0 %571
      %575 = vset.pattern.permute.xlu0 0
      %576 = vperm.xlu0 %575, %v506
      %v577 = vpop.permute.xlu0 %576
      %580 = vset.pattern.permute.xlu0 0
      %581 = vperm.xlu0 %580, %v507
      %v582 = vpop.permute.xlu0 %581
      %585 = vset.pattern.permute.xlu0 0
      %586 = vperm.xlu0 %585, %v508
      %v587 = vpop.permute.xlu0 %586
      %v605 = vunpack.c.l.b16 %v473
      %v606 = vunpack.c.l.b16 %v474
      %v607 = vunpack.c.l.b16 %v475
      %v608 = vunpack.c.l.b16 %v476
      %v609 = vunpack.c.l.b16 %v477
      %v610 = vunpack.c.l.b16 %v478
      %v611 = vunpack.c.l.b16 %v479
      %v612 = vunpack.c.l.b16 %v480
      %v613 = vunpack.c.l.b16 %v481
      %v614 = vunpack.c.l.b16 %v482
      %v615 = vunpack.c.l.b16 %v483
      %v616 = vunpack.c.l.b16 %v484
      %v617 = vunpack.c.l.b16 %v485
      %v618 = vunpack.c.l.b16 %v486
      %v619 = vunpack.c.l.b16 %v487
      %v620 = vunpack.c.l.b16 %v488
      %v621 = vpack.c.b16 %v606, %v605
      %v622 = vpack.c.b16 %v608, %v607
      %v623 = vpack.c.b16 %v610, %v609
      %v624 = vpack.c.b16 %v612, %v611
      %v625 = vpack.c.b16 %v614, %v613
      %v626 = vpack.c.b16 %v616, %v615
      %v627 = vpack.c.b16 %v618, %v617
      %v628 = vpack.c.b16 %v620, %v619
      %vm629 = vcmask 523264
      %v631 = vsel %vm629, %v621, 0
      %v634 = vsel %vm629, %v622, 0
      %v637 = vsel %vm629, %v623, 0
      %v640 = vsel %vm629, %v624, 0
      %v643 = vsel %vm629, %v625, 0
      %v646 = vsel %vm629, %v626, 0
      %v649 = vsel %vm629, %v627, 0
      %v652 = vsel %vm629, %v628, 0
      %654 = vmatprep.subr.bf16.mxu0 0
      %655 = vmatpush1.bf16.msra.mxu0 0
      %656 = vmatprep.subr.bf16.mxu0 0
      %657 = vmatpush1.bf16.msra.mxu0 0
      %658 = vmatprep.subr.bf16.mxu0 0
      %659 = vmatpush1.bf16.msra.mxu0 0
      %660 = vmatprep.subr.bf16.mxu0 0
      %661 = vmatpush1.bf16.msra.mxu0 0
      %662 = vmatprep.subr.bf16.mxu0 0
      %663 = vmatpush1.bf16.msra.mxu0 %v492
      %664 = vmatprep.subr.bf16.mxu0 0
      %665 = vmatpush1.bf16.msra.mxu0 %v491
      %666 = vmatprep.subr.bf16.mxu0 0
      %667 = vmatpush1.bf16.msra.mxu0 %v490
      %668 = vmatprep.subr.bf16.mxu0 0
      %669 = vmatpush1.bf16.msra.mxu0 %v489
      %670 = vmatprep.subr.bf16.mxu0 0
      %671 = vmatpush2.bf16.msra.mxu0 0
      %672 = vmatprep.subr.bf16.mxu0 0
      %673 = vmatpush2.bf16.msra.mxu0 0
      %674 = vmatprep.subr.bf16.mxu0 0
      %675 = vmatpush2.bf16.msra.mxu0 0
      %676 = vmatprep.subr.bf16.mxu0 0
      %677 = vmatpush2.bf16.msra.mxu0 0
      %678 = vmatprep.subr.bf16.mxu0 0
      %679 = vmatpush2.bf16.msra.mxu0 0
      %680 = vmatprep.subr.bf16.mxu0 0
      %681 = vmatpush2.bf16.msra.mxu0 0
      %682 = vmatprep.subr.bf16.mxu0 0
      %683 = vmatpush2.bf16.msra.mxu0 0
      %684 = vmatprep.subr.bf16.mxu0 0
      %685 = vmatpush2.bf16.msra.mxu0 0
      %686 = vmatprep.mubr.bf16.mxu0 0
      %687 = vmatmul.mubr.bf16.gmra.mxu0 %v631
      %v688 = vpop.f32.mrf.mxu0
      %v689 = vadd.f32 %v512, %v688
      %v690 = vpop.f32.mrf.mxu0
      %v691 = vpop.f32.mrf.mxu0
      %v692 = vadd.f32 %v517, %v691
      %v693 = vpop.f32.mrf.mxu0
      %694 = vmatprep.mubr.bf16.mxu0 0
      %695 = vmatmul.mubr.bf16.gmra.mxu0 %v634
      %v696 = vpop.f32.mrf.mxu0
      %v697 = vadd.f32 %v522, %v696
      %v698 = vpop.f32.mrf.mxu0
      %v699 = vpop.f32.mrf.mxu0
      %v700 = vadd.f32 %v527, %v699
      %v701 = vpop.f32.mrf.mxu0
      %702 = vmatprep.mubr.bf16.mxu0 0
      %703 = vmatmul.mubr.bf16.gmra.mxu0 %v637
      %v704 = vpop.f32.mrf.mxu0
      %v705 = vadd.f32 %v532, %v704
      %v706 = vpop.f32.mrf.mxu0
      %v707 = vpop.f32.mrf.mxu0
      %v708 = vadd.f32 %v537, %v707
      %v709 = vpop.f32.mrf.mxu0
      %710 = vmatprep.mubr.bf16.mxu0 0
      %711 = vmatmul.mubr.bf16.gmra.mxu0 %v640
      %v712 = vpop.f32.mrf.mxu0
      %v713 = vadd.f32 %v542, %v712
      %v714 = vpop.f32.mrf.mxu0
      %v715 = vpop.f32.mrf.mxu0
      %v716 = vadd.f32 %v547, %v715
      %v717 = vpop.f32.mrf.mxu0
      %718 = vmatprep.mubr.bf16.mxu0 0
      %719 = vmatmul.mubr.bf16.gmra.mxu0 %v643
      %v720 = vpop.f32.mrf.mxu0
      %v721 = vadd.f32 %v552, %v720
      %v722 = vpop.f32.mrf.mxu0
      %v723 = vpop.f32.mrf.mxu0
      %v724 = vadd.f32 %v557, %v723
      %v725 = vpop.f32.mrf.mxu0
      %726 = vmatprep.mubr.bf16.mxu0 0
      %727 = vmatmul.mubr.bf16.gmra.mxu0 %v646
      %v728 = vpop.f32.mrf.mxu0
      %v729 = vadd.f32 %v562, %v728
      %v730 = vpop.f32.mrf.mxu0
      %v731 = vpop.f32.mrf.mxu0
      %v732 = vadd.f32 %v567, %v731
      %v733 = vpop.f32.mrf.mxu0
      %734 = vmatprep.mubr.bf16.mxu0 0
      %735 = vmatmul.mubr.bf16.gmra.mxu0 %v649
      %v736 = vpop.f32.mrf.mxu0
      %v737 = vadd.f32 %v572, %v736
      %v738 = vpop.f32.mrf.mxu0
      %v739 = vpop.f32.mrf.mxu0
      %v740 = vadd.f32 %v577, %v739
      %v741 = vpop.f32.mrf.mxu0
      %742 = vmatprep.mubr.bf16.mxu0 0
      %743 = vmatmul.mubr.bf16.gmra.mxu0 %v652
      %v744 = vpop.f32.mrf.mxu0
      %v745 = vadd.f32 %v582, %v744
      %v746 = vpop.f32.mrf.mxu0
      %v747 = vpop.f32.mrf.mxu0
      %v748 = vadd.f32 %v587, %v747
      %v749 = vpop.f32.mrf.mxu0
      %750 = vdwg.mxu0
      %v751 = vmax.f32 %v689, 0.0
      %v752 = vmax.f32 %v692, 0.0
      %v753 = vmax.f32 %v697, 0.0
      %v754 = vmax.f32 %v700, 0.0
      %v755 = vmax.f32 %v705, 0.0
      %v756 = vmax.f32 %v708, 0.0
      %v757 = vmax.f32 %v713, 0.0
      %v758 = vmax.f32 %v716, 0.0
      %v759 = vmax.f32 %v721, 0.0
      %v760 = vmax.f32 %v724, 0.0
      %v761 = vmax.f32 %v729, 0.0
      %v762 = vmax.f32 %v732, 0.0
      %v763 = vmax.f32 %v737, 0.0
      %v764 = vmax.f32 %v740, 0.0
      %v765 = vmax.f32 %v745, 0.0
      %v766 = vmax.f32 %v748, 0.0
      %v767 = vld [vmem:[%s5] sm:$0xf]
      %v768 = vld [vmem:[%s5 + $0x4] sm:$0xf]
      %v769 = vld [vmem:[%s5 + $0x8] sm:$0xf]
      %v770 = vld [vmem:[%s5 + $0xc] sm:$0xf]
      %v771 = vld [vmem:[%s5 + $0x10] sm:$0xf]
      %v772 = vld [vmem:[%s5 + $0x14] sm:$0xf]
      %v773 = vld [vmem:[%s5 + $0x18] sm:$0xf]
      %v774 = vld [vmem:[%s5 + $0x1c] sm:$0xf]
      %v775 = vld [vmem:[%s5 + $0x20] sm:$0xf]
      %v776 = vld [vmem:[%s5 + $0x24] sm:$0xf]
      %v777 = vld [vmem:[%s5 + $0x28] sm:$0xf]
      %v778 = vld [vmem:[%s5 + $0x2c] sm:$0xf]
      %v779 = vld [vmem:[%s5 + $0x30] sm:$0xf]
      %v780 = vld [vmem:[%s5 + $0x34] sm:$0xf]
      %v781 = vld [vmem:[%s5 + $0x38] sm:$0xf]
      %v782 = vld [vmem:[%s5 + $0x3c] sm:$0xf]
      %v783 = vld [vmem:[%s5 + $0x40] sm:$0xf]
      %v784 = vld [vmem:[%s5 + $0x44] sm:$0xf]
      %v785 = vld [vmem:[%s5 + $0x48] sm:$0xf]
      %v786 = vld [vmem:[%s5 + $0x4c] sm:$0xf]
      %v787 = vld [vmem:[%s5 + $0x50] sm:$0xf]
      %v788 = vld [vmem:[%s5 + $0x54] sm:$0xf]
      %v789 = vld [vmem:[%s5 + $0x58] sm:$0xf]
      %v790 = vld [vmem:[%s5 + $0x5c] sm:$0xf]
      %v791 = vld [vmem:[%s5 + $0x60] sm:$0xf]
      %v792 = vld [vmem:[%s5 + $0x64] sm:$0xf]
      %v793 = vld [vmem:[%s5 + $0x68] sm:$0xf]
      %v794 = vld [vmem:[%s5 + $0x6c] sm:$0xf]
      %v795 = vld [vmem:[%s5 + $0x70] sm:$0xf]
      %v796 = vld [vmem:[%s5 + $0x74] sm:$0xf]
      %v797 = vld [vmem:[%s5 + $0x78] sm:$0xf]
      %v798 = vld [vmem:[%s5 + $0x7c] sm:$0xf]
      %v799 = vld [vmem:[%s5 + $0x80] sm:$0xf]
      %v800 = vld [vmem:[%s5 + $0x84] sm:$0xf]
      %v801 = vld [vmem:[%s5 + $0x88] sm:$0xf]
      %v802 = vld [vmem:[%s5 + $0x8c] sm:$0xf]
      %v803 = vld [vmem:[%s5 + $0x90] sm:$0xf]
      %v804 = vld [vmem:[%s5 + $0x94] sm:$0xf]
      %v805 = vld [vmem:[%s5 + $0x98] sm:$0xf]
      %v806 = vld [vmem:[%s5 + $0x9c] sm:$0xf]
      %v807 = vld [vmem:[%s5 + $0xa0] sm:$0xf]
      %v808 = vld [vmem:[%s5 + $0xa4] sm:$0xf]
      %v809 = vld [vmem:[%s5 + $0xa8] sm:$0xf]
      %v810 = vld [vmem:[%s5 + $0xac] sm:$0xf]
      %v811 = vld [vmem:[%s5 + $0xb0] sm:$0xf]
      %v812 = vld [vmem:[%s5 + $0xb4] sm:$0xf]
      %v813 = vld [vmem:[%s5 + $0xb8] sm:$0xf]
      %v814 = vld [vmem:[%s5 + $0xbc] sm:$0xf]
      %v815 = vld [vmem:[%s5 + $0xc0] sm:$0xf]
      %v816 = vld [vmem:[%s5 + $0xc4] sm:$0xf]
      %v817 = vld [vmem:[%s5 + $0xc8] sm:$0xf]
      %v818 = vld [vmem:[%s5 + $0xcc] sm:$0xf]
      %v819 = vld [vmem:[%s5 + $0xd0] sm:$0xf]
      %v820 = vld [vmem:[%s5 + $0xd4] sm:$0xf]
      %v821 = vld [vmem:[%s5 + $0xd8] sm:$0xf]
      %v822 = vld [vmem:[%s5 + $0xdc] sm:$0xf]
      %v823 = vld [vmem:[%s5 + $0xe0] sm:$0xf]
      %v824 = vld [vmem:[%s5 + $0xe4] sm:$0xf]
      %v825 = vld [vmem:[%s5 + $0xe8] sm:$0xf]
      %v826 = vld [vmem:[%s5 + $0xec] sm:$0xf]
      %v827 = vld [vmem:[%s5 + $0xf0] sm:$0xf]
      %v828 = vld [vmem:[%s5 + $0xf4] sm:$0xf]
      %v829 = vld [vmem:[%s5 + $0xf8] sm:$0xf]
      %v830 = vld [vmem:[%s5 + $0xfc] sm:$0xf]
      %v831 = vld [vmem:[%s5 + $0x100] sm:$0xf]
      %v832 = vld [vmem:[%s5 + $0x104] sm:$0xf]
      %v833 = vld [vmem:[%s5 + $0x108] sm:$0xf]
      %v834 = vld [vmem:[%s5 + $0x10c] sm:$0xf]
      %v835 = vld [vmem:[%s5 + $0x110] sm:$0xf]
      %v836 = vld [vmem:[%s5 + $0x114] sm:$0xf]
      %v837 = vld [vmem:[%s5 + $0x118] sm:$0xf]
      %v838 = vld [vmem:[%s5 + $0x11c] sm:$0xf]
      %v839 = vld [vmem:[%s5 + $0x120] sm:$0xf]
      %v840 = vld [vmem:[%s5 + $0x124] sm:$0xf]
      %v841 = vld [vmem:[%s5 + $0x128] sm:$0xf]
      %v842 = vld [vmem:[%s5 + $0x12c] sm:$0xf]
      %v843 = vld [vmem:[%s5 + $0x130] sm:$0xf]
      %v844 = vld [vmem:[%s5 + $0x134] sm:$0xf]
      %v845 = vld [vmem:[%s5 + $0x138] sm:$0xf]
      %v846 = vld [vmem:[%s5 + $0x13c] sm:$0xf]
      %v847 = vld [vmem:[%s5 + $0x140] sm:$0xf]
      %v848 = vld [vmem:[%s5 + $0x144] sm:$0xf]
      %v849 = vld [vmem:[%s5 + $0x148] sm:$0xf]
      %v850 = vld [vmem:[%s5 + $0x14c] sm:$0xf]
      %v851 = vld [vmem:[%s5 + $0x150] sm:$0xf]
      %v852 = vld [vmem:[%s5 + $0x154] sm:$0xf]
      %v853 = vld [vmem:[%s5 + $0x158] sm:$0xf]
      %v854 = vld [vmem:[%s5 + $0x15c] sm:$0xf]
      %v855 = vld [vmem:[%s5 + $0x160] sm:$0xf]
      %v856 = vld [vmem:[%s5 + $0x164] sm:$0xf]
      %v857 = vld [vmem:[%s5 + $0x168] sm:$0xf]
      %v858 = vld [vmem:[%s5 + $0x16c] sm:$0xf]
      %v859 = vld [vmem:[%s5 + $0x170] sm:$0xf]
      %v860 = vld [vmem:[%s5 + $0x174] sm:$0xf]
      %v861 = vld [vmem:[%s5 + $0x178] sm:$0xf]
      %v862 = vld [vmem:[%s5 + $0x17c] sm:$0xf]
      %v863 = vld [vmem:[%s5 + $0x180] sm:$0xf]
      %v864 = vld [vmem:[%s5 + $0x184] sm:$0xf]
      %v865 = vld [vmem:[%s5 + $0x188] sm:$0xf]
      %v866 = vld [vmem:[%s5 + $0x18c] sm:$0xf]
      %v867 = vld [vmem:[%s5 + $0x190] sm:$0xf]
      %v868 = vld [vmem:[%s5 + $0x194] sm:$0xf]
      %v869 = vld [vmem:[%s5 + $0x198] sm:$0xf]
      %v870 = vld [vmem:[%s5 + $0x19c] sm:$0xf]
      %v871 = vld [vmem:[%s5 + $0x1a0] sm:$0xf]
      %v872 = vld [vmem:[%s5 + $0x1a4] sm:$0xf]
      %v873 = vld [vmem:[%s5 + $0x1a8] sm:$0xf]
      %v874 = vld [vmem:[%s5 + $0x1ac] sm:$0xf]
      %v875 = vld [vmem:[%s5 + $0x1b0] sm:$0xf]
      %v876 = vld [vmem:[%s5 + $0x1b4] sm:$0xf]
      %v877 = vld [vmem:[%s5 + $0x1b8] sm:$0xf]
      %v878 = vld [vmem:[%s5 + $0x1bc] sm:$0xf]
      %v879 = vld [vmem:[%s5 + $0x1c0] sm:$0xf]
      %v880 = vld [vmem:[%s5 + $0x1c4] sm:$0xf]
      %v881 = vld [vmem:[%s5 + $0x1c8] sm:$0xf]
      %v882 = vld [vmem:[%s5 + $0x1cc] sm:$0xf]
      %v883 = vld [vmem:[%s5 + $0x1d0] sm:$0xf]
      %v884 = vld [vmem:[%s5 + $0x1d4] sm:$0xf]
      %v885 = vld [vmem:[%s5 + $0x1d8] sm:$0xf]
      %v886 = vld [vmem:[%s5 + $0x1dc] sm:$0xf]
      %v887 = vld [vmem:[%s5 + $0x1e0] sm:$0xf]
      %v888 = vld [vmem:[%s5 + $0x1e4] sm:$0xf]
      %v889 = vld [vmem:[%s5 + $0x1e8] sm:$0xf]
      %v890 = vld [vmem:[%s5 + $0x1ec] sm:$0xf]
      %v891 = vld [vmem:[%s5 + $0x1f0] sm:$0xf]
      %v892 = vld [vmem:[%s5 + $0x1f4] sm:$0xf]
      %v893 = vld [vmem:[%s5 + $0x1f8] sm:$0xf]
      %v894 = vld [vmem:[%s5 + $0x1fc] sm:$0xf]
      %v895 = vpack.c.bf16 %v752, %v751
      %v896 = vpack.c.bf16 %v754, %v753
      %v897 = vpack.c.bf16 %v756, %v755
      %v898 = vpack.c.bf16 %v758, %v757
      %v899 = vpack.c.bf16 %v760, %v759
      %v900 = vpack.c.bf16 %v762, %v761
      %v901 = vpack.c.bf16 %v764, %v763
      %v902 = vpack.c.bf16 %v766, %v765
      %v903 = vld [vmem:[%s6] sm:$0xff]
      %v904 = vld [vmem:[%s6 + $0x8] sm:$0xff]
      %v905 = vld [vmem:[%s6 + $0x10] sm:$0xff]
      %v906 = vld [vmem:[%s6 + $0x18] sm:$0xff]
      %v907 = vld [vmem:[%s6 + $0x20] sm:$0xff]
      %v908 = vld [vmem:[%s6 + $0x28] sm:$0xff]
      %v909 = vld [vmem:[%s6 + $0x30] sm:$0xff]
      %v910 = vld [vmem:[%s6 + $0x38] sm:$0xff]
      %v911 = vld [vmem:[%s6 + $0x40] sm:$0xff]
      %v912 = vld [vmem:[%s6 + $0x48] sm:$0xff]
      %v913 = vld [vmem:[%s6 + $0x50] sm:$0xff]
      %v914 = vld [vmem:[%s6 + $0x58] sm:$0xff]
      %v915 = vld [vmem:[%s6 + $0x60] sm:$0xff]
      %v916 = vld [vmem:[%s6 + $0x68] sm:$0xff]
      %v917 = vld [vmem:[%s6 + $0x70] sm:$0xff]
      %v918 = vld [vmem:[%s6 + $0x78] sm:$0xff]
      %v919 = vld [vmem:[%s6 + $0x80] sm:$0xff]
      %v920 = vld [vmem:[%s6 + $0x88] sm:$0xff]
      %v921 = vld [vmem:[%s6 + $0x90] sm:$0xff]
      %v922 = vld [vmem:[%s6 + $0x98] sm:$0xff]
      %v923 = vld [vmem:[%s6 + $0xa0] sm:$0xff]
      %v924 = vld [vmem:[%s6 + $0xa8] sm:$0xff]
      %v925 = vld [vmem:[%s6 + $0xb0] sm:$0xff]
      %v926 = vld [vmem:[%s6 + $0xb8] sm:$0xff]
      %v927 = vld [vmem:[%s6 + $0xc0] sm:$0xff]
      %v928 = vld [vmem:[%s6 + $0xc8] sm:$0xff]
      %v929 = vld [vmem:[%s6 + $0xd0] sm:$0xff]
      %v930 = vld [vmem:[%s6 + $0xd8] sm:$0xff]
      %v931 = vld [vmem:[%s6 + $0xe0] sm:$0xff]
      %v932 = vld [vmem:[%s6 + $0xe8] sm:$0xff]
      %v933 = vld [vmem:[%s6 + $0xf0] sm:$0xff]
      %v934 = vld [vmem:[%s6 + $0xf8] sm:$0xff]
      %v935 = vld [vmem:[%s6 + $0x100] sm:$0xff]
      %v936 = vld [vmem:[%s6 + $0x108] sm:$0xff]
      %v937 = vld [vmem:[%s6 + $0x110] sm:$0xff]
      %v938 = vld [vmem:[%s6 + $0x118] sm:$0xff]
      %v939 = vld [vmem:[%s6 + $0x120] sm:$0xff]
      %v940 = vld [vmem:[%s6 + $0x128] sm:$0xff]
      %v941 = vld [vmem:[%s6 + $0x130] sm:$0xff]
      %v942 = vld [vmem:[%s6 + $0x138] sm:$0xff]
      %v943 = vld [vmem:[%s6 + $0x140] sm:$0xff]
      %v944 = vld [vmem:[%s6 + $0x148] sm:$0xff]
      %v945 = vld [vmem:[%s6 + $0x150] sm:$0xff]
      %v946 = vld [vmem:[%s6 + $0x158] sm:$0xff]
      %v947 = vld [vmem:[%s6 + $0x160] sm:$0xff]
      %v948 = vld [vmem:[%s6 + $0x168] sm:$0xff]
      %v949 = vld [vmem:[%s6 + $0x170] sm:$0xff]
      %v950 = vld [vmem:[%s6 + $0x178] sm:$0xff]
      %v951 = vld [vmem:[%s6 + $0x180] sm:$0xff]
      %v952 = vld [vmem:[%s6 + $0x188] sm:$0xff]
      %v953 = vld [vmem:[%s6 + $0x190] sm:$0xff]
      %v954 = vld [vmem:[%s6 + $0x198] sm:$0xff]
      %v955 = vld [vmem:[%s6 + $0x1a0] sm:$0xff]
      %v956 = vld [vmem:[%s6 + $0x1a8] sm:$0xff]
      %v957 = vld [vmem:[%s6 + $0x1b0] sm:$0xff]
      %v958 = vld [vmem:[%s6 + $0x1b8] sm:$0xff]
      %v959 = vld [vmem:[%s6 + $0x1c0] sm:$0xff]
      %v960 = vld [vmem:[%s6 + $0x1c8] sm:$0xff]
      %v961 = vld [vmem:[%s6 + $0x1d0] sm:$0xff]
      %v962 = vld [vmem:[%s6 + $0x1d8] sm:$0xff]
      %v963 = vld [vmem:[%s6 + $0x1e0] sm:$0xff]
      %v964 = vld [vmem:[%s6 + $0x1e8] sm:$0xff]
      %v965 = vld [vmem:[%s6 + $0x1f0] sm:$0xff]
      %v966 = vld [vmem:[%s6 + $0x1f8] sm:$0xff]
      %v967 = vld [vmem:[%s6 + $0x200] sm:$0xff]
      %v968 = vld [vmem:[%s6 + $0x208] sm:$0xff]
      %v969 = vld [vmem:[%s6 + $0x210] sm:$0xff]
      %v970 = vld [vmem:[%s6 + $0x218] sm:$0xff]
      %v971 = vld [vmem:[%s6 + $0x220] sm:$0xff]
      %v972 = vld [vmem:[%s6 + $0x228] sm:$0xff]
      %v973 = vld [vmem:[%s6 + $0x230] sm:$0xff]
      %v974 = vld [vmem:[%s6 + $0x238] sm:$0xff]
      %v975 = vld [vmem:[%s6 + $0x240] sm:$0xff]
      %v976 = vld [vmem:[%s6 + $0x248] sm:$0xff]
      %v977 = vld [vmem:[%s6 + $0x250] sm:$0xff]
      %v978 = vld [vmem:[%s6 + $0x258] sm:$0xff]
      %v979 = vld [vmem:[%s6 + $0x260] sm:$0xff]
      %v980 = vld [vmem:[%s6 + $0x268] sm:$0xff]
      %v981 = vld [vmem:[%s6 + $0x270] sm:$0xff]
      %v982 = vld [vmem:[%s6 + $0x278] sm:$0xff]
      %v983 = vld [vmem:[%s6 + $0x280] sm:$0xff]
      %v984 = vld [vmem:[%s6 + $0x288] sm:$0xff]
      %v985 = vld [vmem:[%s6 + $0x290] sm:$0xff]
      %v986 = vld [vmem:[%s6 + $0x298] sm:$0xff]
      %v987 = vld [vmem:[%s6 + $0x2a0] sm:$0xff]
      %v988 = vld [vmem:[%s6 + $0x2a8] sm:$0xff]
      %v989 = vld [vmem:[%s6 + $0x2b0] sm:$0xff]
      %v990 = vld [vmem:[%s6 + $0x2b8] sm:$0xff]
      %v991 = vld [vmem:[%s6 + $0x2c0] sm:$0xff]
      %v992 = vld [vmem:[%s6 + $0x2c8] sm:$0xff]
      %v993 = vld [vmem:[%s6 + $0x2d0] sm:$0xff]
      %v994 = vld [vmem:[%s6 + $0x2d8] sm:$0xff]
      %v995 = vld [vmem:[%s6 + $0x2e0] sm:$0xff]
      %v996 = vld [vmem:[%s6 + $0x2e8] sm:$0xff]
      %v997 = vld [vmem:[%s6 + $0x2f0] sm:$0xff]
      %v998 = vld [vmem:[%s6 + $0x2f8] sm:$0xff]
      %v999 = vld [vmem:[%s6 + $0x300] sm:$0xff]
      %v1000 = vld [vmem:[%s6 + $0x308] sm:$0xff]
      %v1001 = vld [vmem:[%s6 + $0x310] sm:$0xff]
      %v1002 = vld [vmem:[%s6 + $0x318] sm:$0xff]
      %v1003 = vld [vmem:[%s6 + $0x320] sm:$0xff]
      %v1004 = vld [vmem:[%s6 + $0x328] sm:$0xff]
      %v1005 = vld [vmem:[%s6 + $0x330] sm:$0xff]
      %v1006 = vld [vmem:[%s6 + $0x338] sm:$0xff]
      %v1007 = vld [vmem:[%s6 + $0x340] sm:$0xff]
      %v1008 = vld [vmem:[%s6 + $0x348] sm:$0xff]
      %v1009 = vld [vmem:[%s6 + $0x350] sm:$0xff]
      %v1010 = vld [vmem:[%s6 + $0x358] sm:$0xff]
      %v1011 = vld [vmem:[%s6 + $0x360] sm:$0xff]
      %v1012 = vld [vmem:[%s6 + $0x368] sm:$0xff]
      %v1013 = vld [vmem:[%s6 + $0x370] sm:$0xff]
      %v1014 = vld [vmem:[%s6 + $0x378] sm:$0xff]
      %v1015 = vld [vmem:[%s6 + $0x380] sm:$0xff]
      %v1016 = vld [vmem:[%s6 + $0x388] sm:$0xff]
      %v1017 = vld [vmem:[%s6 + $0x390] sm:$0xff]
      %v1018 = vld [vmem:[%s6 + $0x398] sm:$0xff]
      %v1019 = vld [vmem:[%s6 + $0x3a0] sm:$0xff]
      %v1020 = vld [vmem:[%s6 + $0x3a8] sm:$0xff]
      %v1021 = vld [vmem:[%s6 + $0x3b0] sm:$0xff]
      %v1022 = vld [vmem:[%s6 + $0x3b8] sm:$0xff]
      %v1023 = vld [vmem:[%s6 + $0x3c0] sm:$0xff]
      %v1024 = vld [vmem:[%s6 + $0x3c8] sm:$0xff]
      %v1025 = vld [vmem:[%s6 + $0x3d0] sm:$0xff]
      %v1026 = vld [vmem:[%s6 + $0x3d8] sm:$0xff]
      %v1027 = vld [vmem:[%s6 + $0x3e0] sm:$0xff]
      %v1028 = vld [vmem:[%s6 + $0x3e8] sm:$0xff]
      %v1029 = vld [vmem:[%s6 + $0x3f0] sm:$0xff]
      %v1030 = vld [vmem:[%s6 + $0x3f8] sm:$0xff]
      %1032 = vset.pattern.permute.xlu0 0
      %1033 = vperm.xlu0 %1032, %v903
      %v1034 = vpop.permute.xlu0 %1033
      %1037 = vset.pattern.permute.xlu0 0
      %1038 = vperm.xlu0 %1037, %v904
      %v1039 = vpop.permute.xlu0 %1038
      %1042 = vset.pattern.permute.xlu0 0
      %1043 = vperm.xlu0 %1042, %v905
      %v1044 = vpop.permute.xlu0 %1043
      %1047 = vset.pattern.permute.xlu0 0
      %1048 = vperm.xlu0 %1047, %v906
      %v1049 = vpop.permute.xlu0 %1048
      %1052 = vset.pattern.permute.xlu0 0
      %1053 = vperm.xlu0 %1052, %v907
      %v1054 = vpop.permute.xlu0 %1053
      %1057 = vset.pattern.permute.xlu0 0
      %1058 = vperm.xlu0 %1057, %v908
      %v1059 = vpop.permute.xlu0 %1058
      %1062 = vset.pattern.permute.xlu0 0
      %1063 = vperm.xlu0 %1062, %v909
      %v1064 = vpop.permute.xlu0 %1063
      %1067 = vset.pattern.permute.xlu0 0
      %1068 = vperm.xlu0 %1067, %v910
      %v1069 = vpop.permute.xlu0 %1068
      %1072 = vset.pattern.permute.xlu0 0
      %1073 = vperm.xlu0 %1072, %v911
      %v1074 = vpop.permute.xlu0 %1073
      %1077 = vset.pattern.permute.xlu0 0
      %1078 = vperm.xlu0 %1077, %v912
      %v1079 = vpop.permute.xlu0 %1078
      %1082 = vset.pattern.permute.xlu0 0
      %1083 = vperm.xlu0 %1082, %v913
      %v1084 = vpop.permute.xlu0 %1083
      %1087 = vset.pattern.permute.xlu0 0
      %1088 = vperm.xlu0 %1087, %v914
      %v1089 = vpop.permute.xlu0 %1088
      %1092 = vset.pattern.permute.xlu0 0
      %1093 = vperm.xlu0 %1092, %v915
      %v1094 = vpop.permute.xlu0 %1093
      %1097 = vset.pattern.permute.xlu0 0
      %1098 = vperm.xlu0 %1097, %v916
      %v1099 = vpop.permute.xlu0 %1098
      %1102 = vset.pattern.permute.xlu0 0
      %1103 = vperm.xlu0 %1102, %v917
      %v1104 = vpop.permute.xlu0 %1103
      %1107 = vset.pattern.permute.xlu0 0
      %1108 = vperm.xlu0 %1107, %v918
      %v1109 = vpop.permute.xlu0 %1108
      %1112 = vset.pattern.permute.xlu0 0
      %1113 = vperm.xlu0 %1112, %v919
      %v1114 = vpop.permute.xlu0 %1113
      %1117 = vset.pattern.permute.xlu0 0
      %1118 = vperm.xlu0 %1117, %v920
      %v1119 = vpop.permute.xlu0 %1118
      %1122 = vset.pattern.permute.xlu0 0
      %1123 = vperm.xlu0 %1122, %v921
      %v1124 = vpop.permute.xlu0 %1123
      %1127 = vset.pattern.permute.xlu0 0
      %1128 = vperm.xlu0 %1127, %v922
      %v1129 = vpop.permute.xlu0 %1128
      %1132 = vset.pattern.permute.xlu0 0
      %1133 = vperm.xlu0 %1132, %v923
      %v1134 = vpop.permute.xlu0 %1133
      %1137 = vset.pattern.permute.xlu0 0
      %1138 = vperm.xlu0 %1137, %v924
      %v1139 = vpop.permute.xlu0 %1138
      %1142 = vset.pattern.permute.xlu0 0
      %1143 = vperm.xlu0 %1142, %v925
      %v1144 = vpop.permute.xlu0 %1143
      %1147 = vset.pattern.permute.xlu0 0
      %1148 = vperm.xlu0 %1147, %v926
      %v1149 = vpop.permute.xlu0 %1148
      %1152 = vset.pattern.permute.xlu0 0
      %1153 = vperm.xlu0 %1152, %v927
      %v1154 = vpop.permute.xlu0 %1153
      %1157 = vset.pattern.permute.xlu0 0
      %1158 = vperm.xlu0 %1157, %v928
      %v1159 = vpop.permute.xlu0 %1158
      %1162 = vset.pattern.permute.xlu0 0
      %1163 = vperm.xlu0 %1162, %v929
      %v1164 = vpop.permute.xlu0 %1163
      %1167 = vset.pattern.permute.xlu0 0
      %1168 = vperm.xlu0 %1167, %v930
      %v1169 = vpop.permute.xlu0 %1168
      %1172 = vset.pattern.permute.xlu0 0
      %1173 = vperm.xlu0 %1172, %v931
      %v1174 = vpop.permute.xlu0 %1173
      %1177 = vset.pattern.permute.xlu0 0
      %1178 = vperm.xlu0 %1177, %v932
      %v1179 = vpop.permute.xlu0 %1178
      %1182 = vset.pattern.permute.xlu0 0
      %1183 = vperm.xlu0 %1182, %v933
      %v1184 = vpop.permute.xlu0 %1183
      %1187 = vset.pattern.permute.xlu0 0
      %1188 = vperm.xlu0 %1187, %v934
      %v1189 = vpop.permute.xlu0 %1188
      %1192 = vset.pattern.permute.xlu0 0
      %1193 = vperm.xlu0 %1192, %v935
      %v1194 = vpop.permute.xlu0 %1193
      %1197 = vset.pattern.permute.xlu0 0
      %1198 = vperm.xlu0 %1197, %v936
      %v1199 = vpop.permute.xlu0 %1198
      %1202 = vset.pattern.permute.xlu0 0
      %1203 = vperm.xlu0 %1202, %v937
      %v1204 = vpop.permute.xlu0 %1203
      %1207 = vset.pattern.permute.xlu0 0
      %1208 = vperm.xlu0 %1207, %v938
      %v1209 = vpop.permute.xlu0 %1208
      %1212 = vset.pattern.permute.xlu0 0
      %1213 = vperm.xlu0 %1212, %v939
      %v1214 = vpop.permute.xlu0 %1213
      %1217 = vset.pattern.permute.xlu0 0
      %1218 = vperm.xlu0 %1217, %v940
      %v1219 = vpop.permute.xlu0 %1218
      %1222 = vset.pattern.permute.xlu0 0
      %1223 = vperm.xlu0 %1222, %v941
      %v1224 = vpop.permute.xlu0 %1223
      %1227 = vset.pattern.permute.xlu0 0
      %1228 = vperm.xlu0 %1227, %v942
      %v1229 = vpop.permute.xlu0 %1228
      %1232 = vset.pattern.permute.xlu0 0
      %1233 = vperm.xlu0 %1232, %v943
      %v1234 = vpop.permute.xlu0 %1233
      %1237 = vset.pattern.permute.xlu0 0
      %1238 = vperm.xlu0 %1237, %v944
      %v1239 = vpop.permute.xlu0 %1238
      %1242 = vset.pattern.permute.xlu0 0
      %1243 = vperm.xlu0 %1242, %v945
      %v1244 = vpop.permute.xlu0 %1243
      %1247 = vset.pattern.permute.xlu0 0
      %1248 = vperm.xlu0 %1247, %v946
      %v1249 = vpop.permute.xlu0 %1248
      %1252 = vset.pattern.permute.xlu0 0
      %1253 = vperm.xlu0 %1252, %v947
      %v1254 = vpop.permute.xlu0 %1253
      %1257 = vset.pattern.permute.xlu0 0
      %1258 = vperm.xlu0 %1257, %v948
      %v1259 = vpop.permute.xlu0 %1258
      %1262 = vset.pattern.permute.xlu0 0
      %1263 = vperm.xlu0 %1262, %v949
      %v1264 = vpop.permute.xlu0 %1263
      %1267 = vset.pattern.permute.xlu0 0
      %1268 = vperm.xlu0 %1267, %v950
      %v1269 = vpop.permute.xlu0 %1268
      %1272 = vset.pattern.permute.xlu0 0
      %1273 = vperm.xlu0 %1272, %v951
      %v1274 = vpop.permute.xlu0 %1273
      %1277 = vset.pattern.permute.xlu0 0
      %1278 = vperm.xlu0 %1277, %v952
      %v1279 = vpop.permute.xlu0 %1278
      %1282 = vset.pattern.permute.xlu0 0
      %1283 = vperm.xlu0 %1282, %v953
      %v1284 = vpop.permute.xlu0 %1283
      %1287 = vset.pattern.permute.xlu0 0
      %1288 = vperm.xlu0 %1287, %v954
      %v1289 = vpop.permute.xlu0 %1288
      %1292 = vset.pattern.permute.xlu0 0
      %1293 = vperm.xlu0 %1292, %v955
      %v1294 = vpop.permute.xlu0 %1293
      %1297 = vset.pattern.permute.xlu0 0
      %1298 = vperm.xlu0 %1297, %v956
      %v1299 = vpop.permute.xlu0 %1298
      %1302 = vset.pattern.permute.xlu0 0
      %1303 = vperm.xlu0 %1302, %v957
      %v1304 = vpop.permute.xlu0 %1303
      %1307 = vset.pattern.permute.xlu0 0
      %1308 = vperm.xlu0 %1307, %v958
      %v1309 = vpop.permute.xlu0 %1308
      %1312 = vset.pattern.permute.xlu0 0
      %1313 = vperm.xlu0 %1312, %v959
      %v1314 = vpop.permute.xlu0 %1313
      %1317 = vset.pattern.permute.xlu0 0
      %1318 = vperm.xlu0 %1317, %v960
      %v1319 = vpop.permute.xlu0 %1318
      %1322 = vset.pattern.permute.xlu0 0
      %1323 = vperm.xlu0 %1322, %v961
      %v1324 = vpop.permute.xlu0 %1323
      %1327 = vset.pattern.permute.xlu0 0
      %1328 = vperm.xlu0 %1327, %v962
      %v1329 = vpop.permute.xlu0 %1328
      %1332 = vset.pattern.permute.xlu0 0
      %1333 = vperm.xlu0 %1332, %v963
      %v1334 = vpop.permute.xlu0 %1333
      %1337 = vset.pattern.permute.xlu0 0
      %1338 = vperm.xlu0 %1337, %v964
      %v1339 = vpop.permute.xlu0 %1338
      %1342 = vset.pattern.permute.xlu0 0
      %1343 = vperm.xlu0 %1342, %v965
      %v1344 = vpop.permute.xlu0 %1343
      %1347 = vset.pattern.permute.xlu0 0
      %1348 = vperm.xlu0 %1347, %v966
      %v1349 = vpop.permute.xlu0 %1348
      %1352 = vset.pattern.permute.xlu0 0
      %1353 = vperm.xlu0 %1352, %v967
      %v1354 = vpop.permute.xlu0 %1353
      %1357 = vset.pattern.permute.xlu0 0
      %1358 = vperm.xlu0 %1357, %v968
      %v1359 = vpop.permute.xlu0 %1358
      %1362 = vset.pattern.permute.xlu0 0
      %1363 = vperm.xlu0 %1362, %v969
      %v1364 = vpop.permute.xlu0 %1363
      %1367 = vset.pattern.permute.xlu0 0
      %1368 = vperm.xlu0 %1367, %v970
      %v1369 = vpop.permute.xlu0 %1368
      %1372 = vset.pattern.permute.xlu0 0
      %1373 = vperm.xlu0 %1372, %v971
      %v1374 = vpop.permute.xlu0 %1373
      %1377 = vset.pattern.permute.xlu0 0
      %1378 = vperm.xlu0 %1377, %v972
      %v1379 = vpop.permute.xlu0 %1378
      %1382 = vset.pattern.permute.xlu0 0
      %1383 = vperm.xlu0 %1382, %v973
      %v1384 = vpop.permute.xlu0 %1383
      %1387 = vset.pattern.permute.xlu0 0
      %1388 = vperm.xlu0 %1387, %v974
      %v1389 = vpop.permute.xlu0 %1388
      %1392 = vset.pattern.permute.xlu0 0
      %1393 = vperm.xlu0 %1392, %v975
      %v1394 = vpop.permute.xlu0 %1393
      %1397 = vset.pattern.permute.xlu0 0
      %1398 = vperm.xlu0 %1397, %v976
      %v1399 = vpop.permute.xlu0 %1398
      %1402 = vset.pattern.permute.xlu0 0
      %1403 = vperm.xlu0 %1402, %v977
      %v1404 = vpop.permute.xlu0 %1403
      %1407 = vset.pattern.permute.xlu0 0
      %1408 = vperm.xlu0 %1407, %v978
      %v1409 = vpop.permute.xlu0 %1408
      %1412 = vset.pattern.permute.xlu0 0
      %1413 = vperm.xlu0 %1412, %v979
      %v1414 = vpop.permute.xlu0 %1413
      %1417 = vset.pattern.permute.xlu0 0
      %1418 = vperm.xlu0 %1417, %v980
      %v1419 = vpop.permute.xlu0 %1418
      %1422 = vset.pattern.permute.xlu0 0
      %1423 = vperm.xlu0 %1422, %v981
      %v1424 = vpop.permute.xlu0 %1423
      %1427 = vset.pattern.permute.xlu0 0
      %1428 = vperm.xlu0 %1427, %v982
      %v1429 = vpop.permute.xlu0 %1428
      %1432 = vset.pattern.permute.xlu0 0
      %1433 = vperm.xlu0 %1432, %v983
      %v1434 = vpop.permute.xlu0 %1433
      %1437 = vset.pattern.permute.xlu0 0
      %1438 = vperm.xlu0 %1437, %v984
      %v1439 = vpop.permute.xlu0 %1438
      %1442 = vset.pattern.permute.xlu0 0
      %1443 = vperm.xlu0 %1442, %v985
      %v1444 = vpop.permute.xlu0 %1443
      %1447 = vset.pattern.permute.xlu0 0
      %1448 = vperm.xlu0 %1447, %v986
      %v1449 = vpop.permute.xlu0 %1448
      %1452 = vset.pattern.permute.xlu0 0
      %1453 = vperm.xlu0 %1452, %v987
      %v1454 = vpop.permute.xlu0 %1453
      %1457 = vset.pattern.permute.xlu0 0
      %1458 = vperm.xlu0 %1457, %v988
      %v1459 = vpop.permute.xlu0 %1458
      %1462 = vset.pattern.permute.xlu0 0
      %1463 = vperm.xlu0 %1462, %v989
      %v1464 = vpop.permute.xlu0 %1463
      %1467 = vset.pattern.permute.xlu0 0
      %1468 = vperm.xlu0 %1467, %v990
      %v1469 = vpop.permute.xlu0 %1468
      %1472 = vset.pattern.permute.xlu0 0
      %1473 = vperm.xlu0 %1472, %v991
      %v1474 = vpop.permute.xlu0 %1473
      %1477 = vset.pattern.permute.xlu0 0
      %1478 = vperm.xlu0 %1477, %v992
      %v1479 = vpop.permute.xlu0 %1478
      %1482 = vset.pattern.permute.xlu0 0
      %1483 = vperm.xlu0 %1482, %v993
      %v1484 = vpop.permute.xlu0 %1483
      %1487 = vset.pattern.permute.xlu0 0
      %1488 = vperm.xlu0 %1487, %v994
      %v1489 = vpop.permute.xlu0 %1488
      %1492 = vset.pattern.permute.xlu0 0
      %1493 = vperm.xlu0 %1492, %v995
      %v1494 = vpop.permute.xlu0 %1493
      %1497 = vset.pattern.permute.xlu0 0
      %1498 = vperm.xlu0 %1497, %v996
      %v1499 = vpop.permute.xlu0 %1498
      %1502 = vset.pattern.permute.xlu0 0
      %1503 = vperm.xlu0 %1502, %v997
      %v1504 = vpop.permute.xlu0 %1503
      %1507 = vset.pattern.permute.xlu0 0
      %1508 = vperm.xlu0 %1507, %v998
      %v1509 = vpop.permute.xlu0 %1508
      %1512 = vset.pattern.permute.xlu0 0
      %1513 = vperm.xlu0 %1512, %v999
      %v1514 = vpop.permute.xlu0 %1513
      %1517 = vset.pattern.permute.xlu0 0
      %1518 = vperm.xlu0 %1517, %v1000
      %v1519 = vpop.permute.xlu0 %1518
      %1522 = vset.pattern.permute.xlu0 0
      %1523 = vperm.xlu0 %1522, %v1001
      %v1524 = vpop.permute.xlu0 %1523
      %1527 = vset.pattern.permute.xlu0 0
      %1528 = vperm.xlu0 %1527, %v1002
      %v1529 = vpop.permute.xlu0 %1528
      %1532 = vset.pattern.permute.xlu0 0
      %1533 = vperm.xlu0 %1532, %v1003
      %v1534 = vpop.permute.xlu0 %1533
      %1537 = vset.pattern.permute.xlu0 0
      %1538 = vperm.xlu0 %1537, %v1004
      %v1539 = vpop.permute.xlu0 %1538
      %1542 = vset.pattern.permute.xlu0 0
      %1543 = vperm.xlu0 %1542, %v1005
      %v1544 = vpop.permute.xlu0 %1543
      %1547 = vset.pattern.permute.xlu0 0
      %1548 = vperm.xlu0 %1547, %v1006
      %v1549 = vpop.permute.xlu0 %1548
      %1552 = vset.pattern.permute.xlu0 0
      %1553 = vperm.xlu0 %1552, %v1007
      %v1554 = vpop.permute.xlu0 %1553
      %1557 = vset.pattern.permute.xlu0 0
      %1558 = vperm.xlu0 %1557, %v1008
      %v1559 = vpop.permute.xlu0 %1558
      %1562 = vset.pattern.permute.xlu0 0
      %1563 = vperm.xlu0 %1562, %v1009
      %v1564 = vpop.permute.xlu0 %1563
      %1567 = vset.pattern.permute.xlu0 0
      %1568 = vperm.xlu0 %1567, %v1010
      %v1569 = vpop.permute.xlu0 %1568
      %1572 = vset.pattern.permute.xlu0 0
      %1573 = vperm.xlu0 %1572, %v1011
      %v1574 = vpop.permute.xlu0 %1573
      %1577 = vset.pattern.permute.xlu0 0
      %1578 = vperm.xlu0 %1577, %v1012
      %v1579 = vpop.permute.xlu0 %1578
      %1582 = vset.pattern.permute.xlu0 0
      %1583 = vperm.xlu0 %1582, %v1013
      %v1584 = vpop.permute.xlu0 %1583
      %1587 = vset.pattern.permute.xlu0 0
      %1588 = vperm.xlu0 %1587, %v1014
      %v1589 = vpop.permute.xlu0 %1588
      %1592 = vset.pattern.permute.xlu0 0
      %1593 = vperm.xlu0 %1592, %v1015
      %v1594 = vpop.permute.xlu0 %1593
      %1597 = vset.pattern.permute.xlu0 0
      %1598 = vperm.xlu0 %1597, %v1016
      %v1599 = vpop.permute.xlu0 %1598
      %1602 = vset.pattern.permute.xlu0 0
      %1603 = vperm.xlu0 %1602, %v1017
      %v1604 = vpop.permute.xlu0 %1603
      %1607 = vset.pattern.permute.xlu0 0
      %1608 = vperm.xlu0 %1607, %v1018
      %v1609 = vpop.permute.xlu0 %1608
      %1612 = vset.pattern.permute.xlu0 0
      %1613 = vperm.xlu0 %1612, %v1019
      %v1614 = vpop.permute.xlu0 %1613
      %1617 = vset.pattern.permute.xlu0 0
      %1618 = vperm.xlu0 %1617, %v1020
      %v1619 = vpop.permute.xlu0 %1618
      %1622 = vset.pattern.permute.xlu0 0
      %1623 = vperm.xlu0 %1622, %v1021
      %v1624 = vpop.permute.xlu0 %1623
      %1627 = vset.pattern.permute.xlu0 0
      %1628 = vperm.xlu0 %1627, %v1022
      %v1629 = vpop.permute.xlu0 %1628
      %1632 = vset.pattern.permute.xlu0 0
      %1633 = vperm.xlu0 %1632, %v1023
      %v1634 = vpop.permute.xlu0 %1633
      %1637 = vset.pattern.permute.xlu0 0
      %1638 = vperm.xlu0 %1637, %v1024
      %v1639 = vpop.permute.xlu0 %1638
      %1642 = vset.pattern.permute.xlu0 0
      %1643 = vperm.xlu0 %1642, %v1025
      %v1644 = vpop.permute.xlu0 %1643
      %1647 = vset.pattern.permute.xlu0 0
      %1648 = vperm.xlu0 %1647, %v1026
      %v1649 = vpop.permute.xlu0 %1648
      %1652 = vset.pattern.permute.xlu0 0
      %1653 = vperm.xlu0 %1652, %v1027
      %v1654 = vpop.permute.xlu0 %1653
      %1657 = vset.pattern.permute.xlu0 0
      %1658 = vperm.xlu0 %1657, %v1028
      %v1659 = vpop.permute.xlu0 %1658
      %1662 = vset.pattern.permute.xlu0 0
      %1663 = vperm.xlu0 %1662, %v1029
      %v1664 = vpop.permute.xlu0 %1663
      %1667 = vset.pattern.permute.xlu0 0
      %1668 = vperm.xlu0 %1667, %v1030
      %v1669 = vpop.permute.xlu0 %1668
      %v1799 = vunpack.c.l.b16 %v767
      %v1800 = vunpack.c.l.b16 %v768
      %v1801 = vunpack.c.l.b16 %v769
      %v1802 = vunpack.c.l.b16 %v770
      %v1803 = vunpack.c.l.b16 %v771
      %v1804 = vunpack.c.l.b16 %v772
      %v1805 = vunpack.c.l.b16 %v773
      %v1806 = vunpack.c.l.b16 %v774
      %v1807 = vunpack.c.l.b16 %v775
      %v1808 = vunpack.c.l.b16 %v776
      %v1809 = vunpack.c.l.b16 %v777
      %v1810 = vunpack.c.l.b16 %v778
      %v1811 = vunpack.c.l.b16 %v779
      %v1812 = vunpack.c.l.b16 %v780
      %v1813 = vunpack.c.l.b16 %v781
      %v1814 = vunpack.c.l.b16 %v782
      %v1815 = vunpack.c.l.b16 %v783
      %v1816 = vunpack.c.l.b16 %v784
      %v1817 = vunpack.c.l.b16 %v785
      %v1818 = vunpack.c.l.b16 %v786
      %v1819 = vunpack.c.l.b16 %v787
      %v1820 = vunpack.c.l.b16 %v788
      %v1821 = vunpack.c.l.b16 %v789
      %v1822 = vunpack.c.l.b16 %v790
      %v1823 = vunpack.c.l.b16 %v791
      %v1824 = vunpack.c.l.b16 %v792
      %v1825 = vunpack.c.l.b16 %v793
      %v1826 = vunpack.c.l.b16 %v794
      %v1827 = vunpack.c.l.b16 %v795
      %v1828 = vunpack.c.l.b16 %v796
      %v1829 = vunpack.c.l.b16 %v797
      %v1830 = vunpack.c.l.b16 %v798
      %v1831 = vunpack.c.l.b16 %v799
      %v1832 = vunpack.c.l.b16 %v800
      %v1833 = vunpack.c.l.b16 %v801
      %v1834 = vunpack.c.l.b16 %v802
      %v1835 = vunpack.c.l.b16 %v803
      %v1836 = vunpack.c.l.b16 %v804
      %v1837 = vunpack.c.l.b16 %v805
      %v1838 = vunpack.c.l.b16 %v806
      %v1839 = vunpack.c.l.b16 %v807
      %v1840 = vunpack.c.l.b16 %v808
      %v1841 = vunpack.c.l.b16 %v809
      %v1842 = vunpack.c.l.b16 %v810
      %v1843 = vunpack.c.l.b16 %v811
      %v1844 = vunpack.c.l.b16 %v812
      %v1845 = vunpack.c.l.b16 %v813
      %v1846 = vunpack.c.l.b16 %v814
      %v1847 = vunpack.c.l.b16 %v815
      %v1848 = vunpack.c.l.b16 %v816
      %v1849 = vunpack.c.l.b16 %v817
      %v1850 = vunpack.c.l.b16 %v818
      %v1851 = vunpack.c.l.b16 %v819
      %v1852 = vunpack.c.l.b16 %v820
      %v1853 = vunpack.c.l.b16 %v821
      %v1854 = vunpack.c.l.b16 %v822
      %v1855 = vunpack.c.l.b16 %v823
      %v1856 = vunpack.c.l.b16 %v824
      %v1857 = vunpack.c.l.b16 %v825
      %v1858 = vunpack.c.l.b16 %v826
      %v1859 = vunpack.c.l.b16 %v827
      %v1860 = vunpack.c.l.b16 %v828
      %v1861 = vunpack.c.l.b16 %v829
      %v1862 = vunpack.c.l.b16 %v830
      %v1863 = vunpack.c.l.b16 %v831
      %v1864 = vunpack.c.l.b16 %v832
      %v1865 = vunpack.c.l.b16 %v833
      %v1866 = vunpack.c.l.b16 %v834
      %v1867 = vunpack.c.l.b16 %v835
      %v1868 = vunpack.c.l.b16 %v836
      %v1869 = vunpack.c.l.b16 %v837
      %v1870 = vunpack.c.l.b16 %v838
      %v1871 = vunpack.c.l.b16 %v839
      %v1872 = vunpack.c.l.b16 %v840
      %v1873 = vunpack.c.l.b16 %v841
      %v1874 = vunpack.c.l.b16 %v842
      %v1875 = vunpack.c.l.b16 %v843
      %v1876 = vunpack.c.l.b16 %v844
      %v1877 = vunpack.c.l.b16 %v845
      %v1878 = vunpack.c.l.b16 %v846
      %v1879 = vunpack.c.l.b16 %v847
      %v1880 = vunpack.c.l.b16 %v848
      %v1881 = vunpack.c.l.b16 %v849
      %v1882 = vunpack.c.l.b16 %v850
      %v1883 = vunpack.c.l.b16 %v851
      %v1884 = vunpack.c.l.b16 %v852
      %v1885 = vunpack.c.l.b16 %v853
      %v1886 = vunpack.c.l.b16 %v854
      %v1887 = vunpack.c.l.b16 %v855
      %v1888 = vunpack.c.l.b16 %v856
      %v1889 = vunpack.c.l.b16 %v857
      %v1890 = vunpack.c.l.b16 %v858
      %v1891 = vunpack.c.l.b16 %v859
      %v1892 = vunpack.c.l.b16 %v860
      %v1893 = vunpack.c.l.b16 %v861
      %v1894 = vunpack.c.l.b16 %v862
      %v1895 = vunpack.c.l.b16 %v863
      %v1896 = vunpack.c.l.b16 %v864
      %v1897 = vunpack.c.l.b16 %v865
      %v1898 = vunpack.c.l.b16 %v866
      %v1899 = vunpack.c.l.b16 %v867
      %v1900 = vunpack.c.l.b16 %v868
      %v1901 = vunpack.c.l.b16 %v869
      %v1902 = vunpack.c.l.b16 %v870
      %v1903 = vunpack.c.l.b16 %v871
      %v1904 = vunpack.c.l.b16 %v872
      %v1905 = vunpack.c.l.b16 %v873
      %v1906 = vunpack.c.l.b16 %v874
      %v1907 = vunpack.c.l.b16 %v875
      %v1908 = vunpack.c.l.b16 %v876
      %v1909 = vunpack.c.l.b16 %v877
      %v1910 = vunpack.c.l.b16 %v878
      %v1911 = vunpack.c.l.b16 %v879
      %v1912 = vunpack.c.l.b16 %v880
      %v1913 = vunpack.c.l.b16 %v881
      %v1914 = vunpack.c.l.b16 %v882
      %v1915 = vunpack.c.l.b16 %v883
      %v1916 = vunpack.c.l.b16 %v884
      %v1917 = vunpack.c.l.b16 %v885
      %v1918 = vunpack.c.l.b16 %v886
      %v1919 = vunpack.c.l.b16 %v887
      %v1920 = vunpack.c.l.b16 %v888
      %v1921 = vunpack.c.l.b16 %v889
      %v1922 = vunpack.c.l.b16 %v890
      %v1923 = vunpack.c.l.b16 %v891
      %v1924 = vunpack.c.l.b16 %v892
      %v1925 = vunpack.c.l.b16 %v893
      %v1926 = vunpack.c.l.b16 %v894
      %v1927 = vpack.c.b16 %v1800, %v1799
      %v1928 = vpack.c.b16 %v1802, %v1801
      %v1929 = vpack.c.b16 %v1804, %v1803
      %v1930 = vpack.c.b16 %v1806, %v1805
      %v1931 = vpack.c.b16 %v1808, %v1807
      %v1932 = vpack.c.b16 %v1810, %v1809
      %v1933 = vpack.c.b16 %v1812, %v1811
      %v1934 = vpack.c.b16 %v1814, %v1813
      %v1935 = vpack.c.b16 %v1816, %v1815
      %v1936 = vpack.c.b16 %v1818, %v1817
      %v1937 = vpack.c.b16 %v1820, %v1819
      %v1938 = vpack.c.b16 %v1822, %v1821
      %v1939 = vpack.c.b16 %v1824, %v1823
      %v1940 = vpack.c.b16 %v1826, %v1825
      %v1941 = vpack.c.b16 %v1828, %v1827
      %v1942 = vpack.c.b16 %v1830, %v1829
      %v1943 = vpack.c.b16 %v1832, %v1831
      %v1944 = vpack.c.b16 %v1834, %v1833
      %v1945 = vpack.c.b16 %v1836, %v1835
      %v1946 = vpack.c.b16 %v1838, %v1837
      %v1947 = vpack.c.b16 %v1840, %v1839
      %v1948 = vpack.c.b16 %v1842, %v1841
      %v1949 = vpack.c.b16 %v1844, %v1843
      %v1950 = vpack.c.b16 %v1846, %v1845
      %v1951 = vpack.c.b16 %v1848, %v1847
      %v1952 = vpack.c.b16 %v1850, %v1849
      %v1953 = vpack.c.b16 %v1852, %v1851
      %v1954 = vpack.c.b16 %v1854, %v1853
      %v1955 = vpack.c.b16 %v1856, %v1855
      %v1956 = vpack.c.b16 %v1858, %v1857
      %v1957 = vpack.c.b16 %v1860, %v1859
      %v1958 = vpack.c.b16 %v1862, %v1861
      %v1959 = vpack.c.b16 %v1864, %v1863
      %v1960 = vpack.c.b16 %v1866, %v1865
      %v1961 = vpack.c.b16 %v1868, %v1867
      %v1962 = vpack.c.b16 %v1870, %v1869
      %v1963 = vpack.c.b16 %v1872, %v1871
      %v1964 = vpack.c.b16 %v1874, %v1873
      %v1965 = vpack.c.b16 %v1876, %v1875
      %v1966 = vpack.c.b16 %v1878, %v1877
      %v1967 = vpack.c.b16 %v1880, %v1879
      %v1968 = vpack.c.b16 %v1882, %v1881
      %v1969 = vpack.c.b16 %v1884, %v1883
      %v1970 = vpack.c.b16 %v1886, %v1885
      %v1971 = vpack.c.b16 %v1888, %v1887
      %v1972 = vpack.c.b16 %v1890, %v1889
      %v1973 = vpack.c.b16 %v1892, %v1891
      %v1974 = vpack.c.b16 %v1894, %v1893
      %v1975 = vpack.c.b16 %v1896, %v1895
      %v1976 = vpack.c.b16 %v1898, %v1897
      %v1977 = vpack.c.b16 %v1900, %v1899
      %v1978 = vpack.c.b16 %v1902, %v1901
      %v1979 = vpack.c.b16 %v1904, %v1903
      %v1980 = vpack.c.b16 %v1906, %v1905
      %v1981 = vpack.c.b16 %v1908, %v1907
      %v1982 = vpack.c.b16 %v1910, %v1909
      %v1983 = vpack.c.b16 %v1912, %v1911
      %v1984 = vpack.c.b16 %v1914, %v1913
      %v1985 = vpack.c.b16 %v1916, %v1915
      %v1986 = vpack.c.b16 %v1918, %v1917
      %v1987 = vpack.c.b16 %v1920, %v1919
      %v1988 = vpack.c.b16 %v1922, %v1921
      %v1989 = vpack.c.b16 %v1924, %v1923
      %v1990 = vpack.c.b16 %v1926, %v1925
      %2055 = vmatprep.subr.bf16.mxu0 0
      %2056 = vmatpush1.bf16.msra.mxu0 %v902
      %2057 = vmatprep.subr.bf16.mxu0 0
      %2058 = vmatpush1.bf16.msra.mxu0 %v901
      %2059 = vmatprep.subr.bf16.mxu0 0
      %2060 = vmatpush1.bf16.msra.mxu0 %v900
      %2061 = vmatprep.subr.bf16.mxu0 0
      %2062 = vmatpush1.bf16.msra.mxu0 %v899
      %2063 = vmatprep.subr.bf16.mxu0 0
      %2064 = vmatpush1.bf16.msra.mxu0 %v898
      %2065 = vmatprep.subr.bf16.mxu0 0
      %2066 = vmatpush1.bf16.msra.mxu0 %v897
      %2067 = vmatprep.subr.bf16.mxu0 0
      %2068 = vmatpush1.bf16.msra.mxu0 %v896
      %2069 = vmatprep.subr.bf16.mxu0 0
      %2070 = vmatpush1.bf16.msra.mxu0 %v895
      %2071 = vmatprep.subr.bf16.mxu0 0
      %2072 = vmatpush2.bf16.msra.mxu0 0
      %2073 = vmatprep.subr.bf16.mxu0 0
      %2074 = vmatpush2.bf16.msra.mxu0 0
      %2075 = vmatprep.subr.bf16.mxu0 0
      %2076 = vmatpush2.bf16.msra.mxu0 0
      %2077 = vmatprep.subr.bf16.mxu0 0
      %2078 = vmatpush2.bf16.msra.mxu0 0
      %2079 = vmatprep.subr.bf16.mxu0 0
      %2080 = vmatpush2.bf16.msra.mxu0 0
      %2081 = vmatprep.subr.bf16.mxu0 0
      %2082 = vmatpush2.bf16.msra.mxu0 0
      %2083 = vmatprep.subr.bf16.mxu0 0
      %2084 = vmatpush2.bf16.msra.mxu0 0
      %2085 = vmatprep.subr.bf16.mxu0 0
      %2086 = vmatpush2.bf16.msra.mxu0 0
      %2087 = vmatprep.mubr.bf16.mxu0 0
      %2088 = vmatmul.mubr.bf16.gmra.mxu0 %v1927
      %v2089 = vpop.f32.mrf.mxu0
      %v2090 = vadd.f32 %v1034, %v2089
      %v2091 = vpop.f32.mrf.mxu0
      %v2092 = vpop.f32.mrf.mxu0
      %v2093 = vadd.f32 %v1039, %v2092
      %v2094 = vpop.f32.mrf.mxu0
      %2095 = vmatprep.mubr.bf16.mxu0 0
      %2096 = vmatmul.mubr.bf16.gmra.mxu0 %v1928
      %v2097 = vpop.f32.mrf.mxu0
      %v2098 = vadd.f32 %v1044, %v2097
      %v2099 = vpop.f32.mrf.mxu0
      %v2100 = vpop.f32.mrf.mxu0
      %v2101 = vadd.f32 %v1049, %v2100
      %v2102 = vpop.f32.mrf.mxu0
      %2103 = vmatprep.mubr.bf16.mxu0 0
      %2104 = vmatmul.mubr.bf16.gmra.mxu0 %v1929
      %v2105 = vpop.f32.mrf.mxu0
      %v2106 = vadd.f32 %v1054, %v2105
      %v2107 = vpop.f32.mrf.mxu0
      %v2108 = vpop.f32.mrf.mxu0
      %v2109 = vadd.f32 %v1059, %v2108
      %v2110 = vpop.f32.mrf.mxu0
      %2111 = vmatprep.mubr.bf16.mxu0 0
      %2112 = vmatmul.mubr.bf16.gmra.mxu0 %v1930
      %v2113 = vpop.f32.mrf.mxu0
      %v2114 = vadd.f32 %v1064, %v2113
      %v2115 = vpop.f32.mrf.mxu0
      %v2116 = vpop.f32.mrf.mxu0
      %v2117 = vadd.f32 %v1069, %v2116
      %v2118 = vpop.f32.mrf.mxu0
      %2119 = vmatprep.mubr.bf16.mxu0 0
      %2120 = vmatmul.mubr.bf16.gmra.mxu0 %v1931
      %v2121 = vpop.f32.mrf.mxu0
      %v2122 = vadd.f32 %v1074, %v2121
      %v2123 = vpop.f32.mrf.mxu0
      %v2124 = vpop.f32.mrf.mxu0
      %v2125 = vadd.f32 %v1079, %v2124
      %v2126 = vpop.f32.mrf.mxu0
      %2127 = vmatprep.mubr.bf16.mxu0 0
      %2128 = vmatmul.mubr.bf16.gmra.mxu0 %v1932
      %v2129 = vpop.f32.mrf.mxu0
      %v2130 = vadd.f32 %v1084, %v2129
      %v2131 = vpop.f32.mrf.mxu0
      %v2132 = vpop.f32.mrf.mxu0
      %v2133 = vadd.f32 %v1089, %v2132
      %v2134 = vpop.f32.mrf.mxu0
      %2135 = vmatprep.mubr.bf16.mxu0 0
      %2136 = vmatmul.mubr.bf16.gmra.mxu0 %v1933
      %v2137 = vpop.f32.mrf.mxu0
      %v2138 = vadd.f32 %v1094, %v2137
      %v2139 = vpop.f32.mrf.mxu0
      %v2140 = vpop.f32.mrf.mxu0
      %v2141 = vadd.f32 %v1099, %v2140
      %v2142 = vpop.f32.mrf.mxu0
      %2143 = vmatprep.mubr.bf16.mxu0 0
      %2144 = vmatmul.mubr.bf16.gmra.mxu0 %v1934
      %v2145 = vpop.f32.mrf.mxu0
      %v2146 = vadd.f32 %v1104, %v2145
      %v2147 = vpop.f32.mrf.mxu0
      %v2148 = vpop.f32.mrf.mxu0
      %v2149 = vadd.f32 %v1109, %v2148
      %v2150 = vpop.f32.mrf.mxu0
      %2151 = vmatprep.mubr.bf16.mxu0 0
      %2152 = vmatmul.mubr.bf16.gmra.mxu0 %v1935
      %v2153 = vpop.f32.mrf.mxu0
      %v2154 = vadd.f32 %v1114, %v2153
      %v2155 = vpop.f32.mrf.mxu0
      %v2156 = vpop.f32.mrf.mxu0
      %v2157 = vadd.f32 %v1119, %v2156
      %v2158 = vpop.f32.mrf.mxu0
      %2159 = vmatprep.mubr.bf16.mxu0 0
      %2160 = vmatmul.mubr.bf16.gmra.mxu0 %v1936
      %v2161 = vpop.f32.mrf.mxu0
      %v2162 = vadd.f32 %v1124, %v2161
      %v2163 = vpop.f32.mrf.mxu0
      %v2164 = vpop.f32.mrf.mxu0
      %v2165 = vadd.f32 %v1129, %v2164
      %v2166 = vpop.f32.mrf.mxu0
      %2167 = vmatprep.mubr.bf16.mxu0 0
      %2168 = vmatmul.mubr.bf16.gmra.mxu0 %v1937
      %v2169 = vpop.f32.mrf.mxu0
      %v2170 = vadd.f32 %v1134, %v2169
      %v2171 = vpop.f32.mrf.mxu0
      %v2172 = vpop.f32.mrf.mxu0
      %v2173 = vadd.f32 %v1139, %v2172
      %v2174 = vpop.f32.mrf.mxu0
      %2175 = vmatprep.mubr.bf16.mxu0 0
      %2176 = vmatmul.mubr.bf16.gmra.mxu0 %v1938
      %v2177 = vpop.f32.mrf.mxu0
      %v2178 = vadd.f32 %v1144, %v2177
      %v2179 = vpop.f32.mrf.mxu0
      %v2180 = vpop.f32.mrf.mxu0
      %v2181 = vadd.f32 %v1149, %v2180
      %v2182 = vpop.f32.mrf.mxu0
      %2183 = vmatprep.mubr.bf16.mxu0 0
      %2184 = vmatmul.mubr.bf16.gmra.mxu0 %v1939
      %v2185 = vpop.f32.mrf.mxu0
      %v2186 = vadd.f32 %v1154, %v2185
      %v2187 = vpop.f32.mrf.mxu0
      %v2188 = vpop.f32.mrf.mxu0
      %v2189 = vadd.f32 %v1159, %v2188
      %v2190 = vpop.f32.mrf.mxu0
      %2191 = vmatprep.mubr.bf16.mxu0 0
      %2192 = vmatmul.mubr.bf16.gmra.mxu0 %v1940
      %v2193 = vpop.f32.mrf.mxu0
      %v2194 = vadd.f32 %v1164, %v2193
      %v2195 = vpop.f32.mrf.mxu0
      %v2196 = vpop.f32.mrf.mxu0
      %v2197 = vadd.f32 %v1169, %v2196
      %v2198 = vpop.f32.mrf.mxu0
      %2199 = vmatprep.mubr.bf16.mxu0 0
      %2200 = vmatmul.mubr.bf16.gmra.mxu0 %v1941
      %v2201 = vpop.f32.mrf.mxu0
      %v2202 = vadd.f32 %v1174, %v2201
      %v2203 = vpop.f32.mrf.mxu0
      %v2204 = vpop.f32.mrf.mxu0
      %v2205 = vadd.f32 %v1179, %v2204
      %v2206 = vpop.f32.mrf.mxu0
      %2207 = vmatprep.mubr.bf16.mxu0 0
      %2208 = vmatmul.mubr.bf16.gmra.mxu0 %v1942
      %v2209 = vpop.f32.mrf.mxu0
      %v2210 = vadd.f32 %v1184, %v2209
      %v2211 = vpop.f32.mrf.mxu0
      %v2212 = vpop.f32.mrf.mxu0
      %v2213 = vadd.f32 %v1189, %v2212
      %v2214 = vpop.f32.mrf.mxu0
      %2215 = vmatprep.mubr.bf16.mxu0 0
      %2216 = vmatmul.mubr.bf16.gmra.mxu0 %v1943
      %v2217 = vpop.f32.mrf.mxu0
      %v2218 = vadd.f32 %v1194, %v2217
      %v2219 = vpop.f32.mrf.mxu0
      %v2220 = vpop.f32.mrf.mxu0
      %v2221 = vadd.f32 %v1199, %v2220
      %v2222 = vpop.f32.mrf.mxu0
      %2223 = vmatprep.mubr.bf16.mxu0 0
      %2224 = vmatmul.mubr.bf16.gmra.mxu0 %v1944
      %v2225 = vpop.f32.mrf.mxu0
      %v2226 = vadd.f32 %v1204, %v2225
      %v2227 = vpop.f32.mrf.mxu0
      %v2228 = vpop.f32.mrf.mxu0
      %v2229 = vadd.f32 %v1209, %v2228
      %v2230 = vpop.f32.mrf.mxu0
      %2231 = vmatprep.mubr.bf16.mxu0 0
      %2232 = vmatmul.mubr.bf16.gmra.mxu0 %v1945
      %v2233 = vpop.f32.mrf.mxu0
      %v2234 = vadd.f32 %v1214, %v2233
      %v2235 = vpop.f32.mrf.mxu0
      %v2236 = vpop.f32.mrf.mxu0
      %v2237 = vadd.f32 %v1219, %v2236
      %v2238 = vpop.f32.mrf.mxu0
      %2239 = vmatprep.mubr.bf16.mxu0 0
      %2240 = vmatmul.mubr.bf16.gmra.mxu0 %v1946
      %v2241 = vpop.f32.mrf.mxu0
      %v2242 = vadd.f32 %v1224, %v2241
      %v2243 = vpop.f32.mrf.mxu0
      %v2244 = vpop.f32.mrf.mxu0
      %v2245 = vadd.f32 %v1229, %v2244
      %v2246 = vpop.f32.mrf.mxu0
      %2247 = vmatprep.mubr.bf16.mxu0 0
      %2248 = vmatmul.mubr.bf16.gmra.mxu0 %v1947
      %v2249 = vpop.f32.mrf.mxu0
      %v2250 = vadd.f32 %v1234, %v2249
      %v2251 = vpop.f32.mrf.mxu0
      %v2252 = vpop.f32.mrf.mxu0
      %v2253 = vadd.f32 %v1239, %v2252
      %v2254 = vpop.f32.mrf.mxu0
      %2255 = vmatprep.mubr.bf16.mxu0 0
      %2256 = vmatmul.mubr.bf16.gmra.mxu0 %v1948
      %v2257 = vpop.f32.mrf.mxu0
      %v2258 = vadd.f32 %v1244, %v2257
      %v2259 = vpop.f32.mrf.mxu0
      %v2260 = vpop.f32.mrf.mxu0
      %v2261 = vadd.f32 %v1249, %v2260
      %v2262 = vpop.f32.mrf.mxu0
      %2263 = vmatprep.mubr.bf16.mxu0 0
      %2264 = vmatmul.mubr.bf16.gmra.mxu0 %v1949
      %v2265 = vpop.f32.mrf.mxu0
      %v2266 = vadd.f32 %v1254, %v2265
      %v2267 = vpop.f32.mrf.mxu0
      %v2268 = vpop.f32.mrf.mxu0
      %v2269 = vadd.f32 %v1259, %v2268
      %v2270 = vpop.f32.mrf.mxu0
      %2271 = vmatprep.mubr.bf16.mxu0 0
      %2272 = vmatmul.mubr.bf16.gmra.mxu0 %v1950
      %v2273 = vpop.f32.mrf.mxu0
      %v2274 = vadd.f32 %v1264, %v2273
      %v2275 = vpop.f32.mrf.mxu0
      %v2276 = vpop.f32.mrf.mxu0
      %v2277 = vadd.f32 %v1269, %v2276
      %v2278 = vpop.f32.mrf.mxu0
      %2279 = vmatprep.mubr.bf16.mxu0 0
      %2280 = vmatmul.mubr.bf16.gmra.mxu0 %v1951
      %v2281 = vpop.f32.mrf.mxu0
      %v2282 = vadd.f32 %v1274, %v2281
      %v2283 = vpop.f32.mrf.mxu0
      %v2284 = vpop.f32.mrf.mxu0
      %v2285 = vadd.f32 %v1279, %v2284
      %v2286 = vpop.f32.mrf.mxu0
      %2287 = vmatprep.mubr.bf16.mxu0 0
      %2288 = vmatmul.mubr.bf16.gmra.mxu0 %v1952
      %v2289 = vpop.f32.mrf.mxu0
      %v2290 = vadd.f32 %v1284, %v2289
      %v2291 = vpop.f32.mrf.mxu0
      %v2292 = vpop.f32.mrf.mxu0
      %v2293 = vadd.f32 %v1289, %v2292
      %v2294 = vpop.f32.mrf.mxu0
      %2295 = vmatprep.mubr.bf16.mxu0 0
      %2296 = vmatmul.mubr.bf16.gmra.mxu0 %v1953
      %v2297 = vpop.f32.mrf.mxu0
      %v2298 = vadd.f32 %v1294, %v2297
      %v2299 = vpop.f32.mrf.mxu0
      %v2300 = vpop.f32.mrf.mxu0
      %v2301 = vadd.f32 %v1299, %v2300
      %v2302 = vpop.f32.mrf.mxu0
      %2303 = vmatprep.mubr.bf16.mxu0 0
      %2304 = vmatmul.mubr.bf16.gmra.mxu0 %v1954
      %v2305 = vpop.f32.mrf.mxu0
      %v2306 = vadd.f32 %v1304, %v2305
      %v2307 = vpop.f32.mrf.mxu0
      %v2308 = vpop.f32.mrf.mxu0
      %v2309 = vadd.f32 %v1309, %v2308
      %v2310 = vpop.f32.mrf.mxu0
      %2311 = vmatprep.mubr.bf16.mxu0 0
      %2312 = vmatmul.mubr.bf16.gmra.mxu0 %v1955
      %v2313 = vpop.f32.mrf.mxu0
      %v2314 = vadd.f32 %v1314, %v2313
      %v2315 = vpop.f32.mrf.mxu0
      %v2316 = vpop.f32.mrf.mxu0
      %v2317 = vadd.f32 %v1319, %v2316
      %v2318 = vpop.f32.mrf.mxu0
      %2319 = vmatprep.mubr.bf16.mxu0 0
      %2320 = vmatmul.mubr.bf16.gmra.mxu0 %v1956
      %v2321 = vpop.f32.mrf.mxu0
      %v2322 = vadd.f32 %v1324, %v2321
      %v2323 = vpop.f32.mrf.mxu0
      %v2324 = vpop.f32.mrf.mxu0
      %v2325 = vadd.f32 %v1329, %v2324
      %v2326 = vpop.f32.mrf.mxu0
      %2327 = vmatprep.mubr.bf16.mxu0 0
      %2328 = vmatmul.mubr.bf16.gmra.mxu0 %v1957
      %v2329 = vpop.f32.mrf.mxu0
      %v2330 = vadd.f32 %v1334, %v2329
      %v2331 = vpop.f32.mrf.mxu0
      %v2332 = vpop.f32.mrf.mxu0
      %v2333 = vadd.f32 %v1339, %v2332
      %v2334 = vpop.f32.mrf.mxu0
      %2335 = vmatprep.mubr.bf16.mxu0 0
      %2336 = vmatmul.mubr.bf16.gmra.mxu0 %v1958
      %v2337 = vpop.f32.mrf.mxu0
      %v2338 = vadd.f32 %v1344, %v2337
      %v2339 = vpop.f32.mrf.mxu0
      %v2340 = vpop.f32.mrf.mxu0
      %v2341 = vadd.f32 %v1349, %v2340
      %v2342 = vpop.f32.mrf.mxu0
      %2343 = vmatprep.mubr.bf16.mxu0 0
      %2344 = vmatmul.mubr.bf16.gmra.mxu0 %v1959
      %v2345 = vpop.f32.mrf.mxu0
      %v2346 = vadd.f32 %v1354, %v2345
      %v2347 = vpop.f32.mrf.mxu0
      %v2348 = vpop.f32.mrf.mxu0
      %v2349 = vadd.f32 %v1359, %v2348
      %v2350 = vpop.f32.mrf.mxu0
      %2351 = vmatprep.mubr.bf16.mxu0 0
      %2352 = vmatmul.mubr.bf16.gmra.mxu0 %v1960
      %v2353 = vpop.f32.mrf.mxu0
      %v2354 = vadd.f32 %v1364, %v2353
      %v2355 = vpop.f32.mrf.mxu0
      %v2356 = vpop.f32.mrf.mxu0
      %v2357 = vadd.f32 %v1369, %v2356
      %v2358 = vpop.f32.mrf.mxu0
      %2359 = vmatprep.mubr.bf16.mxu0 0
      %2360 = vmatmul.mubr.bf16.gmra.mxu0 %v1961
      %v2361 = vpop.f32.mrf.mxu0
      %v2362 = vadd.f32 %v1374, %v2361
      %v2363 = vpop.f32.mrf.mxu0
      %v2364 = vpop.f32.mrf.mxu0
      %v2365 = vadd.f32 %v1379, %v2364
      %v2366 = vpop.f32.mrf.mxu0
      %2367 = vmatprep.mubr.bf16.mxu0 0
      %2368 = vmatmul.mubr.bf16.gmra.mxu0 %v1962
      %v2369 = vpop.f32.mrf.mxu0
      %v2370 = vadd.f32 %v1384, %v2369
      %v2371 = vpop.f32.mrf.mxu0
      %v2372 = vpop.f32.mrf.mxu0
      %v2373 = vadd.f32 %v1389, %v2372
      %v2374 = vpop.f32.mrf.mxu0
      %2375 = vmatprep.mubr.bf16.mxu0 0
      %2376 = vmatmul.mubr.bf16.gmra.mxu0 %v1963
      %v2377 = vpop.f32.mrf.mxu0
      %v2378 = vadd.f32 %v1394, %v2377
      %v2379 = vpop.f32.mrf.mxu0
      %v2380 = vpop.f32.mrf.mxu0
      %v2381 = vadd.f32 %v1399, %v2380
      %v2382 = vpop.f32.mrf.mxu0
      %2383 = vmatprep.mubr.bf16.mxu0 0
      %2384 = vmatmul.mubr.bf16.gmra.mxu0 %v1964
      %v2385 = vpop.f32.mrf.mxu0
      %v2386 = vadd.f32 %v1404, %v2385
      %v2387 = vpop.f32.mrf.mxu0
      %v2388 = vpop.f32.mrf.mxu0
      %v2389 = vadd.f32 %v1409, %v2388
      %v2390 = vpop.f32.mrf.mxu0
      %2391 = vmatprep.mubr.bf16.mxu0 0
      %2392 = vmatmul.mubr.bf16.gmra.mxu0 %v1965
      %v2393 = vpop.f32.mrf.mxu0
      %v2394 = vadd.f32 %v1414, %v2393
      %v2395 = vpop.f32.mrf.mxu0
      %v2396 = vpop.f32.mrf.mxu0
      %v2397 = vadd.f32 %v1419, %v2396
      %v2398 = vpop.f32.mrf.mxu0
      %2399 = vmatprep.mubr.bf16.mxu0 0
      %2400 = vmatmul.mubr.bf16.gmra.mxu0 %v1966
      %v2401 = vpop.f32.mrf.mxu0
      %v2402 = vadd.f32 %v1424, %v2401
      %v2403 = vpop.f32.mrf.mxu0
      %v2404 = vpop.f32.mrf.mxu0
      %v2405 = vadd.f32 %v1429, %v2404
      %v2406 = vpop.f32.mrf.mxu0
      %2407 = vmatprep.mubr.bf16.mxu0 0
      %2408 = vmatmul.mubr.bf16.gmra.mxu0 %v1967
      %v2409 = vpop.f32.mrf.mxu0
      %v2410 = vadd.f32 %v1434, %v2409
      %v2411 = vpop.f32.mrf.mxu0
      %v2412 = vpop.f32.mrf.mxu0
      %v2413 = vadd.f32 %v1439, %v2412
      %v2414 = vpop.f32.mrf.mxu0
      %2415 = vmatprep.mubr.bf16.mxu0 0
      %2416 = vmatmul.mubr.bf16.gmra.mxu0 %v1968
      %v2417 = vpop.f32.mrf.mxu0
      %v2418 = vadd.f32 %v1444, %v2417
      %v2419 = vpop.f32.mrf.mxu0
      %v2420 = vpop.f32.mrf.mxu0
      %v2421 = vadd.f32 %v1449, %v2420
      %v2422 = vpop.f32.mrf.mxu0
      %2423 = vmatprep.mubr.bf16.mxu0 0
      %2424 = vmatmul.mubr.bf16.gmra.mxu0 %v1969
      %v2425 = vpop.f32.mrf.mxu0
      %v2426 = vadd.f32 %v1454, %v2425
      %v2427 = vpop.f32.mrf.mxu0
      %v2428 = vpop.f32.mrf.mxu0
      %v2429 = vadd.f32 %v1459, %v2428
      %v2430 = vpop.f32.mrf.mxu0
      %2431 = vmatprep.mubr.bf16.mxu0 0
      %2432 = vmatmul.mubr.bf16.gmra.mxu0 %v1970
      %v2433 = vpop.f32.mrf.mxu0
      %v2434 = vadd.f32 %v1464, %v2433
      %v2435 = vpop.f32.mrf.mxu0
      %v2436 = vpop.f32.mrf.mxu0
      %v2437 = vadd.f32 %v1469, %v2436
      %v2438 = vpop.f32.mrf.mxu0
      %2439 = vmatprep.mubr.bf16.mxu0 0
      %2440 = vmatmul.mubr.bf16.gmra.mxu0 %v1971
      %v2441 = vpop.f32.mrf.mxu0
      %v2442 = vadd.f32 %v1474, %v2441
      %v2443 = vpop.f32.mrf.mxu0
      %v2444 = vpop.f32.mrf.mxu0
      %v2445 = vadd.f32 %v1479, %v2444
      %v2446 = vpop.f32.mrf.mxu0
      %2447 = vmatprep.mubr.bf16.mxu0 0
      %2448 = vmatmul.mubr.bf16.gmra.mxu0 %v1972
      %v2449 = vpop.f32.mrf.mxu0
      %v2450 = vadd.f32 %v1484, %v2449
      %v2451 = vpop.f32.mrf.mxu0
      %v2452 = vpop.f32.mrf.mxu0
      %v2453 = vadd.f32 %v1489, %v2452
      %v2454 = vpop.f32.mrf.mxu0
      %2455 = vmatprep.mubr.bf16.mxu0 0
      %2456 = vmatmul.mubr.bf16.gmra.mxu0 %v1973
      %v2457 = vpop.f32.mrf.mxu0
      %v2458 = vadd.f32 %v1494, %v2457
      %v2459 = vpop.f32.mrf.mxu0
      %v2460 = vpop.f32.mrf.mxu0
      %v2461 = vadd.f32 %v1499, %v2460
      %v2462 = vpop.f32.mrf.mxu0
      %2463 = vmatprep.mubr.bf16.mxu0 0
      %2464 = vmatmul.mubr.bf16.gmra.mxu0 %v1974
      %v2465 = vpop.f32.mrf.mxu0
      %v2466 = vadd.f32 %v1504, %v2465
      %v2467 = vpop.f32.mrf.mxu0
      %v2468 = vpop.f32.mrf.mxu0
      %v2469 = vadd.f32 %v1509, %v2468
      %v2470 = vpop.f32.mrf.mxu0
      %2471 = vmatprep.mubr.bf16.mxu0 0
      %2472 = vmatmul.mubr.bf16.gmra.mxu0 %v1975
      %v2473 = vpop.f32.mrf.mxu0
      %v2474 = vadd.f32 %v1514, %v2473
      %v2475 = vpop.f32.mrf.mxu0
      %v2476 = vpop.f32.mrf.mxu0
      %v2477 = vadd.f32 %v1519, %v2476
      %v2478 = vpop.f32.mrf.mxu0
      %2479 = vmatprep.mubr.bf16.mxu0 0
      %2480 = vmatmul.mubr.bf16.gmra.mxu0 %v1976
      %v2481 = vpop.f32.mrf.mxu0
      %v2482 = vadd.f32 %v1524, %v2481
      %v2483 = vpop.f32.mrf.mxu0
      %v2484 = vpop.f32.mrf.mxu0
      %v2485 = vadd.f32 %v1529, %v2484
      %v2486 = vpop.f32.mrf.mxu0
      %2487 = vmatprep.mubr.bf16.mxu0 0
      %2488 = vmatmul.mubr.bf16.gmra.mxu0 %v1977
      %v2489 = vpop.f32.mrf.mxu0
      %v2490 = vadd.f32 %v1534, %v2489
      %v2491 = vpop.f32.mrf.mxu0
      %v2492 = vpop.f32.mrf.mxu0
      %v2493 = vadd.f32 %v1539, %v2492
      %v2494 = vpop.f32.mrf.mxu0
      %2495 = vmatprep.mubr.bf16.mxu0 0
      %2496 = vmatmul.mubr.bf16.gmra.mxu0 %v1978
      %v2497 = vpop.f32.mrf.mxu0
      %v2498 = vadd.f32 %v1544, %v2497
      %v2499 = vpop.f32.mrf.mxu0
      %v2500 = vpop.f32.mrf.mxu0
      %v2501 = vadd.f32 %v1549, %v2500
      %v2502 = vpop.f32.mrf.mxu0
      %2503 = vmatprep.mubr.bf16.mxu0 0
      %2504 = vmatmul.mubr.bf16.gmra.mxu0 %v1979
      %v2505 = vpop.f32.mrf.mxu0
      %v2506 = vadd.f32 %v1554, %v2505
      %v2507 = vpop.f32.mrf.mxu0
      %v2508 = vpop.f32.mrf.mxu0
      %v2509 = vadd.f32 %v1559, %v2508
      %v2510 = vpop.f32.mrf.mxu0
      %2511 = vmatprep.mubr.bf16.mxu0 0
      %2512 = vmatmul.mubr.bf16.gmra.mxu0 %v1980
      %v2513 = vpop.f32.mrf.mxu0
      %v2514 = vadd.f32 %v1564, %v2513
      %v2515 = vpop.f32.mrf.mxu0
      %v2516 = vpop.f32.mrf.mxu0
      %v2517 = vadd.f32 %v1569, %v2516
      %v2518 = vpop.f32.mrf.mxu0
      %2519 = vmatprep.mubr.bf16.mxu0 0
      %2520 = vmatmul.mubr.bf16.gmra.mxu0 %v1981
      %v2521 = vpop.f32.mrf.mxu0
      %v2522 = vadd.f32 %v1574, %v2521
      %v2523 = vpop.f32.mrf.mxu0
      %v2524 = vpop.f32.mrf.mxu0
      %v2525 = vadd.f32 %v1579, %v2524
      %v2526 = vpop.f32.mrf.mxu0
      %2527 = vmatprep.mubr.bf16.mxu0 0
      %2528 = vmatmul.mubr.bf16.gmra.mxu0 %v1982
      %v2529 = vpop.f32.mrf.mxu0
      %v2530 = vadd.f32 %v1584, %v2529
      %v2531 = vpop.f32.mrf.mxu0
      %v2532 = vpop.f32.mrf.mxu0
      %v2533 = vadd.f32 %v1589, %v2532
      %v2534 = vpop.f32.mrf.mxu0
      %2535 = vmatprep.mubr.bf16.mxu0 0
      %2536 = vmatmul.mubr.bf16.gmra.mxu0 %v1983
      %v2537 = vpop.f32.mrf.mxu0
      %v2538 = vadd.f32 %v1594, %v2537
      %v2539 = vpop.f32.mrf.mxu0
      %v2540 = vpop.f32.mrf.mxu0
      %v2541 = vadd.f32 %v1599, %v2540
      %v2542 = vpop.f32.mrf.mxu0
      %2543 = vmatprep.mubr.bf16.mxu0 0
      %2544 = vmatmul.mubr.bf16.gmra.mxu0 %v1984
      %v2545 = vpop.f32.mrf.mxu0
      %v2546 = vadd.f32 %v1604, %v2545
      %v2547 = vpop.f32.mrf.mxu0
      %v2548 = vpop.f32.mrf.mxu0
      %v2549 = vadd.f32 %v1609, %v2548
      %v2550 = vpop.f32.mrf.mxu0
      %2551 = vmatprep.mubr.bf16.mxu0 0
      %2552 = vmatmul.mubr.bf16.gmra.mxu0 %v1985
      %v2553 = vpop.f32.mrf.mxu0
      %v2554 = vadd.f32 %v1614, %v2553
      %v2555 = vpop.f32.mrf.mxu0
      %v2556 = vpop.f32.mrf.mxu0
      %v2557 = vadd.f32 %v1619, %v2556
      %v2558 = vpop.f32.mrf.mxu0
      %2559 = vmatprep.mubr.bf16.mxu0 0
      %2560 = vmatmul.mubr.bf16.gmra.mxu0 %v1986
      %v2561 = vpop.f32.mrf.mxu0
      %v2562 = vadd.f32 %v1624, %v2561
      %v2563 = vpop.f32.mrf.mxu0
      %v2564 = vpop.f32.mrf.mxu0
      %v2565 = vadd.f32 %v1629, %v2564
      %v2566 = vpop.f32.mrf.mxu0
      %2567 = vmatprep.mubr.bf16.mxu0 0
      %2568 = vmatmul.mubr.bf16.gmra.mxu0 %v1987
      %v2569 = vpop.f32.mrf.mxu0
      %v2570 = vadd.f32 %v1634, %v2569
      %v2571 = vpop.f32.mrf.mxu0
      %v2572 = vpop.f32.mrf.mxu0
      %v2573 = vadd.f32 %v1639, %v2572
      %v2574 = vpop.f32.mrf.mxu0
      %2575 = vmatprep.mubr.bf16.mxu0 0
      %2576 = vmatmul.mubr.bf16.gmra.mxu0 %v1988
      %v2577 = vpop.f32.mrf.mxu0
      %v2578 = vadd.f32 %v1644, %v2577
      %v2579 = vpop.f32.mrf.mxu0
      %v2580 = vpop.f32.mrf.mxu0
      %v2581 = vadd.f32 %v1649, %v2580
      %v2582 = vpop.f32.mrf.mxu0
      %2583 = vmatprep.mubr.bf16.mxu0 0
      %2584 = vmatmul.mubr.bf16.gmra.mxu0 %v1989
      %v2585 = vpop.f32.mrf.mxu0
      %v2586 = vadd.f32 %v1654, %v2585
      %v2587 = vpop.f32.mrf.mxu0
      %v2588 = vpop.f32.mrf.mxu0
      %v2589 = vadd.f32 %v1659, %v2588
      %v2590 = vpop.f32.mrf.mxu0
      %2591 = vmatprep.mubr.bf16.mxu0 0
      %2592 = vmatmul.mubr.bf16.gmra.mxu0 %v1990
      %v2593 = vpop.f32.mrf.mxu0
      %v2594 = vadd.f32 %v1664, %v2593
      %v2595 = vpop.f32.mrf.mxu0
      %v2596 = vpop.f32.mrf.mxu0
      %v2597 = vadd.f32 %v1669, %v2596
      %v2598 = vpop.f32.mrf.mxu0
      %2599 = vdwg.mxu0
      %v2600 = vmax.f32 %v2090, 0.0
      %v2601 = vmax.f32 %v2093, 0.0
      %v2602 = vmax.f32 %v2098, 0.0
      %v2603 = vmax.f32 %v2101, 0.0
      %v2604 = vmax.f32 %v2106, 0.0
      %v2605 = vmax.f32 %v2109, 0.0
      %v2606 = vmax.f32 %v2114, 0.0
      %v2607 = vmax.f32 %v2117, 0.0
      %v2608 = vmax.f32 %v2122, 0.0
      %v2609 = vmax.f32 %v2125, 0.0
      %v2610 = vmax.f32 %v2130, 0.0
      %v2611 = vmax.f32 %v2133, 0.0
      %v2612 = vmax.f32 %v2138, 0.0
      %v2613 = vmax.f32 %v2141, 0.0
      %v2614 = vmax.f32 %v2146, 0.0
      %v2615 = vmax.f32 %v2149, 0.0
      %v2616 = vmax.f32 %v2154, 0.0
      %v2617 = vmax.f32 %v2157, 0.0
      %v2618 = vmax.f32 %v2162, 0.0
      %v2619 = vmax.f32 %v2165, 0.0
      %v2620 = vmax.f32 %v2170, 0.0
      %v2621 = vmax.f32 %v2173, 0.0
      %v2622 = vmax.f32 %v2178, 0.0
      %v2623 = vmax.f32 %v2181, 0.0
      %v2624 = vmax.f32 %v2186, 0.0
      %v2625 = vmax.f32 %v2189, 0.0
      %v2626 = vmax.f32 %v2194, 0.0
      %v2627 = vmax.f32 %v2197, 0.0
      %v2628 = vmax.f32 %v2202, 0.0
      %v2629 = vmax.f32 %v2205, 0.0
      %v2630 = vmax.f32 %v2210, 0.0
      %v2631 = vmax.f32 %v2213, 0.0
      %v2632 = vmax.f32 %v2218, 0.0
      %v2633 = vmax.f32 %v2221, 0.0
      %v2634 = vmax.f32 %v2226, 0.0
      %v2635 = vmax.f32 %v2229, 0.0
      %v2636 = vmax.f32 %v2234, 0.0
      %v2637 = vmax.f32 %v2237, 0.0
      %v2638 = vmax.f32 %v2242, 0.0
      %v2639 = vmax.f32 %v2245, 0.0
      %v2640 = vmax.f32 %v2250, 0.0
      %v2641 = vmax.f32 %v2253, 0.0
      %v2642 = vmax.f32 %v2258, 0.0
      %v2643 = vmax.f32 %v2261, 0.0
      %v2644 = vmax.f32 %v2266, 0.0
      %v2645 = vmax.f32 %v2269, 0.0
      %v2646 = vmax.f32 %v2274, 0.0
      %v2647 = vmax.f32 %v2277, 0.0
      %v2648 = vmax.f32 %v2282, 0.0
      %v2649 = vmax.f32 %v2285, 0.0
      %v2650 = vmax.f32 %v2290, 0.0
      %v2651 = vmax.f32 %v2293, 0.0
      %v2652 = vmax.f32 %v2298, 0.0
      %v2653 = vmax.f32 %v2301, 0.0
      %v2654 = vmax.f32 %v2306, 0.0
      %v2655 = vmax.f32 %v2309, 0.0
      %v2656 = vmax.f32 %v2314, 0.0
      %v2657 = vmax.f32 %v2317, 0.0
      %v2658 = vmax.f32 %v2322, 0.0
      %v2659 = vmax.f32 %v2325, 0.0
      %v2660 = vmax.f32 %v2330, 0.0
      %v2661 = vmax.f32 %v2333, 0.0
      %v2662 = vmax.f32 %v2338, 0.0
      %v2663 = vmax.f32 %v2341, 0.0
      %v2664 = vmax.f32 %v2346, 0.0
      %v2665 = vmax.f32 %v2349, 0.0
      %v2666 = vmax.f32 %v2354, 0.0
      %v2667 = vmax.f32 %v2357, 0.0
      %v2668 = vmax.f32 %v2362, 0.0
      %v2669 = vmax.f32 %v2365, 0.0
      %v2670 = vmax.f32 %v2370, 0.0
      %v2671 = vmax.f32 %v2373, 0.0
      %v2672 = vmax.f32 %v2378, 0.0
      %v2673 = vmax.f32 %v2381, 0.0
      %v2674 = vmax.f32 %v2386, 0.0
      %v2675 = vmax.f32 %v2389, 0.0
      %v2676 = vmax.f32 %v2394, 0.0
      %v2677 = vmax.f32 %v2397, 0.0
      %v2678 = vmax.f32 %v2402, 0.0
      %v2679 = vmax.f32 %v2405, 0.0
      %v2680 = vmax.f32 %v2410, 0.0
      %v2681 = vmax.f32 %v2413, 0.0
      %v2682 = vmax.f32 %v2418, 0.0
      %v2683 = vmax.f32 %v2421, 0.0
      %v2684 = vmax.f32 %v2426, 0.0
      %v2685 = vmax.f32 %v2429, 0.0
      %v2686 = vmax.f32 %v2434, 0.0
      %v2687 = vmax.f32 %v2437, 0.0
      %v2688 = vmax.f32 %v2442, 0.0
      %v2689 = vmax.f32 %v2445, 0.0
      %v2690 = vmax.f32 %v2450, 0.0
      %v2691 = vmax.f32 %v2453, 0.0
      %v2692 = vmax.f32 %v2458, 0.0
      %v2693 = vmax.f32 %v2461, 0.0
      %v2694 = vmax.f32 %v2466, 0.0
      %v2695 = vmax.f32 %v2469, 0.0
      %v2696 = vmax.f32 %v2474, 0.0
      %v2697 = vmax.f32 %v2477, 0.0
      %v2698 = vmax.f32 %v2482, 0.0
      %v2699 = vmax.f32 %v2485, 0.0
      %v2700 = vmax.f32 %v2490, 0.0
      %v2701 = vmax.f32 %v2493, 0.0
      %v2702 = vmax.f32 %v2498, 0.0
      %v2703 = vmax.f32 %v2501, 0.0
      %v2704 = vmax.f32 %v2506, 0.0
      %v2705 = vmax.f32 %v2509, 0.0
      %v2706 = vmax.f32 %v2514, 0.0
      %v2707 = vmax.f32 %v2517, 0.0
      %v2708 = vmax.f32 %v2522, 0.0
      %v2709 = vmax.f32 %v2525, 0.0
      %v2710 = vmax.f32 %v2530, 0.0
      %v2711 = vmax.f32 %v2533, 0.0
      %v2712 = vmax.f32 %v2538, 0.0
      %v2713 = vmax.f32 %v2541, 0.0
      %v2714 = vmax.f32 %v2546, 0.0
      %v2715 = vmax.f32 %v2549, 0.0
      %v2716 = vmax.f32 %v2554, 0.0
      %v2717 = vmax.f32 %v2557, 0.0
      %v2718 = vmax.f32 %v2562, 0.0
      %v2719 = vmax.f32 %v2565, 0.0
      %v2720 = vmax.f32 %v2570, 0.0
      %v2721 = vmax.f32 %v2573, 0.0
      %v2722 = vmax.f32 %v2578, 0.0
      %v2723 = vmax.f32 %v2581, 0.0
      %v2724 = vmax.f32 %v2586, 0.0
      %v2725 = vmax.f32 %v2589, 0.0
      %v2726 = vmax.f32 %v2594, 0.0
      %v2727 = vmax.f32 %v2597, 0.0
      %v2728 = vlaneseq
      %v2729 = vand.u32 %v2728, 127
      %s2730 = smul.u32 %s23, 128
      %s2731 = ssub.s32 200, %s2730
      %v2732 = vstv %s2731
      %vm2733 = vcmp.lt.s32.totalorder %v2729, %v2732
      %v2734 = vsel %vm2733, %v2600, -inf
      %v2735 = vsel %vm2733, %v2601, -inf
      %v2736 = vsel %vm2733, %v2602, -inf
      %v2737 = vsel %vm2733, %v2603, -inf
      %v2738 = vsel %vm2733, %v2604, -inf
      %v2739 = vsel %vm2733, %v2605, -inf
      %v2740 = vsel %vm2733, %v2606, -inf
      %v2741 = vsel %vm2733, %v2607, -inf
      %v2742 = vsel %vm2733, %v2608, -inf
      %v2743 = vsel %vm2733, %v2609, -inf
      %v2744 = vsel %vm2733, %v2610, -inf
      %v2745 = vsel %vm2733, %v2611, -inf
      %v2746 = vsel %vm2733, %v2612, -inf
      %v2747 = vsel %vm2733, %v2613, -inf
      %v2748 = vsel %vm2733, %v2614, -inf
      %v2749 = vsel %vm2733, %v2615, -inf
      %v2750 = vsel %vm2733, %v2616, -inf
      %v2751 = vsel %vm2733, %v2617, -inf
      %v2752 = vsel %vm2733, %v2618, -inf
      %v2753 = vsel %vm2733, %v2619, -inf
      %v2754 = vsel %vm2733, %v2620, -inf
      %v2755 = vsel %vm2733, %v2621, -inf
      %v2756 = vsel %vm2733, %v2622, -inf
      %v2757 = vsel %vm2733, %v2623, -inf
      %v2758 = vsel %vm2733, %v2624, -inf
      %v2759 = vsel %vm2733, %v2625, -inf
      %v2760 = vsel %vm2733, %v2626, -inf
      %v2761 = vsel %vm2733, %v2627, -inf
      %v2762 = vsel %vm2733, %v2628, -inf
      %v2763 = vsel %vm2733, %v2629, -inf
      %v2764 = vsel %vm2733, %v2630, -inf
      %v2765 = vsel %vm2733, %v2631, -inf
      %v2766 = vsel %vm2733, %v2632, -inf
      %v2767 = vsel %vm2733, %v2633, -inf
      %v2768 = vsel %vm2733, %v2634, -inf
      %v2769 = vsel %vm2733, %v2635, -inf
      %v2770 = vsel %vm2733, %v2636, -inf
      %v2771 = vsel %vm2733, %v2637, -inf
      %v2772 = vsel %vm2733, %v2638, -inf
      %v2773 = vsel %vm2733, %v2639, -inf
      %v2774 = vsel %vm2733, %v2640, -inf
      %v2775 = vsel %vm2733, %v2641, -inf
      %v2776 = vsel %vm2733, %v2642, -inf
      %v2777 = vsel %vm2733, %v2643, -inf
      %v2778 = vsel %vm2733, %v2644, -inf
      %v2779 = vsel %vm2733, %v2645, -inf
      %v2780 = vsel %vm2733, %v2646, -inf
      %v2781 = vsel %vm2733, %v2647, -inf
      %v2782 = vsel %vm2733, %v2648, -inf
      %v2783 = vsel %vm2733, %v2649, -inf
      %v2784 = vsel %vm2733, %v2650, -inf
      %v2785 = vsel %vm2733, %v2651, -inf
      %v2786 = vsel %vm2733, %v2652, -inf
      %v2787 = vsel %vm2733, %v2653, -inf
      %v2788 = vsel %vm2733, %v2654, -inf
      %v2789 = vsel %vm2733, %v2655, -inf
      %v2790 = vsel %vm2733, %v2656, -inf
      %v2791 = vsel %vm2733, %v2657, -inf
      %v2792 = vsel %vm2733, %v2658, -inf
      %v2793 = vsel %vm2733, %v2659, -inf
      %v2794 = vsel %vm2733, %v2660, -inf
      %v2795 = vsel %vm2733, %v2661, -inf
      %v2796 = vsel %vm2733, %v2662, -inf
      %v2797 = vsel %vm2733, %v2663, -inf
      %v2798 = vsel %vm2733, %v2664, -inf
      %v2799 = vsel %vm2733, %v2665, -inf
      %v2800 = vsel %vm2733, %v2666, -inf
      %v2801 = vsel %vm2733, %v2667, -inf
      %v2802 = vsel %vm2733, %v2668, -inf
      %v2803 = vsel %vm2733, %v2669, -inf
      %v2804 = vsel %vm2733, %v2670, -inf
      %v2805 = vsel %vm2733, %v2671, -inf
      %v2806 = vsel %vm2733, %v2672, -inf
      %v2807 = vsel %vm2733, %v2673, -inf
      %v2808 = vsel %vm2733, %v2674, -inf
      %v2809 = vsel %vm2733, %v2675, -inf
      %v2810 = vsel %vm2733, %v2676, -inf
      %v2811 = vsel %vm2733, %v2677, -inf
      %v2812 = vsel %vm2733, %v2678, -inf
      %v2813 = vsel %vm2733, %v2679, -inf
      %v2814 = vsel %vm2733, %v2680, -inf
      %v2815 = vsel %vm2733, %v2681, -inf
      %v2816 = vsel %vm2733, %v2682, -inf
      %v2817 = vsel %vm2733, %v2683, -inf
      %v2818 = vsel %vm2733, %v2684, -inf
      %v2819 = vsel %vm2733, %v2685, -inf
      %v2820 = vsel %vm2733, %v2686, -inf
      %v2821 = vsel %vm2733, %v2687, -inf
      %v2822 = vsel %vm2733, %v2688, -inf
      %v2823 = vsel %vm2733, %v2689, -inf
      %v2824 = vsel %vm2733, %v2690, -inf
      %v2825 = vsel %vm2733, %v2691, -inf
      %v2826 = vsel %vm2733, %v2692, -inf
      %v2827 = vsel %vm2733, %v2693, -inf
      %v2828 = vsel %vm2733, %v2694, -inf
      %v2829 = vsel %vm2733, %v2695, -inf
      %v2830 = vsel %vm2733, %v2696, -inf
      %v2831 = vsel %vm2733, %v2697, -inf
      %v2832 = vsel %vm2733, %v2698, -inf
      %v2833 = vsel %vm2733, %v2699, -inf
      %v2834 = vsel %vm2733, %v2700, -inf
      %v2835 = vsel %vm2733, %v2701, -inf
      %v2836 = vsel %vm2733, %v2702, -inf
      %v2837 = vsel %vm2733, %v2703, -inf
      %v2838 = vsel %vm2733, %v2704, -inf
      %v2839 = vsel %vm2733, %v2705, -inf
      %v2840 = vsel %vm2733, %v2706, -inf
      %v2841 = vsel %vm2733, %v2707, -inf
      %v2842 = vsel %vm2733, %v2708, -inf
      %v2843 = vsel %vm2733, %v2709, -inf
      %v2844 = vsel %vm2733, %v2710, -inf
      %v2845 = vsel %vm2733, %v2711, -inf
      %v2846 = vsel %vm2733, %v2712, -inf
      %v2847 = vsel %vm2733, %v2713, -inf
      %v2848 = vsel %vm2733, %v2714, -inf
      %v2849 = vsel %vm2733, %v2715, -inf
      %v2850 = vsel %vm2733, %v2716, -inf
      %v2851 = vsel %vm2733, %v2717, -inf
      %v2852 = vsel %vm2733, %v2718, -inf
      %v2853 = vsel %vm2733, %v2719, -inf
      %v2854 = vsel %vm2733, %v2720, -inf
      %v2855 = vsel %vm2733, %v2721, -inf
      %v2856 = vsel %vm2733, %v2722, -inf
      %v2857 = vsel %vm2733, %v2723, -inf
      %v2858 = vsel %vm2733, %v2724, -inf
      %v2859 = vsel %vm2733, %v2725, -inf
      %v2860 = vsel %vm2733, %v2726, -inf
      %v2861 = vsel %vm2733, %v2727, -inf
      %2862 = vmax.xlane.f32.xlu0 %v2734
      %v2863 = vpop.xlane.xlu0 %2862
      %2864 = vmax.xlane.f32.xlu0 %v2735
      %v2865 = vpop.xlane.xlu0 %2864
      %2866 = vmax.xlane.f32.xlu0 %v2736
      %v2867 = vpop.xlane.xlu0 %2866
      %2868 = vmax.xlane.f32.xlu0 %v2737
      %v2869 = vpop.xlane.xlu0 %2868
      %2870 = vmax.xlane.f32.xlu0 %v2738
      %v2871 = vpop.xlane.xlu0 %2870
      %2872 = vmax.xlane.f32.xlu0 %v2739
      %v2873 = vpop.xlane.xlu0 %2872
      %2874 = vmax.xlane.f32.xlu0 %v2740
      %v2875 = vpop.xlane.xlu0 %2874
      %2876 = vmax.xlane.f32.xlu0 %v2741
      %v2877 = vpop.xlane.xlu0 %2876
      %2878 = vmax.xlane.f32.xlu0 %v2742
      %v2879 = vpop.xlane.xlu0 %2878
      %2880 = vmax.xlane.f32.xlu0 %v2743
      %v2881 = vpop.xlane.xlu0 %2880
      %2882 = vmax.xlane.f32.xlu0 %v2744
      %v2883 = vpop.xlane.xlu0 %2882
      %2884 = vmax.xlane.f32.xlu0 %v2745
      %v2885 = vpop.xlane.xlu0 %2884
      %2886 = vmax.xlane.f32.xlu0 %v2746
      %v2887 = vpop.xlane.xlu0 %2886
      %2888 = vmax.xlane.f32.xlu0 %v2747
      %v2889 = vpop.xlane.xlu0 %2888
      %2890 = vmax.xlane.f32.xlu0 %v2748
      %v2891 = vpop.xlane.xlu0 %2890
      %2892 = vmax.xlane.f32.xlu0 %v2749
      %v2893 = vpop.xlane.xlu0 %2892
      %2894 = vmax.xlane.f32.xlu0 %v2750
      %v2895 = vpop.xlane.xlu0 %2894
      %2896 = vmax.xlane.f32.xlu0 %v2751
      %v2897 = vpop.xlane.xlu0 %2896
      %2898 = vmax.xlane.f32.xlu0 %v2752
      %v2899 = vpop.xlane.xlu0 %2898
      %2900 = vmax.xlane.f32.xlu0 %v2753
      %v2901 = vpop.xlane.xlu0 %2900
      %2902 = vmax.xlane.f32.xlu0 %v2754
      %v2903 = vpop.xlane.xlu0 %2902
      %2904 = vmax.xlane.f32.xlu0 %v2755
      %v2905 = vpop.xlane.xlu0 %2904
      %2906 = vmax.xlane.f32.xlu0 %v2756
      %v2907 = vpop.xlane.xlu0 %2906
      %2908 = vmax.xlane.f32.xlu0 %v2757
      %v2909 = vpop.xlane.xlu0 %2908
      %2910 = vmax.xlane.f32.xlu0 %v2758
      %v2911 = vpop.xlane.xlu0 %2910
      %2912 = vmax.xlane.f32.xlu0 %v2759
      %v2913 = vpop.xlane.xlu0 %2912
      %2914 = vmax.xlane.f32.xlu0 %v2760
      %v2915 = vpop.xlane.xlu0 %2914
      %2916 = vmax.xlane.f32.xlu0 %v2761
      %v2917 = vpop.xlane.xlu0 %2916
      %2918 = vmax.xlane.f32.xlu0 %v2762
      %v2919 = vpop.xlane.xlu0 %2918
      %2920 = vmax.xlane.f32.xlu0 %v2763
      %v2921 = vpop.xlane.xlu0 %2920
      %2922 = vmax.xlane.f32.xlu0 %v2764
      %v2923 = vpop.xlane.xlu0 %2922
      %2924 = vmax.xlane.f32.xlu0 %v2765
      %v2925 = vpop.xlane.xlu0 %2924
      %2926 = vmax.xlane.f32.xlu0 %v2766
      %v2927 = vpop.xlane.xlu0 %2926
      %2928 = vmax.xlane.f32.xlu0 %v2767
      %v2929 = vpop.xlane.xlu0 %2928
      %2930 = vmax.xlane.f32.xlu0 %v2768
      %v2931 = vpop.xlane.xlu0 %2930
      %2932 = vmax.xlane.f32.xlu0 %v2769
      %v2933 = vpop.xlane.xlu0 %2932
      %2934 = vmax.xlane.f32.xlu0 %v2770
      %v2935 = vpop.xlane.xlu0 %2934
      %2936 = vmax.xlane.f32.xlu0 %v2771
      %v2937 = vpop.xlane.xlu0 %2936
      %2938 = vmax.xlane.f32.xlu0 %v2772
      %v2939 = vpop.xlane.xlu0 %2938
      %2940 = vmax.xlane.f32.xlu0 %v2773
      %v2941 = vpop.xlane.xlu0 %2940
      %2942 = vmax.xlane.f32.xlu0 %v2774
      %v2943 = vpop.xlane.xlu0 %2942
      %2944 = vmax.xlane.f32.xlu0 %v2775
      %v2945 = vpop.xlane.xlu0 %2944
      %2946 = vmax.xlane.f32.xlu0 %v2776
      %v2947 = vpop.xlane.xlu0 %2946
      %2948 = vmax.xlane.f32.xlu0 %v2777
      %v2949 = vpop.xlane.xlu0 %2948
      %2950 = vmax.xlane.f32.xlu0 %v2778
      %v2951 = vpop.xlane.xlu0 %2950
      %2952 = vmax.xlane.f32.xlu0 %v2779
      %v2953 = vpop.xlane.xlu0 %2952
      %2954 = vmax.xlane.f32.xlu0 %v2780
      %v2955 = vpop.xlane.xlu0 %2954
      %2956 = vmax.xlane.f32.xlu0 %v2781
      %v2957 = vpop.xlane.xlu0 %2956
      %2958 = vmax.xlane.f32.xlu0 %v2782
      %v2959 = vpop.xlane.xlu0 %2958
      %2960 = vmax.xlane.f32.xlu0 %v2783
      %v2961 = vpop.xlane.xlu0 %2960
      %2962 = vmax.xlane.f32.xlu0 %v2784
      %v2963 = vpop.xlane.xlu0 %2962
      %2964 = vmax.xlane.f32.xlu0 %v2785
      %v2965 = vpop.xlane.xlu0 %2964
      %2966 = vmax.xlane.f32.xlu0 %v2786
      %v2967 = vpop.xlane.xlu0 %2966
      %2968 = vmax.xlane.f32.xlu0 %v2787
      %v2969 = vpop.xlane.xlu0 %2968
      %2970 = vmax.xlane.f32.xlu0 %v2788
      %v2971 = vpop.xlane.xlu0 %2970
      %2972 = vmax.xlane.f32.xlu0 %v2789
      %v2973 = vpop.xlane.xlu0 %2972
      %2974 = vmax.xlane.f32.xlu0 %v2790
      %v2975 = vpop.xlane.xlu0 %2974
      %2976 = vmax.xlane.f32.xlu0 %v2791
      %v2977 = vpop.xlane.xlu0 %2976
      %2978 = vmax.xlane.f32.xlu0 %v2792
      %v2979 = vpop.xlane.xlu0 %2978
      %2980 = vmax.xlane.f32.xlu0 %v2793
      %v2981 = vpop.xlane.xlu0 %2980
      %2982 = vmax.xlane.f32.xlu0 %v2794
      %v2983 = vpop.xlane.xlu0 %2982
      %2984 = vmax.xlane.f32.xlu0 %v2795
      %v2985 = vpop.xlane.xlu0 %2984
      %2986 = vmax.xlane.f32.xlu0 %v2796
      %v2987 = vpop.xlane.xlu0 %2986
      %2988 = vmax.xlane.f32.xlu0 %v2797
      %v2989 = vpop.xlane.xlu0 %2988
      %2990 = vmax.xlane.f32.xlu0 %v2798
      %v2991 = vpop.xlane.xlu0 %2990
      %2992 = vmax.xlane.f32.xlu0 %v2799
      %v2993 = vpop.xlane.xlu0 %2992
      %2994 = vmax.xlane.f32.xlu0 %v2800
      %v2995 = vpop.xlane.xlu0 %2994
      %2996 = vmax.xlane.f32.xlu0 %v2801
      %v2997 = vpop.xlane.xlu0 %2996
      %2998 = vmax.xlane.f32.xlu0 %v2802
      %v2999 = vpop.xlane.xlu0 %2998
      %3000 = vmax.xlane.f32.xlu0 %v2803
      %v3001 = vpop.xlane.xlu0 %3000
      %3002 = vmax.xlane.f32.xlu0 %v2804
      %v3003 = vpop.xlane.xlu0 %3002
      %3004 = vmax.xlane.f32.xlu0 %v2805
      %v3005 = vpop.xlane.xlu0 %3004
      %3006 = vmax.xlane.f32.xlu0 %v2806
      %v3007 = vpop.xlane.xlu0 %3006
      %3008 = vmax.xlane.f32.xlu0 %v2807
      %v3009 = vpop.xlane.xlu0 %3008
      %3010 = vmax.xlane.f32.xlu0 %v2808
      %v3011 = vpop.xlane.xlu0 %3010
      %3012 = vmax.xlane.f32.xlu0 %v2809
      %v3013 = vpop.xlane.xlu0 %3012
      %3014 = vmax.xlane.f32.xlu0 %v2810
      %v3015 = vpop.xlane.xlu0 %3014
      %3016 = vmax.xlane.f32.xlu0 %v2811
      %v3017 = vpop.xlane.xlu0 %3016
      %3018 = vmax.xlane.f32.xlu0 %v2812
      %v3019 = vpop.xlane.xlu0 %3018
      %3020 = vmax.xlane.f32.xlu0 %v2813
      %v3021 = vpop.xlane.xlu0 %3020
      %3022 = vmax.xlane.f32.xlu0 %v2814
      %v3023 = vpop.xlane.xlu0 %3022
      %3024 = vmax.xlane.f32.xlu0 %v2815
      %v3025 = vpop.xlane.xlu0 %3024
      %3026 = vmax.xlane.f32.xlu0 %v2816
      %v3027 = vpop.xlane.xlu0 %3026
      %3028 = vmax.xlane.f32.xlu0 %v2817
      %v3029 = vpop.xlane.xlu0 %3028
      %3030 = vmax.xlane.f32.xlu0 %v2818
      %v3031 = vpop.xlane.xlu0 %3030
      %3032 = vmax.xlane.f32.xlu0 %v2819
      %v3033 = vpop.xlane.xlu0 %3032
      %3034 = vmax.xlane.f32.xlu0 %v2820
      %v3035 = vpop.xlane.xlu0 %3034
      %3036 = vmax.xlane.f32.xlu0 %v2821
      %v3037 = vpop.xlane.xlu0 %3036
      %3038 = vmax.xlane.f32.xlu0 %v2822
      %v3039 = vpop.xlane.xlu0 %3038
      %3040 = vmax.xlane.f32.xlu0 %v2823
      %v3041 = vpop.xlane.xlu0 %3040
      %3042 = vmax.xlane.f32.xlu0 %v2824
      %v3043 = vpop.xlane.xlu0 %3042
      %3044 = vmax.xlane.f32.xlu0 %v2825
      %v3045 = vpop.xlane.xlu0 %3044
      %3046 = vmax.xlane.f32.xlu0 %v2826
      %v3047 = vpop.xlane.xlu0 %3046
      %3048 = vmax.xlane.f32.xlu0 %v2827
      %v3049 = vpop.xlane.xlu0 %3048
      %3050 = vmax.xlane.f32.xlu0 %v2828
      %v3051 = vpop.xlane.xlu0 %3050
      %3052 = vmax.xlane.f32.xlu0 %v2829
      %v3053 = vpop.xlane.xlu0 %3052
      %3054 = vmax.xlane.f32.xlu0 %v2830
      %v3055 = vpop.xlane.xlu0 %3054
      %3056 = vmax.xlane.f32.xlu0 %v2831
      %v3057 = vpop.xlane.xlu0 %3056
      %3058 = vmax.xlane.f32.xlu0 %v2832
      %v3059 = vpop.xlane.xlu0 %3058
      %3060 = vmax.xlane.f32.xlu0 %v2833
      %v3061 = vpop.xlane.xlu0 %3060
      %3062 = vmax.xlane.f32.xlu0 %v2834
      %v3063 = vpop.xlane.xlu0 %3062
      %3064 = vmax.xlane.f32.xlu0 %v2835
      %v3065 = vpop.xlane.xlu0 %3064
      %3066 = vmax.xlane.f32.xlu0 %v2836
      %v3067 = vpop.xlane.xlu0 %3066
      %3068 = vmax.xlane.f32.xlu0 %v2837
      %v3069 = vpop.xlane.xlu0 %3068
      %3070 = vmax.xlane.f32.xlu0 %v2838
      %v3071 = vpop.xlane.xlu0 %3070
      %3072 = vmax.xlane.f32.xlu0 %v2839
      %v3073 = vpop.xlane.xlu0 %3072
      %3074 = vmax.xlane.f32.xlu0 %v2840
      %v3075 = vpop.xlane.xlu0 %3074
      %3076 = vmax.xlane.f32.xlu0 %v2841
      %v3077 = vpop.xlane.xlu0 %3076
      %3078 = vmax.xlane.f32.xlu0 %v2842
      %v3079 = vpop.xlane.xlu0 %3078
      %3080 = vmax.xlane.f32.xlu0 %v2843
      %v3081 = vpop.xlane.xlu0 %3080
      %3082 = vmax.xlane.f32.xlu0 %v2844
      %v3083 = vpop.xlane.xlu0 %3082
      %3084 = vmax.xlane.f32.xlu0 %v2845
      %v3085 = vpop.xlane.xlu0 %3084
      %3086 = vmax.xlane.f32.xlu0 %v2846
      %v3087 = vpop.xlane.xlu0 %3086
      %3088 = vmax.xlane.f32.xlu0 %v2847
      %v3089 = vpop.xlane.xlu0 %3088
      %3090 = vmax.xlane.f32.xlu0 %v2848
      %v3091 = vpop.xlane.xlu0 %3090
      %3092 = vmax.xlane.f32.xlu0 %v2849
      %v3093 = vpop.xlane.xlu0 %3092
      %3094 = vmax.xlane.f32.xlu0 %v2850
      %v3095 = vpop.xlane.xlu0 %3094
      %3096 = vmax.xlane.f32.xlu0 %v2851
      %v3097 = vpop.xlane.xlu0 %3096
      %3098 = vmax.xlane.f32.xlu0 %v2852
      %v3099 = vpop.xlane.xlu0 %3098
      %3100 = vmax.xlane.f32.xlu0 %v2853
      %v3101 = vpop.xlane.xlu0 %3100
      %3102 = vmax.xlane.f32.xlu0 %v2854
      %v3103 = vpop.xlane.xlu0 %3102
      %3104 = vmax.xlane.f32.xlu0 %v2855
      %v3105 = vpop.xlane.xlu0 %3104
      %3106 = vmax.xlane.f32.xlu0 %v2856
      %v3107 = vpop.xlane.xlu0 %3106
      %3108 = vmax.xlane.f32.xlu0 %v2857
      %v3109 = vpop.xlane.xlu0 %3108
      %3110 = vmax.xlane.f32.xlu0 %v2858
      %v3111 = vpop.xlane.xlu0 %3110
      %3112 = vmax.xlane.f32.xlu0 %v2859
      %v3113 = vpop.xlane.xlu0 %3112
      %3114 = vmax.xlane.f32.xlu0 %v2860
      %v3115 = vpop.xlane.xlu0 %3114
      %3116 = vmax.xlane.f32.xlu0 %v2861
      %v3117 = vpop.xlane.xlu0 %3116
      %p3118 = scmp.eq.s32.totalorder %s23, 0
      %v3119 = vld [vmem:[%s301] sm:$0xff]
      %v3120 = vld [vmem:[%s301 + $0x8] sm:$0xff]
      %v3121 = vld [vmem:[%s301 + $0x10] sm:$0xff]
      %v3122 = vld [vmem:[%s301 + $0x18] sm:$0xff]
      %v3123 = vld [vmem:[%s301 + $0x20] sm:$0xff]
      %v3124 = vld [vmem:[%s301 + $0x28] sm:$0xff]
      %v3125 = vld [vmem:[%s301 + $0x30] sm:$0xff]
      %v3126 = vld [vmem:[%s301 + $0x38] sm:$0xff]
      %v3127 = vld [vmem:[%s301 + $0x40] sm:$0xff]
      %v3128 = vld [vmem:[%s301 + $0x48] sm:$0xff]
      %v3129 = vld [vmem:[%s301 + $0x50] sm:$0xff]
      %v3130 = vld [vmem:[%s301 + $0x58] sm:$0xff]
      %v3131 = vld [vmem:[%s301 + $0x60] sm:$0xff]
      %v3132 = vld [vmem:[%s301 + $0x68] sm:$0xff]
      %v3133 = vld [vmem:[%s301 + $0x70] sm:$0xff]
      %v3134 = vld [vmem:[%s301 + $0x78] sm:$0xff]
      %v3135 = vld [vmem:[%s301 + $0x80] sm:$0xff]
      %v3136 = vld [vmem:[%s301 + $0x88] sm:$0xff]
      %v3137 = vld [vmem:[%s301 + $0x90] sm:$0xff]
      %v3138 = vld [vmem:[%s301 + $0x98] sm:$0xff]
      %v3139 = vld [vmem:[%s301 + $0xa0] sm:$0xff]
      %v3140 = vld [vmem:[%s301 + $0xa8] sm:$0xff]
      %v3141 = vld [vmem:[%s301 + $0xb0] sm:$0xff]
      %v3142 = vld [vmem:[%s301 + $0xb8] sm:$0xff]
      %v3143 = vld [vmem:[%s301 + $0xc0] sm:$0xff]
      %v3144 = vld [vmem:[%s301 + $0xc8] sm:$0xff]
      %v3145 = vld [vmem:[%s301 + $0xd0] sm:$0xff]
      %v3146 = vld [vmem:[%s301 + $0xd8] sm:$0xff]
      %v3147 = vld [vmem:[%s301 + $0xe0] sm:$0xff]
      %v3148 = vld [vmem:[%s301 + $0xe8] sm:$0xff]
      %v3149 = vld [vmem:[%s301 + $0xf0] sm:$0xff]
      %v3150 = vld [vmem:[%s301 + $0xf8] sm:$0xff]
      %v3151 = vld [vmem:[%s301 + $0x100] sm:$0xff]
      %v3152 = vld [vmem:[%s301 + $0x108] sm:$0xff]
      %v3153 = vld [vmem:[%s301 + $0x110] sm:$0xff]
      %v3154 = vld [vmem:[%s301 + $0x118] sm:$0xff]
      %v3155 = vld [vmem:[%s301 + $0x120] sm:$0xff]
      %v3156 = vld [vmem:[%s301 + $0x128] sm:$0xff]
      %v3157 = vld [vmem:[%s301 + $0x130] sm:$0xff]
      %v3158 = vld [vmem:[%s301 + $0x138] sm:$0xff]
      %v3159 = vld [vmem:[%s301 + $0x140] sm:$0xff]
      %v3160 = vld [vmem:[%s301 + $0x148] sm:$0xff]
      %v3161 = vld [vmem:[%s301 + $0x150] sm:$0xff]
      %v3162 = vld [vmem:[%s301 + $0x158] sm:$0xff]
      %v3163 = vld [vmem:[%s301 + $0x160] sm:$0xff]
      %v3164 = vld [vmem:[%s301 + $0x168] sm:$0xff]
      %v3165 = vld [vmem:[%s301 + $0x170] sm:$0xff]
      %v3166 = vld [vmem:[%s301 + $0x178] sm:$0xff]
      %v3167 = vld [vmem:[%s301 + $0x180] sm:$0xff]
      %v3168 = vld [vmem:[%s301 + $0x188] sm:$0xff]
      %v3169 = vld [vmem:[%s301 + $0x190] sm:$0xff]
      %v3170 = vld [vmem:[%s301 + $0x198] sm:$0xff]
      %v3171 = vld [vmem:[%s301 + $0x1a0] sm:$0xff]
      %v3172 = vld [vmem:[%s301 + $0x1a8] sm:$0xff]
      %v3173 = vld [vmem:[%s301 + $0x1b0] sm:$0xff]
      %v3174 = vld [vmem:[%s301 + $0x1b8] sm:$0xff]
      %v3175 = vld [vmem:[%s301 + $0x1c0] sm:$0xff]
      %v3176 = vld [vmem:[%s301 + $0x1c8] sm:$0xff]
      %v3177 = vld [vmem:[%s301 + $0x1d0] sm:$0xff]
      %v3178 = vld [vmem:[%s301 + $0x1d8] sm:$0xff]
      %v3179 = vld [vmem:[%s301 + $0x1e0] sm:$0xff]
      %v3180 = vld [vmem:[%s301 + $0x1e8] sm:$0xff]
      %v3181 = vld [vmem:[%s301 + $0x1f0] sm:$0xff]
      %v3182 = vld [vmem:[%s301 + $0x1f8] sm:$0xff]
      %v3183 = vld [vmem:[%s301 + $0x200] sm:$0xff]
      %v3184 = vld [vmem:[%s301 + $0x208] sm:$0xff]
      %v3185 = vld [vmem:[%s301 + $0x210] sm:$0xff]
      %v3186 = vld [vmem:[%s301 + $0x218] sm:$0xff]
      %v3187 = vld [vmem:[%s301 + $0x220] sm:$0xff]
      %v3188 = vld [vmem:[%s301 + $0x228] sm:$0xff]
      %v3189 = vld [vmem:[%s301 + $0x230] sm:$0xff]
      %v3190 = vld [vmem:[%s301 + $0x238] sm:$0xff]
      %v3191 = vld [vmem:[%s301 + $0x240] sm:$0xff]
      %v3192 = vld [vmem:[%s301 + $0x248] sm:$0xff]
      %v3193 = vld [vmem:[%s301 + $0x250] sm:$0xff]
      %v3194 = vld [vmem:[%s301 + $0x258] sm:$0xff]
      %v3195 = vld [vmem:[%s301 + $0x260] sm:$0xff]
      %v3196 = vld [vmem:[%s301 + $0x268] sm:$0xff]
      %v3197 = vld [vmem:[%s301 + $0x270] sm:$0xff]
      %v3198 = vld [vmem:[%s301 + $0x278] sm:$0xff]
      %v3199 = vld [vmem:[%s301 + $0x280] sm:$0xff]
      %v3200 = vld [vmem:[%s301 + $0x288] sm:$0xff]
      %v3201 = vld [vmem:[%s301 + $0x290] sm:$0xff]
      %v3202 = vld [vmem:[%s301 + $0x298] sm:$0xff]
      %v3203 = vld [vmem:[%s301 + $0x2a0] sm:$0xff]
      %v3204 = vld [vmem:[%s301 + $0x2a8] sm:$0xff]
      %v3205 = vld [vmem:[%s301 + $0x2b0] sm:$0xff]
      %v3206 = vld [vmem:[%s301 + $0x2b8] sm:$0xff]
      %v3207 = vld [vmem:[%s301 + $0x2c0] sm:$0xff]
      %v3208 = vld [vmem:[%s301 + $0x2c8] sm:$0xff]
      %v3209 = vld [vmem:[%s301 + $0x2d0] sm:$0xff]
      %v3210 = vld [vmem:[%s301 + $0x2d8] sm:$0xff]
      %v3211 = vld [vmem:[%s301 + $0x2e0] sm:$0xff]
      %v3212 = vld [vmem:[%s301 + $0x2e8] sm:$0xff]
      %v3213 = vld [vmem:[%s301 + $0x2f0] sm:$0xff]
      %v3214 = vld [vmem:[%s301 + $0x2f8] sm:$0xff]
      %v3215 = vld [vmem:[%s301 + $0x300] sm:$0xff]
      %v3216 = vld [vmem:[%s301 + $0x308] sm:$0xff]
      %v3217 = vld [vmem:[%s301 + $0x310] sm:$0xff]
      %v3218 = vld [vmem:[%s301 + $0x318] sm:$0xff]
      %v3219 = vld [vmem:[%s301 + $0x320] sm:$0xff]
      %v3220 = vld [vmem:[%s301 + $0x328] sm:$0xff]
      %v3221 = vld [vmem:[%s301 + $0x330] sm:$0xff]
      %v3222 = vld [vmem:[%s301 + $0x338] sm:$0xff]
      %v3223 = vld [vmem:[%s301 + $0x340] sm:$0xff]
      %v3224 = vld [vmem:[%s301 + $0x348] sm:$0xff]
      %v3225 = vld [vmem:[%s301 + $0x350] sm:$0xff]
      %v3226 = vld [vmem:[%s301 + $0x358] sm:$0xff]
      %v3227 = vld [vmem:[%s301 + $0x360] sm:$0xff]
      %v3228 = vld [vmem:[%s301 + $0x368] sm:$0xff]
      %v3229 = vld [vmem:[%s301 + $0x370] sm:$0xff]
      %v3230 = vld [vmem:[%s301 + $0x378] sm:$0xff]
      %v3231 = vld [vmem:[%s301 + $0x380] sm:$0xff]
      %v3232 = vld [vmem:[%s301 + $0x388] sm:$0xff]
      %v3233 = vld [vmem:[%s301 + $0x390] sm:$0xff]
      %v3234 = vld [vmem:[%s301 + $0x398] sm:$0xff]
      %v3235 = vld [vmem:[%s301 + $0x3a0] sm:$0xff]
      %v3236 = vld [vmem:[%s301 + $0x3a8] sm:$0xff]
      %v3237 = vld [vmem:[%s301 + $0x3b0] sm:$0xff]
      %v3238 = vld [vmem:[%s301 + $0x3b8] sm:$0xff]
      %v3239 = vld [vmem:[%s301 + $0x3c0] sm:$0xff]
      %v3240 = vld [vmem:[%s301 + $0x3c8] sm:$0xff]
      %v3241 = vld [vmem:[%s301 + $0x3d0] sm:$0xff]
      %v3242 = vld [vmem:[%s301 + $0x3d8] sm:$0xff]
      %v3243 = vld [vmem:[%s301 + $0x3e0] sm:$0xff]
      %v3244 = vld [vmem:[%s301 + $0x3e8] sm:$0xff]
      %v3245 = vld [vmem:[%s301 + $0x3f0] sm:$0xff]
      %v3246 = vld [vmem:[%s301 + $0x3f8] sm:$0xff]
      %s3247 = scalar_select %p3118, 1, 0
      %v3248 = vstv %s3247
      %vm3249 = vcmp.eq.s32.totalorder %v3248, 1
      %v3250 = vsel %vm3249, -inf, %v3119
      %v3251 = vsel %vm3249, -inf, %v3120
      %v3252 = vsel %vm3249, -inf, %v3121
      %v3253 = vsel %vm3249, -inf, %v3122
      %v3254 = vsel %vm3249, -inf, %v3123
      %v3255 = vsel %vm3249, -inf, %v3124
      %v3256 = vsel %vm3249, -inf, %v3125
      %v3257 = vsel %vm3249, -inf, %v3126
      %v3258 = vsel %vm3249, -inf, %v3127
      %v3259 = vsel %vm3249, -inf, %v3128
      %v3260 = vsel %vm3249, -inf, %v3129
      %v3261 = vsel %vm3249, -inf, %v3130
      %v3262 = vsel %vm3249, -inf, %v3131
      %v3263 = vsel %vm3249, -inf, %v3132
      %v3264 = vsel %vm3249, -inf, %v3133
      %v3265 = vsel %vm3249, -inf, %v3134
      %v3266 = vsel %vm3249, -inf, %v3135
      %v3267 = vsel %vm3249, -inf, %v3136
      %v3268 = vsel %vm3249, -inf, %v3137
      %v3269 = vsel %vm3249, -inf, %v3138
      %v3270 = vsel %vm3249, -inf, %v3139
      %v3271 = vsel %vm3249, -inf, %v3140
      %v3272 = vsel %vm3249, -inf, %v3141
      %v3273 = vsel %vm3249, -inf, %v3142
      %v3274 = vsel %vm3249, -inf, %v3143
      %v3275 = vsel %vm3249, -inf, %v3144
      %v3276 = vsel %vm3249, -inf, %v3145
      %v3277 = vsel %vm3249, -inf, %v3146
      %v3278 = vsel %vm3249, -inf, %v3147
      %v3279 = vsel %vm3249, -inf, %v3148
      %v3280 = vsel %vm3249, -inf, %v3149
      %v3281 = vsel %vm3249, -inf, %v3150
      %v3282 = vsel %vm3249, -inf, %v3151
      %v3283 = vsel %vm3249, -inf, %v3152
      %v3284 = vsel %vm3249, -inf, %v3153
      %v3285 = vsel %vm3249, -inf, %v3154
      %v3286 = vsel %vm3249, -inf, %v3155
      %v3287 = vsel %vm3249, -inf, %v3156
      %v3288 = vsel %vm3249, -inf, %v3157
      %v3289 = vsel %vm3249, -inf, %v3158
      %v3290 = vsel %vm3249, -inf, %v3159
      %v3291 = vsel %vm3249, -inf, %v3160
      %v3292 = vsel %vm3249, -inf, %v3161
      %v3293 = vsel %vm3249, -inf, %v3162
      %v3294 = vsel %vm3249, -inf, %v3163
      %v3295 = vsel %vm3249, -inf, %v3164
      %v3296 = vsel %vm3249, -inf, %v3165
      %v3297 = vsel %vm3249, -inf, %v3166
      %v3298 = vsel %vm3249, -inf, %v3167
      %v3299 = vsel %vm3249, -inf, %v3168
      %v3300 = vsel %vm3249, -inf, %v3169
      %v3301 = vsel %vm3249, -inf, %v3170
      %v3302 = vsel %vm3249, -inf, %v3171
      %v3303 = vsel %vm3249, -inf, %v3172
      %v3304 = vsel %vm3249, -inf, %v3173
      %v3305 = vsel %vm3249, -inf, %v3174
      %v3306 = vsel %vm3249, -inf, %v3175
      %v3307 = vsel %vm3249, -inf, %v3176
      %v3308 = vsel %vm3249, -inf, %v3177
      %v3309 = vsel %vm3249, -inf, %v3178
      %v3310 = vsel %vm3249, -inf, %v3179
      %v3311 = vsel %vm3249, -inf, %v3180
      %v3312 = vsel %vm3249, -inf, %v3181
      %v3313 = vsel %vm3249, -inf, %v3182
      %v3314 = vsel %vm3249, -inf, %v3183
      %v3315 = vsel %vm3249, -inf, %v3184
      %v3316 = vsel %vm3249, -inf, %v3185
      %v3317 = vsel %vm3249, -inf, %v3186
      %v3318 = vsel %vm3249, -inf, %v3187
      %v3319 = vsel %vm3249, -inf, %v3188
      %v3320 = vsel %vm3249, -inf, %v3189
      %v3321 = vsel %vm3249, -inf, %v3190
      %v3322 = vsel %vm3249, -inf, %v3191
      %v3323 = vsel %vm3249, -inf, %v3192
      %v3324 = vsel %vm3249, -inf, %v3193
      %v3325 = vsel %vm3249, -inf, %v3194
      %v3326 = vsel %vm3249, -inf, %v3195
      %v3327 = vsel %vm3249, -inf, %v3196
      %v3328 = vsel %vm3249, -inf, %v3197
      %v3329 = vsel %vm3249, -inf, %v3198
      %v3330 = vsel %vm3249, -inf, %v3199
      %v3331 = vsel %vm3249, -inf, %v3200
      %v3332 = vsel %vm3249, -inf, %v3201
      %v3333 = vsel %vm3249, -inf, %v3202
      %v3334 = vsel %vm3249, -inf, %v3203
      %v3335 = vsel %vm3249, -inf, %v3204
      %v3336 = vsel %vm3249, -inf, %v3205
      %v3337 = vsel %vm3249, -inf, %v3206
      %v3338 = vsel %vm3249, -inf, %v3207
      %v3339 = vsel %vm3249, -inf, %v3208
      %v3340 = vsel %vm3249, -inf, %v3209
      %v3341 = vsel %vm3249, -inf, %v3210
      %v3342 = vsel %vm3249, -inf, %v3211
      %v3343 = vsel %vm3249, -inf, %v3212
      %v3344 = vsel %vm3249, -inf, %v3213
      %v3345 = vsel %vm3249, -inf, %v3214
      %v3346 = vsel %vm3249, -inf, %v3215
      %v3347 = vsel %vm3249, -inf, %v3216
      %v3348 = vsel %vm3249, -inf, %v3217
      %v3349 = vsel %vm3249, -inf, %v3218
      %v3350 = vsel %vm3249, -inf, %v3219
      %v3351 = vsel %vm3249, -inf, %v3220
      %v3352 = vsel %vm3249, -inf, %v3221
      %v3353 = vsel %vm3249, -inf, %v3222
      %v3354 = vsel %vm3249, -inf, %v3223
      %v3355 = vsel %vm3249, -inf, %v3224
      %v3356 = vsel %vm3249, -inf, %v3225
      %v3357 = vsel %vm3249, -inf, %v3226
      %v3358 = vsel %vm3249, -inf, %v3227
      %v3359 = vsel %vm3249, -inf, %v3228
      %v3360 = vsel %vm3249, -inf, %v3229
      %v3361 = vsel %vm3249, -inf, %v3230
      %v3362 = vsel %vm3249, -inf, %v3231
      %v3363 = vsel %vm3249, -inf, %v3232
      %v3364 = vsel %vm3249, -inf, %v3233
      %v3365 = vsel %vm3249, -inf, %v3234
      %v3366 = vsel %vm3249, -inf, %v3235
      %v3367 = vsel %vm3249, -inf, %v3236
      %v3368 = vsel %vm3249, -inf, %v3237
      %v3369 = vsel %vm3249, -inf, %v3238
      %v3370 = vsel %vm3249, -inf, %v3239
      %v3371 = vsel %vm3249, -inf, %v3240
      %v3372 = vsel %vm3249, -inf, %v3241
      %v3373 = vsel %vm3249, -inf, %v3242
      %v3374 = vsel %vm3249, -inf, %v3243
      %v3375 = vsel %vm3249, -inf, %v3244
      %v3376 = vsel %vm3249, -inf, %v3245
      %v3377 = vsel %vm3249, -inf, %v3246
      %v3378 = vmax.f32 %v3250, %v2863
      %v3379 = vmax.f32 %v3251, %v2865
      %v3380 = vmax.f32 %v3252, %v2867
      %v3381 = vmax.f32 %v3253, %v2869
      %v3382 = vmax.f32 %v3254, %v2871
      %v3383 = vmax.f32 %v3255, %v2873
      %v3384 = vmax.f32 %v3256, %v2875
      %v3385 = vmax.f32 %v3257, %v2877
      %v3386 = vmax.f32 %v3258, %v2879
      %v3387 = vmax.f32 %v3259, %v2881
      %v3388 = vmax.f32 %v3260, %v2883
      %v3389 = vmax.f32 %v3261, %v2885
      %v3390 = vmax.f32 %v3262, %v2887
      %v3391 = vmax.f32 %v3263, %v2889
      %v3392 = vmax.f32 %v3264, %v2891
      %v3393 = vmax.f32 %v3265, %v2893
      %v3394 = vmax.f32 %v3266, %v2895
      %v3395 = vmax.f32 %v3267, %v2897
      %v3396 = vmax.f32 %v3268, %v2899
      %v3397 = vmax.f32 %v3269, %v2901
      %v3398 = vmax.f32 %v3270, %v2903
      %v3399 = vmax.f32 %v3271, %v2905
      %v3400 = vmax.f32 %v3272, %v2907
      %v3401 = vmax.f32 %v3273, %v2909
      %v3402 = vmax.f32 %v3274, %v2911
      %v3403 = vmax.f32 %v3275, %v2913
      %v3404 = vmax.f32 %v3276, %v2915
      %v3405 = vmax.f32 %v3277, %v2917
      %v3406 = vmax.f32 %v3278, %v2919
      %v3407 = vmax.f32 %v3279, %v2921
      %v3408 = vmax.f32 %v3280, %v2923
      %v3409 = vmax.f32 %v3281, %v2925
      %v3410 = vmax.f32 %v3282, %v2927
      %v3411 = vmax.f32 %v3283, %v2929
      %v3412 = vmax.f32 %v3284, %v2931
      %v3413 = vmax.f32 %v3285, %v2933
      %v3414 = vmax.f32 %v3286, %v2935
      %v3415 = vmax.f32 %v3287, %v2937
      %v3416 = vmax.f32 %v3288, %v2939
      %v3417 = vmax.f32 %v3289, %v2941
      %v3418 = vmax.f32 %v3290, %v2943
      %v3419 = vmax.f32 %v3291, %v2945
      %v3420 = vmax.f32 %v3292, %v2947
      %v3421 = vmax.f32 %v3293, %v2949
      %v3422 = vmax.f32 %v3294, %v2951
      %v3423 = vmax.f32 %v3295, %v2953
      %v3424 = vmax.f32 %v3296, %v2955
      %v3425 = vmax.f32 %v3297, %v2957
      %v3426 = vmax.f32 %v3298, %v2959
      %v3427 = vmax.f32 %v3299, %v2961
      %v3428 = vmax.f32 %v3300, %v2963
      %v3429 = vmax.f32 %v3301, %v2965
      %v3430 = vmax.f32 %v3302, %v2967
      %v3431 = vmax.f32 %v3303, %v2969
      %v3432 = vmax.f32 %v3304, %v2971
      %v3433 = vmax.f32 %v3305, %v2973
      %v3434 = vmax.f32 %v3306, %v2975
      %v3435 = vmax.f32 %v3307, %v2977
      %v3436 = vmax.f32 %v3308, %v2979
      %v3437 = vmax.f32 %v3309, %v2981
      %v3438 = vmax.f32 %v3310, %v2983
      %v3439 = vmax.f32 %v3311, %v2985
      %v3440 = vmax.f32 %v3312, %v2987
      %v3441 = vmax.f32 %v3313, %v2989
      %v3442 = vmax.f32 %v3314, %v2991
      %v3443 = vmax.f32 %v3315, %v2993
      %v3444 = vmax.f32 %v3316, %v2995
      %v3445 = vmax.f32 %v3317, %v2997
      %v3446 = vmax.f32 %v3318, %v2999
      %v3447 = vmax.f32 %v3319, %v3001
      %v3448 = vmax.f32 %v3320, %v3003
      %v3449 = vmax.f32 %v3321, %v3005
      %v3450 = vmax.f32 %v3322, %v3007
      %v3451 = vmax.f32 %v3323, %v3009
      %v3452 = vmax.f32 %v3324, %v3011
      %v3453 = vmax.f32 %v3325, %v3013
      %v3454 = vmax.f32 %v3326, %v3015
      %v3455 = vmax.f32 %v3327, %v3017
      %v3456 = vmax.f32 %v3328, %v3019
      %v3457 = vmax.f32 %v3329, %v3021
      %v3458 = vmax.f32 %v3330, %v3023
      %v3459 = vmax.f32 %v3331, %v3025
      %v3460 = vmax.f32 %v3332, %v3027
      %v3461 = vmax.f32 %v3333, %v3029
      %v3462 = vmax.f32 %v3334, %v3031
      %v3463 = vmax.f32 %v3335, %v3033
      %v3464 = vmax.f32 %v3336, %v3035
      %v3465 = vmax.f32 %v3337, %v3037
      %v3466 = vmax.f32 %v3338, %v3039
      %v3467 = vmax.f32 %v3339, %v3041
      %v3468 = vmax.f32 %v3340, %v3043
      %v3469 = vmax.f32 %v3341, %v3045
      %v3470 = vmax.f32 %v3342, %v3047
      %v3471 = vmax.f32 %v3343, %v3049
      %v3472 = vmax.f32 %v3344, %v3051
      %v3473 = vmax.f32 %v3345, %v3053
      %v3474 = vmax.f32 %v3346, %v3055
      %v3475 = vmax.f32 %v3347, %v3057
      %v3476 = vmax.f32 %v3348, %v3059
      %v3477 = vmax.f32 %v3349, %v3061
      %v3478 = vmax.f32 %v3350, %v3063
      %v3479 = vmax.f32 %v3351, %v3065
      %v3480 = vmax.f32 %v3352, %v3067
      %v3481 = vmax.f32 %v3353, %v3069
      %v3482 = vmax.f32 %v3354, %v3071
      %v3483 = vmax.f32 %v3355, %v3073
      %v3484 = vmax.f32 %v3356, %v3075
      %v3485 = vmax.f32 %v3357, %v3077
      %v3486 = vmax.f32 %v3358, %v3079
      %v3487 = vmax.f32 %v3359, %v3081
      %v3488 = vmax.f32 %v3360, %v3083
      %v3489 = vmax.f32 %v3361, %v3085
      %v3490 = vmax.f32 %v3362, %v3087
      %v3491 = vmax.f32 %v3363, %v3089
      %v3492 = vmax.f32 %v3364, %v3091
      %v3493 = vmax.f32 %v3365, %v3093
      %v3494 = vmax.f32 %v3366, %v3095
      %v3495 = vmax.f32 %v3367, %v3097
      %v3496 = vmax.f32 %v3368, %v3099
      %v3497 = vmax.f32 %v3369, %v3101
      %v3498 = vmax.f32 %v3370, %v3103
      %v3499 = vmax.f32 %v3371, %v3105
      %v3500 = vmax.f32 %v3372, %v3107
      %v3501 = vmax.f32 %v3373, %v3109
      %v3502 = vmax.f32 %v3374, %v3111
      %v3503 = vmax.f32 %v3375, %v3113
      %v3504 = vmax.f32 %v3376, %v3115
      %v3505 = vmax.f32 %v3377, %v3117
      %vm3506 = vcmask 7168
      %3507 = vst.msk [vmem:[%s301] sm:$0xff] %vm3506, %v3378
      %3508 = vst.msk [vmem:[%s301 + $0x8] sm:$0xff] %vm3506, %v3379
      %3509 = vst.msk [vmem:[%s301 + $0x10] sm:$0xff] %vm3506, %v3380
      %3510 = vst.msk [vmem:[%s301 + $0x18] sm:$0xff] %vm3506, %v3381
      %3511 = vst.msk [vmem:[%s301 + $0x20] sm:$0xff] %vm3506, %v3382
      %3512 = vst.msk [vmem:[%s301 + $0x28] sm:$0xff] %vm3506, %v3383
      %3513 = vst.msk [vmem:[%s301 + $0x30] sm:$0xff] %vm3506, %v3384
      %3514 = vst.msk [vmem:[%s301 + $0x38] sm:$0xff] %vm3506, %v3385
      %3515 = vst.msk [vmem:[%s301 + $0x40] sm:$0xff] %vm3506, %v3386
      %3516 = vst.msk [vmem:[%s301 + $0x48] sm:$0xff] %vm3506, %v3387
      %3517 = vst.msk [vmem:[%s301 + $0x50] sm:$0xff] %vm3506, %v3388
      %3518 = vst.msk [vmem:[%s301 + $0x58] sm:$0xff] %vm3506, %v3389
      %3519 = vst.msk [vmem:[%s301 + $0x60] sm:$0xff] %vm3506, %v3390
      %3520 = vst.msk [vmem:[%s301 + $0x68] sm:$0xff] %vm3506, %v3391
      %3521 = vst.msk [vmem:[%s301 + $0x70] sm:$0xff] %vm3506, %v3392
      %3522 = vst.msk [vmem:[%s301 + $0x78] sm:$0xff] %vm3506, %v3393
      %3523 = vst.msk [vmem:[%s301 + $0x80] sm:$0xff] %vm3506, %v3394
      %3524 = vst.msk [vmem:[%s301 + $0x88] sm:$0xff] %vm3506, %v3395
      %3525 = vst.msk [vmem:[%s301 + $0x90] sm:$0xff] %vm3506, %v3396
      %3526 = vst.msk [vmem:[%s301 + $0x98] sm:$0xff] %vm3506, %v3397
      %3527 = vst.msk [vmem:[%s301 + $0xa0] sm:$0xff] %vm3506, %v3398
      %3528 = vst.msk [vmem:[%s301 + $0xa8] sm:$0xff] %vm3506, %v3399
      %3529 = vst.msk [vmem:[%s301 + $0xb0] sm:$0xff] %vm3506, %v3400
      %3530 = vst.msk [vmem:[%s301 + $0xb8] sm:$0xff] %vm3506, %v3401
      %3531 = vst.msk [vmem:[%s301 + $0xc0] sm:$0xff] %vm3506, %v3402
      %3532 = vst.msk [vmem:[%s301 + $0xc8] sm:$0xff] %vm3506, %v3403
      %3533 = vst.msk [vmem:[%s301 + $0xd0] sm:$0xff] %vm3506, %v3404
      %3534 = vst.msk [vmem:[%s301 + $0xd8] sm:$0xff] %vm3506, %v3405
      %3535 = vst.msk [vmem:[%s301 + $0xe0] sm:$0xff] %vm3506, %v3406
      %3536 = vst.msk [vmem:[%s301 + $0xe8] sm:$0xff] %vm3506, %v3407
      %3537 = vst.msk [vmem:[%s301 + $0xf0] sm:$0xff] %vm3506, %v3408
      %3538 = vst.msk [vmem:[%s301 + $0xf8] sm:$0xff] %vm3506, %v3409
      %3539 = vst.msk [vmem:[%s301 + $0x100] sm:$0xff] %vm3506, %v3410
      %3540 = vst.msk [vmem:[%s301 + $0x108] sm:$0xff] %vm3506, %v3411
      %3541 = vst.msk [vmem:[%s301 + $0x110] sm:$0xff] %vm3506, %v3412
      %3542 = vst.msk [vmem:[%s301 + $0x118] sm:$0xff] %vm3506, %v3413
      %3543 = vst.msk [vmem:[%s301 + $0x120] sm:$0xff] %vm3506, %v3414
      %3544 = vst.msk [vmem:[%s301 + $0x128] sm:$0xff] %vm3506, %v3415
      %3545 = vst.msk [vmem:[%s301 + $0x130] sm:$0xff] %vm3506, %v3416
      %3546 = vst.msk [vmem:[%s301 + $0x138] sm:$0xff] %vm3506, %v3417
      %3547 = vst.msk [vmem:[%s301 + $0x140] sm:$0xff] %vm3506, %v3418
      %3548 = vst.msk [vmem:[%s301 + $0x148] sm:$0xff] %vm3506, %v3419
      %3549 = vst.msk [vmem:[%s301 + $0x150] sm:$0xff] %vm3506, %v3420
      %3550 = vst.msk [vmem:[%s301 + $0x158] sm:$0xff] %vm3506, %v3421
      %3551 = vst.msk [vmem:[%s301 + $0x160] sm:$0xff] %vm3506, %v3422
      %3552 = vst.msk [vmem:[%s301 + $0x168] sm:$0xff] %vm3506, %v3423
      %3553 = vst.msk [vmem:[%s301 + $0x170] sm:$0xff] %vm3506, %v3424
      %3554 = vst.msk [vmem:[%s301 + $0x178] sm:$0xff] %vm3506, %v3425
      %3555 = vst.msk [vmem:[%s301 + $0x180] sm:$0xff] %vm3506, %v3426
      %3556 = vst.msk [vmem:[%s301 + $0x188] sm:$0xff] %vm3506, %v3427
      %3557 = vst.msk [vmem:[%s301 + $0x190] sm:$0xff] %vm3506, %v3428
      %3558 = vst.msk [vmem:[%s301 + $0x198] sm:$0xff] %vm3506, %v3429
      %3559 = vst.msk [vmem:[%s301 + $0x1a0] sm:$0xff] %vm3506, %v3430
      %3560 = vst.msk [vmem:[%s301 + $0x1a8] sm:$0xff] %vm3506, %v3431
      %3561 = vst.msk [vmem:[%s301 + $0x1b0] sm:$0xff] %vm3506, %v3432
      %3562 = vst.msk [vmem:[%s301 + $0x1b8] sm:$0xff] %vm3506, %v3433
      %3563 = vst.msk [vmem:[%s301 + $0x1c0] sm:$0xff] %vm3506, %v3434
      %3564 = vst.msk [vmem:[%s301 + $0x1c8] sm:$0xff] %vm3506, %v3435
      %3565 = vst.msk [vmem:[%s301 + $0x1d0] sm:$0xff] %vm3506, %v3436
      %3566 = vst.msk [vmem:[%s301 + $0x1d8] sm:$0xff] %vm3506, %v3437
      %3567 = vst.msk [vmem:[%s301 + $0x1e0] sm:$0xff] %vm3506, %v3438
      %3568 = vst.msk [vmem:[%s301 + $0x1e8] sm:$0xff] %vm3506, %v3439
      %3569 = vst.msk [vmem:[%s301 + $0x1f0] sm:$0xff] %vm3506, %v3440
      %3570 = vst.msk [vmem:[%s301 + $0x1f8] sm:$0xff] %vm3506, %v3441
      %3571 = vst.msk [vmem:[%s301 + $0x200] sm:$0xff] %vm3506, %v3442
      %3572 = vst.msk [vmem:[%s301 + $0x208] sm:$0xff] %vm3506, %v3443
      %3573 = vst.msk [vmem:[%s301 + $0x210] sm:$0xff] %vm3506, %v3444
      %3574 = vst.msk [vmem:[%s301 + $0x218] sm:$0xff] %vm3506, %v3445
      %3575 = vst.msk [vmem:[%s301 + $0x220] sm:$0xff] %vm3506, %v3446
      %3576 = vst.msk [vmem:[%s301 + $0x228] sm:$0xff] %vm3506, %v3447
      %3577 = vst.msk [vmem:[%s301 + $0x230] sm:$0xff] %vm3506, %v3448
      %3578 = vst.msk [vmem:[%s301 + $0x238] sm:$0xff] %vm3506, %v3449
      %3579 = vst.msk [vmem:[%s301 + $0x240] sm:$0xff] %vm3506, %v3450
      %3580 = vst.msk [vmem:[%s301 + $0x248] sm:$0xff] %vm3506, %v3451
      %3581 = vst.msk [vmem:[%s301 + $0x250] sm:$0xff] %vm3506, %v3452
      %3582 = vst.msk [vmem:[%s301 + $0x258] sm:$0xff] %vm3506, %v3453
      %3583 = vst.msk [vmem:[%s301 + $0x260] sm:$0xff] %vm3506, %v3454
      %3584 = vst.msk [vmem:[%s301 + $0x268] sm:$0xff] %vm3506, %v3455
      %3585 = vst.msk [vmem:[%s301 + $0x270] sm:$0xff] %vm3506, %v3456
      %3586 = vst.msk [vmem:[%s301 + $0x278] sm:$0xff] %vm3506, %v3457
      %3587 = vst.msk [vmem:[%s301 + $0x280] sm:$0xff] %vm3506, %v3458
      %3588 = vst.msk [vmem:[%s301 + $0x288] sm:$0xff] %vm3506, %v3459
      %3589 = vst.msk [vmem:[%s301 + $0x290] sm:$0xff] %vm3506, %v3460
      %3590 = vst.msk [vmem:[%s301 + $0x298] sm:$0xff] %vm3506, %v3461
      %3591 = vst.msk [vmem:[%s301 + $0x2a0] sm:$0xff] %vm3506, %v3462
      %3592 = vst.msk [vmem:[%s301 + $0x2a8] sm:$0xff] %vm3506, %v3463
      %3593 = vst.msk [vmem:[%s301 + $0x2b0] sm:$0xff] %vm3506, %v3464
      %3594 = vst.msk [vmem:[%s301 + $0x2b8] sm:$0xff] %vm3506, %v3465
      %3595 = vst.msk [vmem:[%s301 + $0x2c0] sm:$0xff] %vm3506, %v3466
      %3596 = vst.msk [vmem:[%s301 + $0x2c8] sm:$0xff] %vm3506, %v3467
      %3597 = vst.msk [vmem:[%s301 + $0x2d0] sm:$0xff] %vm3506, %v3468
      %3598 = vst.msk [vmem:[%s301 + $0x2d8] sm:$0xff] %vm3506, %v3469
      %3599 = vst.msk [vmem:[%s301 + $0x2e0] sm:$0xff] %vm3506, %v3470
      %3600 = vst.msk [vmem:[%s301 + $0x2e8] sm:$0xff] %vm3506, %v3471
      %3601 = vst.msk [vmem:[%s301 + $0x2f0] sm:$0xff] %vm3506, %v3472
      %3602 = vst.msk [vmem:[%s301 + $0x2f8] sm:$0xff] %vm3506, %v3473
      %3603 = vst.msk [vmem:[%s301 + $0x300] sm:$0xff] %vm3506, %v3474
      %3604 = vst.msk [vmem:[%s301 + $0x308] sm:$0xff] %vm3506, %v3475
      %3605 = vst.msk [vmem:[%s301 + $0x310] sm:$0xff] %vm3506, %v3476
      %3606 = vst.msk [vmem:[%s301 + $0x318] sm:$0xff] %vm3506, %v3477
      %3607 = vst.msk [vmem:[%s301 + $0x320] sm:$0xff] %vm3506, %v3478
      %3608 = vst.msk [vmem:[%s301 + $0x328] sm:$0xff] %vm3506, %v3479
      %3609 = vst.msk [vmem:[%s301 + $0x330] sm:$0xff] %vm3506, %v3480
      %3610 = vst.msk [vmem:[%s301 + $0x338] sm:$0xff] %vm3506, %v3481
      %3611 = vst.msk [vmem:[%s301 + $0x340] sm:$0xff] %vm3506, %v3482
      %3612 = vst.msk [vmem:[%s301 + $0x348] sm:$0xff] %vm3506, %v3483
      %3613 = vst.msk [vmem:[%s301 + $0x350] sm:$0xff] %vm3506, %v3484
      %3614 = vst.msk [vmem:[%s301 + $0x358] sm:$0xff] %vm3506, %v3485
      %3615 = vst.msk [vmem:[%s301 + $0x360] sm:$0xff] %vm3506, %v3486
      %3616 = vst.msk [vmem:[%s301 + $0x368] sm:$0xff] %vm3506, %v3487
      %3617 = vst.msk [vmem:[%s301 + $0x370] sm:$0xff] %vm3506, %v3488
      %3618 = vst.msk [vmem:[%s301 + $0x378] sm:$0xff] %vm3506, %v3489
      %3619 = vst.msk [vmem:[%s301 + $0x380] sm:$0xff] %vm3506, %v3490
      %3620 = vst.msk [vmem:[%s301 + $0x388] sm:$0xff] %vm3506, %v3491
      %3621 = vst.msk [vmem:[%s301 + $0x390] sm:$0xff] %vm3506, %v3492
      %3622 = vst.msk [vmem:[%s301 + $0x398] sm:$0xff] %vm3506, %v3493
      %3623 = vst.msk [vmem:[%s301 + $0x3a0] sm:$0xff] %vm3506, %v3494
      %3624 = vst.msk [vmem:[%s301 + $0x3a8] sm:$0xff] %vm3506, %v3495
      %3625 = vst.msk [vmem:[%s301 + $0x3b0] sm:$0xff] %vm3506, %v3496
      %3626 = vst.msk [vmem:[%s301 + $0x3b8] sm:$0xff] %vm3506, %v3497
      %3627 = vst.msk [vmem:[%s301 + $0x3c0] sm:$0xff] %vm3506, %v3498
      %3628 = vst.msk [vmem:[%s301 + $0x3c8] sm:$0xff] %vm3506, %v3499
      %3629 = vst.msk [vmem:[%s301 + $0x3d0] sm:$0xff] %vm3506, %v3500
      %3630 = vst.msk [vmem:[%s301 + $0x3d8] sm:$0xff] %vm3506, %v3501
      %3631 = vst.msk [vmem:[%s301 + $0x3e0] sm:$0xff] %vm3506, %v3502
      %3632 = vst.msk [vmem:[%s301 + $0x3e8] sm:$0xff] %vm3506, %v3503
      %3633 = vst.msk [vmem:[%s301 + $0x3f0] sm:$0xff] %vm3506, %v3504
      %3634 = vst.msk [vmem:[%s301 + $0x3f8] sm:$0xff] %vm3506, %v3505
      %p3635 = scmp.lt.s32.totalorder %s22, 1
      %s3636 = scalar_select %p3635, %s22, 1
      %s3637 = smul.addr %s3636, 128
      %s3638 = smul.addr %s3637, 8
      %s3639 = scalar_lea.vmem %s7, %s3638
      // Predicated region
      $region49: #{tpu_custom_call.1} parent=47 // pred_check
        %p3640 = pneg %p202
      $region50: #{tpu_custom_call.1} parent=47 // pred_check_branch
        %3642 = sbr.rel (%p3640) target = $region52
      $region51: #{tpu_custom_call.1} parent=47 // pred_region
        _
      $region52: #{tpu_custom_call.1} parent=47 // pred_fallthru
        _
    $region48: #{tpu_custom_call.1} parent=5 // pred_fallthru
      _
    %p3643 = scmp.le.s32.totalorder 2, %s13
    // Predicated region
    $region53: #{tpu_custom_call.1} parent=5 // pred_check
      %p3644 = pneg %p3643
    $region54: #{tpu_custom_call.1} parent=5 // pred_check_branch
      %3646 = sbr.rel (%p3644) target = $region56
    $region55: #{tpu_custom_call.1} parent=5 // pred_region
      %s3647 = ssub.s32 %s13, 2
      // Predicated region
      $region57: #{tpu_custom_call.1} parent=55 // pred_check
        %p3648 = pneg %p208
      $region58: #{tpu_custom_call.1} parent=55 // pred_check_branch
        %3650 = sbr.rel (%p3648) target = $region60
      $region59: #{tpu_custom_call.1} parent=55 // pred_region
        %p3651 = scmp.lt.s32.totalorder %s24, 1
        %s3652 = scalar_select %p3651, %s24, 1
        %s3653 = smul.addr %s3652, 128
        %s3654 = smul.addr %s3653, 8
        %s3655 = scalar_lea.vmem %s7, %s3654
      $region60: #{tpu_custom_call.1} parent=55 // pred_fallthru
        _
    $region56: #{tpu_custom_call.1} parent=5 // pred_fallthru
      _
  $region6: #{tpu_custom_call.1} parent=0 // loop_footer
    %s17 = sadd.s32 1, %s13
  $region7: #{tpu_custom_call.1} parent=0 // loop_footer_branch
    %12 = sbr.rel target = $region3
  $region8: #{tpu_custom_call.1} parent=0 // loop_exit
    _

</llo_original>
